<compile_context>
chip_gen: v7x
topology: tpu7x:2x2x1
jax: 0.10.0
libtpu: 0.0.40
codegen_flags: <defaults>
</compile_context>

<pallas_src>
import functools
import math

import jax
import jax.numpy as jnp
from jax import lax
from jax.experimental import pallas as pl
from jax.experimental.pallas import tpu as pltpu

EPS = 1e-5


def _preact_block_kernel(x_ref, s1_ref, b1_ref, w1_ref, s2_ref, b2_ref,
                         w2x_ref, wsc_ref, out_ref,
                         pad1_ref, pad2_ref, col_ref, *,
                         NB, H, W, Cin, Cout, stride, has_shortcut,
                         fuse_shortcut, cdtype):
    Ho, Wo = H // stride, W // stride
    R = NB * Ho * Wo
    Wp1 = pad1_ref.shape[2]
    Wp2 = pad2_ref.shape[2]
    f32 = jnp.float32
    K1 = 9 * Cin
    K2 = 9 * Cout + (Cin if fuse_shortcut else 0)

    # ---- bn1 (folded affine) + relu, f32 elementwise (works on all chips) ---
    x = x_ref[...].astype(f32)
    h = jnp.maximum(x * s1_ref[...] + b1_ref[...], 0.0)           # (NB,H,W,Cin)

    # ---- padded copy of h; zero ONLY the 1-px halo (interior is overwritten)
    pad1_ref[:, 0:1, :, :] = jnp.zeros((NB, 1, Wp1, Cin), f32)
    pad1_ref[:, H + 1:H + 2, :, :] = jnp.zeros((NB, 1, Wp1, Cin), f32)
    pad1_ref[:, :, 0:1, :] = jnp.zeros((NB, H + 2, 1, Cin), f32)
    pad1_ref[:, :, W + 1:W + 2, :] = jnp.zeros((NB, H + 2, 1, Cin), f32)
    pad1_ref[:, 1:H + 1, 1:W + 1, :] = h

    # ---- shortcut operand ----------------------------------------------------
    sc = None
    if has_shortcut:
        if stride == 1:
            h_s = h
        else:
            h_s = pad1_ref[:, pl.ds(1, Ho, stride), pl.ds(1, Wo, stride), :]
        h_s2 = h_s.astype(cdtype).reshape(R, Cin)
        if fuse_shortcut:
            # Stash into extra im2col columns; the 1x1 conv rides along inside
            # the conv2 matmul (w2x has wsc appended).  These columns are not
            # touched by either conv's tap writes (Cout >= Cin guaranteed).
            col_ref[:, 9 * Cout:9 * Cout + Cin] = h_s2
        else:
            sc = jnp.dot(h_s2, wsc_ref[...], preferred_element_type=f32)
    # identity shortcut handled at the end (out = acc2 + x), exact in f32.

    # ---- conv1: im2col -> single (R, 9*Cin) @ (9*Cin, Cout) MXU matmul ------
    for kh in range(3):
        for kw in range(3):
            t = kh * 3 + kw
            if stride == 1:
                patch = pad1_ref[:, kh:kh + Ho, kw:kw + Wo, :]
            else:
                patch = pad1_ref[:, pl.ds(kh, Ho, stride),
                                 pl.ds(kw, Wo, stride), :]
            col_ref[:, t * Cin:(t + 1) * Cin] = (
                patch.astype(cdtype).reshape(R, Cin))
    acc1 = jnp.dot(col_ref[:, 0:K1], w1_ref[...], preferred_element_type=f32)

    # ---- bn2 (folded affine) + relu ------------------------------------------
    h2 = jnp.maximum(acc1 * s2_ref[...] + b2_ref[...], 0.0)        # (R, Cout)

    # ---- padded copy of h2; halo-only zeroing --------------------------------
    pad2_ref[:, 0:1, :, :] = jnp.zeros((NB, 1, Wp2, Cout), f32)
    pad2_ref[:, Ho + 1:Ho + 2, :, :] = jnp.zeros((NB, 1, Wp2, Cout), f32)
    pad2_ref[:, :, 0:1, :] = jnp.zeros((NB, Ho + 2, 1, Cout), f32)
    pad2_ref[:, :, Wo + 1:Wo + 2, :] = jnp.zeros((NB, Ho + 2, 1, Cout), f32)
    pad2_ref[:, 1:Ho + 1, 1:Wo + 1, :] = h2.reshape(NB, Ho, Wo, Cout)

    # ---- conv2 (+ fused shortcut): (R, K2) @ (K2, Cout) ----------------------
    # Reuses the same col scratch; conv1's operand has already been consumed.
    for kh in range(3):
        for kw in range(3):
            t = kh * 3 + kw
            patch = pad2_ref[:, kh:kh + Ho, kw:kw + Wo, :]
            col_ref[:, t * Cout:(t + 1) * Cout] = (
                patch.astype(cdtype).reshape(R, Cout))
    acc2 = jnp.dot(col_ref[:, 0:K2], w2x_ref[...], preferred_element_type=f32)

    # ---- residual add --------------------------------------------------------
    if has_shortcut:
        res = acc2 if fuse_shortcut else acc2 + sc
    else:
        res = acc2 + x.reshape(R, Cout)
    out_ref[...] = res.astype(out_ref.dtype)


def _round_up(x, m):
    return (x + m - 1) // m * m


def _padded_bytes(shape, dtype_bytes):
    """Rough VMEM footprint: last dim -> 128 lanes, second-minor -> 8 sublanes."""
    s = list(shape)
    if len(s) >= 1:
        s[-1] = _round_up(s[-1], 128)
    if len(s) >= 2:
        s[-2] = _round_up(s[-2], 8)
    n = 1
    for d in s:
        n *= d
    return n * dtype_bytes


def preact_block_nhwc(x_nhwc, p, stride, *, compute_dtype=jnp.bfloat16,
                      batch_tile=1):
    """PreActBlock forward; x_nhwc (N,H,W,Cin) f32 -> (N,Ho,Wo,Cout) f32 (NHWC)."""
    N, H, W, Cin = x_nhwc.shape
    Cout = p["w1"].shape[0]
    has_shortcut = bool(p["has_shortcut"])
    assert H % stride == 0 and W % stride == 0
    assert N % batch_tile == 0
    if not has_shortcut:
        assert stride == 1 and Cin == Cout, (
            "identity shortcut requires stride == 1 and Cin == Cout")
    Ho, Wo = H // stride, W // stride
    NB = batch_tile
    R = NB * Ho * Wo
    cdtype = jnp.dtype(compute_dtype)
    cdb = cdtype.itemsize

    # Fuse the 1x1 projection shortcut into the conv2 matmul when possible.
    fuse_shortcut = has_shortcut and (Cout >= Cin)
    K2 = 9 * Cout + (Cin if fuse_shortcut else 0)
    Wcol = max(9 * Cin, K2)

    # Fold BatchNorm (inference mode) into per-channel scale/bias (f32).
    scale1 = p["g1"] / jnp.sqrt(p["v1"] + EPS)
    bias1 = p["b1"] - p["m1"] * scale1
    scale2 = p["g2"] / jnp.sqrt(p["v2"] + EPS)
    bias2 = p["b2"] - p["m2"] * scale2

    # Repack conv weights OIHW -> (9*C, Cout), matching im2col K ordering
    # col[:, (kh*3+kw)*C + c]; cast to the MXU compute dtype (bf16 by default).
    w1 = jnp.transpose(p["w1"], (2, 3, 1, 0)).reshape(9 * Cin, Cout).astype(cdtype)
    w2 = jnp.transpose(p["w2"], (2, 3, 1, 0)).reshape(9 * Cout, Cout).astype(cdtype)
    wsc = jnp.transpose(p["wsc"][:, :, 0, 0], (1, 0)).astype(cdtype)   # (Cin, Cout)
    w2x = jnp.concatenate([w2, wsc], axis=0) if fuse_shortcut else w2  # (K2, Cout)

    Wp1 = _round_up(W + 2, 8)
    Wp2 = _round_up(Wo + 2, 8)

    kernel = functools.partial(
        _preact_block_kernel, NB=NB, H=H, W=W, Cin=Cin, Cout=Cout,
        stride=stride, has_shortcut=has_shortcut, fuse_shortcut=fuse_shortcut,
        cdtype=cdtype)

    # Per-tile VMEM footprint (double-buffered pipelined operands + scratch).
    est = (
        2 * _padded_bytes((NB, H, W, Cin), 4)                       # x block
        + 2 * _padded_bytes((R, Cout), 4)                           # out block
        + 2 * (2 * _padded_bytes((1, 1, 1, Cin), 4)
               + 2 * _padded_bytes((1, Cout), 4))                   # scales/biases
        + 2 * (_padded_bytes((9 * Cin, Cout), cdb)
               + _padded_bytes((K2, Cout), cdb)
               + _padded_bytes((Cin, Cout), cdb))                   # weights
        + _padded_bytes((NB, H + 2, Wp1, Cin), 4)                   # pad1 scratch
        + _padded_bytes((NB, Ho + 2, Wp2, Cout), 4)                 # pad2 scratch
        + _padded_bytes((R, Wcol), cdb))                            # shared im2col
    vmem_limit = int(min(100 * 2**20, max(16 * 2**20, 2 * est + (2 << 20))))

    flops = 2 * N * Ho * Wo * (9 * Cin * Cout + 9 * Cout * Cout
                               + (Cin * Cout if has_shortcut else 0))
    bytes_accessed = (N * H * W * Cin * 4 + N * Ho * Wo * Cout * 4
                      + (9 * Cin + K2 + Cin) * Cout * cdb)

    grid_spec = pltpu.PrefetchScalarGridSpec(
        num_scalar_prefetch=0,
        grid=(N // NB,),
        in_specs=[
            pl.BlockSpec((NB, H, W, Cin), lambda b: (b, 0, 0, 0)),   # x tile
            pl.BlockSpec((1, 1, 1, Cin), lambda b: (0, 0, 0, 0)),    # bn1 scale
            pl.BlockSpec((1, 1, 1, Cin), lambda b: (0, 0, 0, 0)),    # bn1 bias
            pl.BlockSpec((9 * Cin, Cout), lambda b: (0, 0)),         # conv1 W
            pl.BlockSpec((1, Cout), lambda b: (0, 0)),               # bn2 scale
            pl.BlockSpec((1, Cout), lambda b: (0, 0)),               # bn2 bias
            pl.BlockSpec((K2, Cout), lambda b: (0, 0)),              # conv2 (+sc) W
            pl.BlockSpec((Cin, Cout), lambda b: (0, 0)),             # shortcut W
        ],
        out_specs=pl.BlockSpec((R, Cout), lambda b: (b, 0)),
        scratch_shapes=[
            pltpu.VMEM((NB, H + 2, Wp1, Cin), jnp.float32),    # padded bn1 out
            pltpu.VMEM((NB, Ho + 2, Wp2, Cout), jnp.float32),  # padded bn2 out
            pltpu.VMEM((R, Wcol), cdtype),                     # shared im2col
        ],
    )

    out2d = pl.pallas_call(
        kernel,
        out_shape=jax.ShapeDtypeStruct((N * Ho * Wo, Cout), jnp.float32),
        grid_spec=grid_spec,
        compiler_params=pltpu.CompilerParams(
            dimension_semantics=("parallel",),
            vmem_limit_bytes=vmem_limit),
        cost_estimate=pl.CostEstimate(
            flops=flops, transcendentals=0, bytes_accessed=bytes_accessed),
    )(x_nhwc.astype(jnp.float32),
      scale1.reshape(1, 1, 1, Cin), bias1.reshape(1, 1, 1, Cin), w1,
      scale2.reshape(1, Cout), bias2.reshape(1, Cout), w2x, wsc)

    return out2d.reshape(N, Ho, Wo, Cout)


def preact_block_pallas(x_nchw, p, stride, *, compute_dtype=jnp.bfloat16,
                        batch_tile=1):
    """NCHW compatibility wrapper (PyTorch layout).  Production ResNets should
    stay NHWC end-to-end and call preact_block_nhwc directly so the two extra
    HBM transpose passes disappear."""
    x_nhwc = jnp.transpose(x_nchw, (0, 2, 3, 1))
    out = preact_block_nhwc(x_nhwc, p, stride, compute_dtype=compute_dtype,
                            batch_tile=batch_tile)
    return jnp.transpose(out, (0, 3, 1, 2))


# ---------------------------------------------------------------------------
# Deterministic parameter init (PyTorch shapes) + pure-JAX reference.
# ---------------------------------------------------------------------------
def init_params(key, cin, cout, stride):
    ks = jax.random.split(key, 11)

    def nrm(k, shape, scale):
        return scale * jax.random.normal(k, shape, jnp.float32)

    p = dict(
        g1=jax.random.uniform(ks[0], (cin,), jnp.float32, 0.5, 1.5),
        b1=nrm(ks[1], (cin,), 0.1),
        m1=nrm(ks[2], (cin,), 0.1),
        v1=jax.random.uniform(ks[3], (cin,), jnp.float32, 0.5, 1.5),
        g2=jax.random.uniform(ks[4], (cout,), jnp.float32, 0.5, 1.5),
        b2=nrm(ks[5], (cout,), 0.1),
        m2=nrm(ks[6], (cout,), 0.1),
        v2=jax.random.uniform(ks[7], (cout,), jnp.float32, 0.5, 1.5),
        w1=nrm(ks[8], (cout, cin, 3, 3), 1.0 / math.sqrt(cin * 9)),
        w2=nrm(ks[9], (cout, cout, 3, 3), 1.0 / math.sqrt(cout * 9)),
    )
    has_shortcut = (stride != 1) or (cin != cout)
    p["wsc"] = (nrm(ks[10], (cout, cin, 1, 1), 1.0 / math.sqrt(cin))
                if has_shortcut else jnp.zeros((cout, cin, 1, 1), jnp.float32))
    p["has_shortcut"] = has_shortcut
    return p


def _bn_relu_nchw(x, gamma, beta, mean, var):
    s = (gamma / jnp.sqrt(var + EPS))[None, :, None, None]
    y = (x - mean[None, :, None, None]) * s + beta[None, :, None, None]
    return jnp.maximum(y, 0.0)


def ref_forward(x, p, stride):
    dn = ("NCHW", "OIHW", "NCHW")
    h = _bn_relu_nchw(x, p["g1"], p["b1"], p["m1"], p["v1"])
    if p["has_shortcut"]:
        sc = lax.conv_general_dilated(h, p["wsc"], (stride, stride), "VALID",
                                      dimension_numbers=dn)
    else:
        sc = x
    o1 = lax.conv_general_dilated(h, p["w1"], (stride, stride),
                                  ((1, 1), (1, 1)), dimension_numbers=dn)
    h2 = _bn_relu_nchw(o1, p["g2"], p["b2"], p["m2"], p["v2"])
    o2 = lax.conv_general_dilated(h2, p["w2"], (1, 1),
                                  ((1, 1), (1, 1)), dimension_numbers=dn)
    return o2 + sc


if __name__ == "__main__":
    key = jax.random.PRNGKey(0)
    N, H, W = 2, 16, 16

    # (name, Cin, Cout, stride, compute dtype, tolerance)
    cases = [
        ("proj_shortcut_f32", 4, 8, 1, jnp.float32, 1e-4),
        ("proj_shortcut_bf16", 4, 8, 1, jnp.bfloat16, 5e-2),
        ("identity_shortcut_f32", 8, 8, 1, jnp.float32, 1e-4),
        ("wide_proj_f32", 64, 128, 1, jnp.float32, 1e-3),
    ]

    for idx, (name, cin, cout, stride, cdt, tol) in enumerate(cases):
        kx, kp = jax.random.split(jax.random.fold_in(key, idx))
        x = jax.random.normal(kx, (N, cin, H, W), jnp.float32)
        params = init_params(kp, cin, cout, stride)

        out = jax.block_until_ready(
            preact_block_pallas(x, params, stride, compute_dtype=cdt))
        ref = ref_forward(x, params, stride)

        assert out.shape == (N, cout, H // stride, W // stride), (name, out.shape)
        max_err = float(jnp.max(jnp.abs(out - ref)))
        if not bool(jnp.allclose(out, ref, atol=tol, rtol=tol)):
            raise AssertionError(
                f"{name}: Pallas output mismatch vs reference, "
                f"max abs err {max_err}")

    print("KERNEL_OK")
</pallas_src>

<mosaic_0001>
module attributes {stable_mosaic.version = 11 : i64} {
  func.func @_preact_block_kernel(%arg0: i32, %arg1: memref<1x16x16x4xf32, #tpu.memory_space<vmem>>, %arg2: memref<1x1x1x4xf32, #tpu.memory_space<vmem>>, %arg3: memref<1x1x1x4xf32, #tpu.memory_space<vmem>>, %arg4: memref<36x8xf32, #tpu.memory_space<vmem>>, %arg5: memref<1x8xf32, #tpu.memory_space<vmem>>, %arg6: memref<1x8xf32, #tpu.memory_space<vmem>>, %arg7: memref<76x8xf32, #tpu.memory_space<vmem>>, %arg8: memref<4x8xf32, #tpu.memory_space<vmem>>, %arg9: memref<256x8xf32, #tpu.memory_space<vmem>>, %arg10: memref<1x18x24x4xf32, #tpu.memory_space<vmem>>, %arg11: memref<1x18x24x8xf32, #tpu.memory_space<vmem>>, %arg12: memref<256x76xf32, #tpu.memory_space<vmem>>) attributes {dimension_semantics = [#tpu.dimension_semantics<parallel>], iteration_bounds = array<i64: 2>, scalar_prefetch = 0 : i64, scratch_operands = 3 : i64, tpu.core_type = #tpu.core_type<tc>, window_params = [{transform_indices = @transform_0, window_bounds = array<i64: 1, 16, 16, 4>}, {pipeline_mode = #tpu.pipeline_mode<synchronous>, transform_indices = @transform_1, window_bounds = array<i64: 1, 1, 1, 4>}, {pipeline_mode = #tpu.pipeline_mode<synchronous>, transform_indices = @transform_2, window_bounds = array<i64: 1, 1, 1, 4>}, {pipeline_mode = #tpu.pipeline_mode<synchronous>, transform_indices = @transform_3, window_bounds = array<i64: 36, 8>}, {pipeline_mode = #tpu.pipeline_mode<synchronous>, transform_indices = @transform_4, window_bounds = array<i64: 1, 8>}, {pipeline_mode = #tpu.pipeline_mode<synchronous>, transform_indices = @transform_5, window_bounds = array<i64: 1, 8>}, {pipeline_mode = #tpu.pipeline_mode<synchronous>, transform_indices = @transform_6, window_bounds = array<i64: 76, 8>}, {pipeline_mode = #tpu.pipeline_mode<synchronous>, transform_indices = @transform_7, window_bounds = array<i64: 4, 8>}, {transform_indices = @transform_8, window_bounds = array<i64: 256, 8>}]} {
    %c0 = arith.constant 0 : index
    %c0_0 = arith.constant 0 : index
    %c0_1 = arith.constant 0 : index
    %c0_2 = arith.constant 0 : index
    %0 = vector.load %arg1[%c0, %c0_0, %c0_1, %c0_2] : memref<1x16x16x4xf32, #tpu.memory_space<vmem>>, vector<1x16x16x4xf32>
    %c0_3 = arith.constant 0 : index
    %c0_4 = arith.constant 0 : index
    %c0_5 = arith.constant 0 : index
    %c0_6 = arith.constant 0 : index
    %1 = vector.load %arg2[%c0_3, %c0_4, %c0_5, %c0_6] : memref<1x1x1x4xf32, #tpu.memory_space<vmem>>, vector<1x1x1x4xf32>
    %2 = vector.broadcast %1 : vector<1x1x1x4xf32> to vector<1x16x16x4xf32>
    %3 = arith.mulf %0, %2 : vector<1x16x16x4xf32>
    %c0_7 = arith.constant 0 : index
    %c0_8 = arith.constant 0 : index
    %c0_9 = arith.constant 0 : index
    %c0_10 = arith.constant 0 : index
    %4 = vector.load %arg3[%c0_7, %c0_8, %c0_9, %c0_10] : memref<1x1x1x4xf32, #tpu.memory_space<vmem>>, vector<1x1x1x4xf32>
    %5 = vector.broadcast %4 : vector<1x1x1x4xf32> to vector<1x16x16x4xf32>
    %6 = arith.addf %3, %5 : vector<1x16x16x4xf32>
    %cst = arith.constant 0.000000e+00 : f32
    %7 = vector.broadcast %cst : f32 to vector<1x16x16x4xf32>
    %8 = arith.maximumf %6, %7 : vector<1x16x16x4xf32>
    %cst_11 = arith.constant 0.000000e+00 : f32
    %9 = vector.broadcast %cst_11 : f32 to vector<1x1x24x4xf32>
    %c0_12 = arith.constant 0 : index
    %c0_13 = arith.constant 0 : index
    %c0_14 = arith.constant 0 : index
    %c0_15 = arith.constant 0 : index
    %10 = vector.load %arg10[%c0_12, %c0_13, %c0_14, %c0_15] : memref<1x18x24x4xf32, #tpu.memory_space<vmem>>, vector<1x1x24x4xf32>
    tpu.vector_store %arg10[%c0_12, %c0_13, %c0_14, %c0_15], %9 {strides = array<i32>} : memref<1x18x24x4xf32, #tpu.memory_space<vmem>>, vector<1x1x24x4xf32>,
    %cst_16 = arith.constant 0.000000e+00 : f32
    %11 = vector.broadcast %cst_16 : f32 to vector<1x1x24x4xf32>
    %c0_17 = arith.constant 0 : index
    %c17 = arith.constant 17 : index
    %c0_18 = arith.constant 0 : index
    %c0_19 = arith.constant 0 : index
    %12 = vector.load %arg10[%c0_17, %c17, %c0_18, %c0_19] : memref<1x18x24x4xf32, #tpu.memory_space<vmem>>, vector<1x1x24x4xf32>
    tpu.vector_store %arg10[%c0_17, %c17, %c0_18, %c0_19], %11 {strides = array<i32>} : memref<1x18x24x4xf32, #tpu.memory_space<vmem>>, vector<1x1x24x4xf32>,
    %cst_20 = arith.constant 0.000000e+00 : f32
    %13 = vector.broadcast %cst_20 : f32 to vector<1x18x1x4xf32>
    %c0_21 = arith.constant 0 : index
    %c0_22 = arith.constant 0 : index
    %c0_23 = arith.constant 0 : index
    %c0_24 = arith.constant 0 : index
    %14 = vector.load %arg10[%c0_21, %c0_22, %c0_23, %c0_24] : memref<1x18x24x4xf32, #tpu.memory_space<vmem>>, vector<1x18x1x4xf32>
    tpu.vector_store %arg10[%c0_21, %c0_22, %c0_23, %c0_24], %13 {strides = array<i32>} : memref<1x18x24x4xf32, #tpu.memory_space<vmem>>, vector<1x18x1x4xf32>,
    %cst_25 = arith.constant 0.000000e+00 : f32
    %15 = vector.broadcast %cst_25 : f32 to vector<1x18x1x4xf32>
    %c0_26 = arith.constant 0 : index
    %c0_27 = arith.constant 0 : index
    %c17_28 = arith.constant 17 : index
    %c0_29 = arith.constant 0 : index
    %16 = vector.load %arg10[%c0_26, %c0_27, %c17_28, %c0_29] : memref<1x18x24x4xf32, #tpu.memory_space<vmem>>, vector<1x18x1x4xf32>
    tpu.vector_store %arg10[%c0_26, %c0_27, %c17_28, %c0_29], %15 {strides = array<i32>} : memref<1x18x24x4xf32, #tpu.memory_space<vmem>>, vector<1x18x1x4xf32>,
    %c0_30 = arith.constant 0 : index
    %c1 = arith.constant 1 : index
    %c1_31 = arith.constant 1 : index
    %c0_32 = arith.constant 0 : index
    %17 = vector.load %arg10[%c0_30, %c1, %c1_31, %c0_32] : memref<1x18x24x4xf32, #tpu.memory_space<vmem>>, vector<1x16x16x4xf32>
    tpu.vector_store %arg10[%c0_30, %c1, %c1_31, %c0_32], %8 {strides = array<i32>} : memref<1x18x24x4xf32, #tpu.memory_space<vmem>>, vector<1x16x16x4xf32>,
    %18 = vector.shape_cast %8 : vector<1x16x16x4xf32> to vector<256x4xf32>
    %c0_33 = arith.constant 0 : index
    %c72 = arith.constant 72 : index
    %19 = vector.load %arg12[%c0_33, %c72] : memref<256x76xf32, #tpu.memory_space<vmem>>, vector<256x4xf32>
    tpu.vector_store %arg12[%c0_33, %c72], %18 {strides = array<i32>} : memref<256x76xf32, #tpu.memory_space<vmem>>, vector<256x4xf32>,
    %c0_34 = arith.constant 0 : index
    %c0_35 = arith.constant 0 : index
    %c0_36 = arith.constant 0 : index
    %c0_37 = arith.constant 0 : index
    %20 = vector.load %arg10[%c0_34, %c0_35, %c0_36, %c0_37] : memref<1x18x24x4xf32, #tpu.memory_space<vmem>>, vector<1x16x16x4xf32>
    %21 = vector.shape_cast %20 : vector<1x16x16x4xf32> to vector<256x4xf32>
    %c0_38 = arith.constant 0 : index
    %c0_39 = arith.constant 0 : index
    %22 = vector.load %arg12[%c0_38, %c0_39] : memref<256x76xf32, #tpu.memory_space<vmem>>, vector<256x4xf32>
    tpu.vector_store %arg12[%c0_38, %c0_39], %21 {strides = array<i32>} : memref<256x76xf32, #tpu.memory_space<vmem>>, vector<256x4xf32>,
    %c0_40 = arith.constant 0 : index
    %c0_41 = arith.constant 0 : index
    %c1_42 = arith.constant 1 : index
    %c0_43 = arith.constant 0 : index
    %23 = vector.load %arg10[%c0_40, %c0_41, %c1_42, %c0_43] : memref<1x18x24x4xf32, #tpu.memory_space<vmem>>, vector<1x16x16x4xf32>
    %24 = vector.shape_cast %23 : vector<1x16x16x4xf32> to vector<256x4xf32>
    %c0_44 = arith.constant 0 : index
    %c4 = arith.constant 4 : index
    %25 = vector.load %arg12[%c0_44, %c4] : memref<256x76xf32, #tpu.memory_space<vmem>>, vector<256x4xf32>
    tpu.vector_store %arg12[%c0_44, %c4], %24 {strides = array<i32>} : memref<256x76xf32, #tpu.memory_space<vmem>>, vector<256x4xf32>,
    %c0_45 = arith.constant 0 : index
    %c0_46 = arith.constant 0 : index
    %c2 = arith.constant 2 : index
    %c0_47 = arith.constant 0 : index
    %26 = vector.load %arg10[%c0_45, %c0_46, %c2, %c0_47] : memref<1x18x24x4xf32, #tpu.memory_space<vmem>>, vector<1x16x16x4xf32>
    %27 = vector.shape_cast %26 : vector<1x16x16x4xf32> to vector<256x4xf32>
    %c0_48 = arith.constant 0 : index
    %c8 = arith.constant 8 : index
    %28 = vector.load %arg12[%c0_48, %c8] : memref<256x76xf32, #tpu.memory_space<vmem>>, vector<256x4xf32>
    tpu.vector_store %arg12[%c0_48, %c8], %27 {strides = array<i32>} : memref<256x76xf32, #tpu.memory_space<vmem>>, vector<256x4xf32>,
    %c0_49 = arith.constant 0 : index
    %c1_50 = arith.constant 1 : index
    %c0_51 = arith.constant 0 : index
    %c0_52 = arith.constant 0 : index
    %29 = vector.load %arg10[%c0_49, %c1_50, %c0_51, %c0_52] : memref<1x18x24x4xf32, #tpu.memory_space<vmem>>, vector<1x16x16x4xf32>
    %30 = vector.shape_cast %29 : vector<1x16x16x4xf32> to vector<256x4xf32>
    %c0_53 = arith.constant 0 : index
    %c12 = arith.constant 12 : index
    %31 = vector.load %arg12[%c0_53, %c12] : memref<256x76xf32, #tpu.memory_space<vmem>>, vector<256x4xf32>
    tpu.vector_store %arg12[%c0_53, %c12], %30 {strides = array<i32>} : memref<256x76xf32, #tpu.memory_space<vmem>>, vector<256x4xf32>,
    %c0_54 = arith.constant 0 : index
    %c1_55 = arith.constant 1 : index
    %c1_56 = arith.constant 1 : index
    %c0_57 = arith.constant 0 : index
    %32 = vector.load %arg10[%c0_54, %c1_55, %c1_56, %c0_57] : memref<1x18x24x4xf32, #tpu.memory_space<vmem>>, vector<1x16x16x4xf32>
    %33 = vector.shape_cast %32 : vector<1x16x16x4xf32> to vector<256x4xf32>
    %c0_58 = arith.constant 0 : index
    %c16 = arith.constant 16 : index
    %34 = vector.load %arg12[%c0_58, %c16] : memref<256x76xf32, #tpu.memory_space<vmem>>, vector<256x4xf32>
    tpu.vector_store %arg12[%c0_58, %c16], %33 {strides = array<i32>} : memref<256x76xf32, #tpu.memory_space<vmem>>, vector<256x4xf32>,
    %c0_59 = arith.constant 0 : index
    %c1_60 = arith.constant 1 : index
    %c2_61 = arith.constant 2 : index
    %c0_62 = arith.constant 0 : index
    %35 = vector.load %arg10[%c0_59, %c1_60, %c2_61, %c0_62] : memref<1x18x24x4xf32, #tpu.memory_space<vmem>>, vector<1x16x16x4xf32>
    %36 = vector.shape_cast %35 : vector<1x16x16x4xf32> to vector<256x4xf32>
    %c0_63 = arith.constant 0 : index
    %c20 = arith.constant 20 : index
    %37 = vector.load %arg12[%c0_63, %c20] : memref<256x76xf32, #tpu.memory_space<vmem>>, vector<256x4xf32>
    tpu.vector_store %arg12[%c0_63, %c20], %36 {strides = array<i32>} : memref<256x76xf32, #tpu.memory_space<vmem>>, vector<256x4xf32>,
    %c0_64 = arith.constant 0 : index
    %c2_65 = arith.constant 2 : index
    %c0_66 = arith.constant 0 : index
    %c0_67 = arith.constant 0 : index
    %38 = vector.load %arg10[%c0_64, %c2_65, %c0_66, %c0_67] : memref<1x18x24x4xf32, #tpu.memory_space<vmem>>, vector<1x16x16x4xf32>
    %39 = vector.shape_cast %38 : vector<1x16x16x4xf32> to vector<256x4xf32>
    %c0_68 = arith.constant 0 : index
    %c24 = arith.constant 24 : index
    %40 = vector.load %arg12[%c0_68, %c24] : memref<256x76xf32, #tpu.memory_space<vmem>>, vector<256x4xf32>
    tpu.vector_store %arg12[%c0_68, %c24], %39 {strides = array<i32>} : memref<256x76xf32, #tpu.memory_space<vmem>>, vector<256x4xf32>,
    %c0_69 = arith.constant 0 : index
    %c2_70 = arith.constant 2 : index
    %c1_71 = arith.constant 1 : index
    %c0_72 = arith.constant 0 : index
    %41 = vector.load %arg10[%c0_69, %c2_70, %c1_71, %c0_72] : memref<1x18x24x4xf32, #tpu.memory_space<vmem>>, vector<1x16x16x4xf32>
    %42 = vector.shape_cast %41 : vector<1x16x16x4xf32> to vector<256x4xf32>
    %c0_73 = arith.constant 0 : index
    %c28 = arith.constant 28 : index
    %43 = vector.load %arg12[%c0_73, %c28] : memref<256x76xf32, #tpu.memory_space<vmem>>, vector<256x4xf32>
    tpu.vector_store %arg12[%c0_73, %c28], %42 {strides = array<i32>} : memref<256x76xf32, #tpu.memory_space<vmem>>, vector<256x4xf32>,
    %c0_74 = arith.constant 0 : index
    %c2_75 = arith.constant 2 : index
    %c2_76 = arith.constant 2 : index
    %c0_77 = arith.constant 0 : index
    %44 = vector.load %arg10[%c0_74, %c2_75, %c2_76, %c0_77] : memref<1x18x24x4xf32, #tpu.memory_space<vmem>>, vector<1x16x16x4xf32>
    %45 = vector.shape_cast %44 : vector<1x16x16x4xf32> to vector<256x4xf32>
    %c0_78 = arith.constant 0 : index
    %c32 = arith.constant 32 : index
    %46 = vector.load %arg12[%c0_78, %c32] : memref<256x76xf32, #tpu.memory_space<vmem>>, vector<256x4xf32>
    tpu.vector_store %arg12[%c0_78, %c32], %45 {strides = array<i32>} : memref<256x76xf32, #tpu.memory_space<vmem>>, vector<256x4xf32>,
    %c0_79 = arith.constant 0 : index
    %c0_80 = arith.constant 0 : index
    %47 = vector.load %arg12[%c0_79, %c0_80] : memref<256x76xf32, #tpu.memory_space<vmem>>, vector<256x36xf32>
    %c0_81 = arith.constant 0 : index
    %c0_82 = arith.constant 0 : index
    %48 = vector.load %arg4[%c0_81, %c0_82] : memref<36x8xf32, #tpu.memory_space<vmem>>, vector<36x8xf32>
    %cst_83 = arith.constant dense<0.000000e+00> : vector<256x8xf32>
    %49 = tpu.matmul %47, %48, %cst_83 {dimension_numbers = #tpu.dot_dimension_numbers<[1], [0], [0], [1], [0, 0, 1, 1], [], []>} : vector<256x36xf32>, vector<36x8xf32>, vector<256x8xf32> -> vector<256x8xf32>
    %c0_84 = arith.constant 0 : index
    %c0_85 = arith.constant 0 : index
    %50 = vector.load %arg5[%c0_84, %c0_85] : memref<1x8xf32, #tpu.memory_space<vmem>>, vector<1x8xf32>
    %51 = vector.broadcast %50 : vector<1x8xf32> to vector<256x8xf32>
    %52 = arith.mulf %49, %51 : vector<256x8xf32>
    %c0_86 = arith.constant 0 : index
    %c0_87 = arith.constant 0 : index
    %53 = vector.load %arg6[%c0_86, %c0_87] : memref<1x8xf32, #tpu.memory_space<vmem>>, vector<1x8xf32>
    %54 = vector.broadcast %53 : vector<1x8xf32> to vector<256x8xf32>
    %55 = arith.addf %52, %54 : vector<256x8xf32>
    %cst_88 = arith.constant 0.000000e+00 : f32
    %56 = vector.broadcast %cst_88 : f32 to vector<256x8xf32>
    %57 = arith.maximumf %55, %56 : vector<256x8xf32>
    %cst_89 = arith.constant 0.000000e+00 : f32
    %58 = vector.broadcast %cst_89 : f32 to vector<1x1x24x8xf32>
    %c0_90 = arith.constant 0 : index
    %c0_91 = arith.constant 0 : index
    %c0_92 = arith.constant 0 : index
    %c0_93 = arith.constant 0 : index
    %59 = vector.load %arg11[%c0_90, %c0_91, %c0_92, %c0_93] : memref<1x18x24x8xf32, #tpu.memory_space<vmem>>, vector<1x1x24x8xf32>
    tpu.vector_store %arg11[%c0_90, %c0_91, %c0_92, %c0_93], %58 {strides = array<i32>} : memref<1x18x24x8xf32, #tpu.memory_space<vmem>>, vector<1x1x24x8xf32>,
    %cst_94 = arith.constant 0.000000e+00 : f32
    %60 = vector.broadcast %cst_94 : f32 to vector<1x1x24x8xf32>
    %c0_95 = arith.constant 0 : index
    %c17_96 = arith.constant 17 : index
    %c0_97 = arith.constant 0 : index
    %c0_98 = arith.constant 0 : index
    %61 = vector.load %arg11[%c0_95, %c17_96, %c0_97, %c0_98] : memref<1x18x24x8xf32, #tpu.memory_space<vmem>>, vector<1x1x24x8xf32>
    tpu.vector_store %arg11[%c0_95, %c17_96, %c0_97, %c0_98], %60 {strides = array<i32>} : memref<1x18x24x8xf32, #tpu.memory_space<vmem>>, vector<1x1x24x8xf32>,
    %cst_99 = arith.constant 0.000000e+00 : f32
    %62 = vector.broadcast %cst_99 : f32 to vector<1x18x1x8xf32>
    %c0_100 = arith.constant 0 : index
    %c0_101 = arith.constant 0 : index
    %c0_102 = arith.constant 0 : index
    %c0_103 = arith.constant 0 : index
    %63 = vector.load %arg11[%c0_100, %c0_101, %c0_102, %c0_103] : memref<1x18x24x8xf32, #tpu.memory_space<vmem>>, vector<1x18x1x8xf32>
    tpu.vector_store %arg11[%c0_100, %c0_101, %c0_102, %c0_103], %62 {strides = array<i32>} : memref<1x18x24x8xf32, #tpu.memory_space<vmem>>, vector<1x18x1x8xf32>,
    %cst_104 = arith.constant 0.000000e+00 : f32
    %64 = vector.broadcast %cst_104 : f32 to vector<1x18x1x8xf32>
    %c0_105 = arith.constant 0 : index
    %c0_106 = arith.constant 0 : index
    %c17_107 = arith.constant 17 : index
    %c0_108 = arith.constant 0 : index
    %65 = vector.load %arg11[%c0_105, %c0_106, %c17_107, %c0_108] : memref<1x18x24x8xf32, #tpu.memory_space<vmem>>, vector<1x18x1x8xf32>
    tpu.vector_store %arg11[%c0_105, %c0_106, %c17_107, %c0_108], %64 {strides = array<i32>} : memref<1x18x24x8xf32, #tpu.memory_space<vmem>>, vector<1x18x1x8xf32>,
    %66 = vector.shape_cast %57 : vector<256x8xf32> to vector<1x16x16x8xf32>
    %c0_109 = arith.constant 0 : index
    %c1_110 = arith.constant 1 : index
    %c1_111 = arith.constant 1 : index
    %c0_112 = arith.constant 0 : index
    %67 = vector.load %arg11[%c0_109, %c1_110, %c1_111, %c0_112] : memref<1x18x24x8xf32, #tpu.memory_space<vmem>>, vector<1x16x16x8xf32>
    tpu.vector_store %arg11[%c0_109, %c1_110, %c1_111, %c0_112], %66 {strides = array<i32>} : memref<1x18x24x8xf32, #tpu.memory_space<vmem>>, vector<1x16x16x8xf32>,
    %c0_113 = arith.constant 0 : index
    %c0_114 = arith.constant 0 : index
    %c0_115 = arith.constant 0 : index
    %c0_116 = arith.constant 0 : index
    %68 = vector.load %arg11[%c0_113, %c0_114, %c0_115, %c0_116] : memref<1x18x24x8xf32, #tpu.memory_space<vmem>>, vector<1x16x16x8xf32>
    %69 = vector.shape_cast %68 : vector<1x16x16x8xf32> to vector<256x8xf32>
    %c0_117 = arith.constant 0 : index
    %c0_118 = arith.constant 0 : index
    %70 = vector.load %arg12[%c0_117, %c0_118] : memref<256x76xf32, #tpu.memory_space<vmem>>, vector<256x8xf32>
    tpu.vector_store %arg12[%c0_117, %c0_118], %69 {strides = array<i32>} : memref<256x76xf32, #tpu.memory_space<vmem>>, vector<256x8xf32>,
    %c0_119 = arith.constant 0 : index
    %c0_120 = arith.constant 0 : index
    %c1_121 = arith.constant 1 : index
    %c0_122 = arith.constant 0 : index
    %71 = vector.load %arg11[%c0_119, %c0_120, %c1_121, %c0_122] : memref<1x18x24x8xf32, #tpu.memory_space<vmem>>, vector<1x16x16x8xf32>
    %72 = vector.shape_cast %71 : vector<1x16x16x8xf32> to vector<256x8xf32>
    %c0_123 = arith.constant 0 : index
    %c8_124 = arith.constant 8 : index
    %73 = vector.load %arg12[%c0_123, %c8_124] : memref<256x76xf32, #tpu.memory_space<vmem>>, vector<256x8xf32>
    tpu.vector_store %arg12[%c0_123, %c8_124], %72 {strides = array<i32>} : memref<256x76xf32, #tpu.memory_space<vmem>>, vector<256x8xf32>,
    %c0_125 = arith.constant 0 : index
    %c0_126 = arith.constant 0 : index
    %c2_127 = arith.constant 2 : index
    %c0_128 = arith.constant 0 : index
    %74 = vector.load %arg11[%c0_125, %c0_126, %c2_127, %c0_128] : memref<1x18x24x8xf32, #tpu.memory_space<vmem>>, vector<1x16x16x8xf32>
    %75 = vector.shape_cast %74 : vector<1x16x16x8xf32> to vector<256x8xf32>
    %c0_129 = arith.constant 0 : index
    %c16_130 = arith.constant 16 : index
    %76 = vector.load %arg12[%c0_129, %c16_130] : memref<256x76xf32, #tpu.memory_space<vmem>>, vector<256x8xf32>
    tpu.vector_store %arg12[%c0_129, %c16_130], %75 {strides = array<i32>} : memref<256x76xf32, #tpu.memory_space<vmem>>, vector<256x8xf32>,
    %c0_131 = arith.constant 0 : index
    %c1_132 = arith.constant 1 : index
    %c0_133 = arith.constant 0 : index
    %c0_134 = arith.constant 0 : index
    %77 = vector.load %arg11[%c0_131, %c1_132, %c0_133, %c0_134] : memref<1x18x24x8xf32, #tpu.memory_space<vmem>>, vector<1x16x16x8xf32>
    %78 = vector.shape_cast %77 : vector<1x16x16x8xf32> to vector<256x8xf32>
    %c0_135 = arith.constant 0 : index
    %c24_136 = arith.constant 24 : index
    %79 = vector.load %arg12[%c0_135, %c24_136] : memref<256x76xf32, #tpu.memory_space<vmem>>, vector<256x8xf32>
    tpu.vector_store %arg12[%c0_135, %c24_136], %78 {strides = array<i32>} : memref<256x76xf32, #tpu.memory_space<vmem>>, vector<256x8xf32>,
    %c0_137 = arith.constant 0 : index
    %c1_138 = arith.constant 1 : index
    %c1_139 = arith.constant 1 : index
    %c0_140 = arith.constant 0 : index
    %80 = vector.load %arg11[%c0_137, %c1_138, %c1_139, %c0_140] : memref<1x18x24x8xf32, #tpu.memory_space<vmem>>, vector<1x16x16x8xf32>
    %81 = vector.shape_cast %80 : vector<1x16x16x8xf32> to vector<256x8xf32>
    %c0_141 = arith.constant 0 : index
    %c32_142 = arith.constant 32 : index
    %82 = vector.load %arg12[%c0_141, %c32_142] : memref<256x76xf32, #tpu.memory_space<vmem>>, vector<256x8xf32>
    tpu.vector_store %arg12[%c0_141, %c32_142], %81 {strides = array<i32>} : memref<256x76xf32, #tpu.memory_space<vmem>>, vector<256x8xf32>,
    %c0_143 = arith.constant 0 : index
    %c1_144 = arith.constant 1 : index
    %c2_145 = arith.constant 2 : index
    %c0_146 = arith.constant 0 : index
    %83 = vector.load %arg11[%c0_143, %c1_144, %c2_145, %c0_146] : memref<1x18x24x8xf32, #tpu.memory_space<vmem>>, vector<1x16x16x8xf32>
    %84 = vector.shape_cast %83 : vector<1x16x16x8xf32> to vector<256x8xf32>
    %c0_147 = arith.constant 0 : index
    %c40 = arith.constant 40 : index
    %85 = vector.load %arg12[%c0_147, %c40] : memref<256x76xf32, #tpu.memory_space<vmem>>, vector<256x8xf32>
    tpu.vector_store %arg12[%c0_147, %c40], %84 {strides = array<i32>} : memref<256x76xf32, #tpu.memory_space<vmem>>, vector<256x8xf32>,
    %c0_148 = arith.constant 0 : index
    %c2_149 = arith.constant 2 : index
    %c0_150 = arith.constant 0 : index
    %c0_151 = arith.constant 0 : index
    %86 = vector.load %arg11[%c0_148, %c2_149, %c0_150, %c0_151] : memref<1x18x24x8xf32, #tpu.memory_space<vmem>>, vector<1x16x16x8xf32>
    %87 = vector.shape_cast %86 : vector<1x16x16x8xf32> to vector<256x8xf32>
    %c0_152 = arith.constant 0 : index
    %c48 = arith.constant 48 : index
    %88 = vector.load %arg12[%c0_152, %c48] : memref<256x76xf32, #tpu.memory_space<vmem>>, vector<256x8xf32>
    tpu.vector_store %arg12[%c0_152, %c48], %87 {strides = array<i32>} : memref<256x76xf32, #tpu.memory_space<vmem>>, vector<256x8xf32>,
    %c0_153 = arith.constant 0 : index
    %c2_154 = arith.constant 2 : index
    %c1_155 = arith.constant 1 : index
    %c0_156 = arith.constant 0 : index
    %89 = vector.load %arg11[%c0_153, %c2_154, %c1_155, %c0_156] : memref<1x18x24x8xf32, #tpu.memory_space<vmem>>, vector<1x16x16x8xf32>
    %90 = vector.shape_cast %89 : vector<1x16x16x8xf32> to vector<256x8xf32>
    %c0_157 = arith.constant 0 : index
    %c56 = arith.constant 56 : index
    %91 = vector.load %arg12[%c0_157, %c56] : memref<256x76xf32, #tpu.memory_space<vmem>>, vector<256x8xf32>
    tpu.vector_store %arg12[%c0_157, %c56], %90 {strides = array<i32>} : memref<256x76xf32, #tpu.memory_space<vmem>>, vector<256x8xf32>,
    %c0_158 = arith.constant 0 : index
    %c2_159 = arith.constant 2 : index
    %c2_160 = arith.constant 2 : index
    %c0_161 = arith.constant 0 : index
    %92 = vector.load %arg11[%c0_158, %c2_159, %c2_160, %c0_161] : memref<1x18x24x8xf32, #tpu.memory_space<vmem>>, vector<1x16x16x8xf32>
    %93 = vector.shape_cast %92 : vector<1x16x16x8xf32> to vector<256x8xf32>
    %c0_162 = arith.constant 0 : index
    %c64 = arith.constant 64 : index
    %94 = vector.load %arg12[%c0_162, %c64] : memref<256x76xf32, #tpu.memory_space<vmem>>, vector<256x8xf32>
    tpu.vector_store %arg12[%c0_162, %c64], %93 {strides = array<i32>} : memref<256x76xf32, #tpu.memory_space<vmem>>, vector<256x8xf32>,
    %c0_163 = arith.constant 0 : index
    %c0_164 = arith.constant 0 : index
    %95 = vector.load %arg12[%c0_163, %c0_164] : memref<256x76xf32, #tpu.memory_space<vmem>>, vector<256x76xf32>
    %c0_165 = arith.constant 0 : index
    %c0_166 = arith.constant 0 : index
    %96 = vector.load %arg7[%c0_165, %c0_166] : memref<76x8xf32, #tpu.memory_space<vmem>>, vector<76x8xf32>
    %cst_167 = arith.constant dense<0.000000e+00> : vector<256x8xf32>
    %97 = tpu.matmul %95, %96, %cst_167 {dimension_numbers = #tpu.dot_dimension_numbers<[1], [0], [0], [1], [0, 0, 1, 1], [], []>} : vector<256x76xf32>, vector<76x8xf32>, vector<256x8xf32> -> vector<256x8xf32>
    %c0_168 = arith.constant 0 : index
    %c0_169 = arith.constant 0 : index
    %98 = vector.load %arg9[%c0_168, %c0_169] : memref<256x8xf32, #tpu.memory_space<vmem>>, vector<256x8xf32>
    tpu.vector_store %arg9[%c0_168, %c0_169], %97 {strides = array<i32>} : memref<256x8xf32, #tpu.memory_space<vmem>>, vector<256x8xf32>,
    return
  }
  func.func @transform_0(%arg0: i32) -> (i32, i32, i32, i32) {
    %c0_i32 = arith.constant 0 : i32
    %c0_i32_0 = arith.constant 0 : i32
    %c0_i32_1 = arith.constant 0 : i32
    %c0_i32_2 = arith.constant 0 : i32
    return %arg0, %c0_i32, %c0_i32_0, %c0_i32_1 : i32, i32, i32, i32
  }
  func.func @transform_1(%arg0: i32) -> (i32, i32, i32, i32) {
    %c0_i32 = arith.constant 0 : i32
    %c0_i32_0 = arith.constant 0 : i32
    %c0_i32_1 = arith.constant 0 : i32
    %c0_i32_2 = arith.constant 0 : i32
    %c0_i32_3 = arith.constant 0 : i32
    return %c0_i32, %c0_i32_0, %c0_i32_1, %c0_i32_2 : i32, i32, i32, i32
  }
  func.func @transform_2(%arg0: i32) -> (i32, i32, i32, i32) {
    %c0_i32 = arith.constant 0 : i32
    %c0_i32_0 = arith.constant 0 : i32
    %c0_i32_1 = arith.constant 0 : i32
    %c0_i32_2 = arith.constant 0 : i32
    %c0_i32_3 = arith.constant 0 : i32
    return %c0_i32, %c0_i32_0, %c0_i32_1, %c0_i32_2 : i32, i32, i32, i32
  }
  func.func @transform_3(%arg0: i32) -> (i32, i32) {
    %c0_i32 = arith.constant 0 : i32
    %c0_i32_0 = arith.constant 0 : i32
    %c0_i32_1 = arith.constant 0 : i32
    return %c0_i32, %c0_i32_0 : i32, i32
  }
  func.func @transform_4(%arg0: i32) -> (i32, i32) {
    %c0_i32 = arith.constant 0 : i32
    %c0_i32_0 = arith.constant 0 : i32
    %c0_i32_1 = arith.constant 0 : i32
    return %c0_i32, %c0_i32_0 : i32, i32
  }
  func.func @transform_5(%arg0: i32) -> (i32, i32) {
    %c0_i32 = arith.constant 0 : i32
    %c0_i32_0 = arith.constant 0 : i32
    %c0_i32_1 = arith.constant 0 : i32
    return %c0_i32, %c0_i32_0 : i32, i32
  }
  func.func @transform_6(%arg0: i32) -> (i32, i32) {
    %c0_i32 = arith.constant 0 : i32
    %c0_i32_0 = arith.constant 0 : i32
    %c0_i32_1 = arith.constant 0 : i32
    return %c0_i32, %c0_i32_0 : i32, i32
  }
  func.func @transform_7(%arg0: i32) -> (i32, i32) {
    %c0_i32 = arith.constant 0 : i32
    %c0_i32_0 = arith.constant 0 : i32
    %c0_i32_1 = arith.constant 0 : i32
    return %c0_i32, %c0_i32_0 : i32, i32
  }
  func.func @transform_8(%arg0: i32) -> (i32, i32) {
    %c0_i32 = arith.constant 0 : i32
    %c0_i32_0 = arith.constant 0 : i32
    return %arg0, %c0_i32 : i32, i32
  }
}

</mosaic_0001>

<llo_original>
// kernel: tpu_custom_call.1
$region0: #{tpu_custom_call.1}
  #allocation0 [shape = 'u32[]', space=smem, size = 0x4, offset = 0x4, fixed_abs, tag = 'smem constant byte address 0x4 - core index']
  #allocation1 [shape = 'u32[144,128]{1,0:T(1,128)}', space=vmem, size = 0x12000, scoped, tag = 'internal scratch']
  #allocation2 [shape = 'f32[1,18,24,4]{3,2,1,0:T(8,128)}', space=vmem, size = 0x36000, scoped, tag = 'scratch operand']
  #allocation3 [shape = 'f32[1,18,24,8]{3,2,1,0:T(8,128)}', space=vmem, size = 0x36000, scoped, tag = 'scratch operand']
  #allocation4 [shape = 'f32[256,76]{1,0:T(8,128)}', space=vmem, size = 0x20000, scoped, tag = 'scratch operand']
  %s0 = inlined_call_operand.vmem [shape: f32[2,16,16,4], index: 0, kind: input, shape index: {}]
  %s1 = inlined_call_operand.vmem [shape: f32[1,1,1,4], index: 1, kind: input, shape index: {}]
  %s2 = inlined_call_operand.vmem [shape: f32[1,1,1,4], index: 2, kind: input, shape index: {}]
  %s3 = inlined_call_operand.vmem [shape: f32[36,8], index: 3, kind: input, shape index: {}]
  %s4 = inlined_call_operand.vmem [shape: f32[1,8], index: 4, kind: input, shape index: {}]
  %s5 = inlined_call_operand.vmem [shape: f32[1,8], index: 5, kind: input, shape index: {}]
  %s6 = inlined_call_operand.vmem [shape: f32[76,8], index: 6, kind: input, shape index: {}]
  %s7 = inlined_call_operand.vmem [shape: f32[4,8], index: 7, kind: input, shape index: {}]
  %s8 = inlined_call_operand.vmem [shape: f32[512,8], index: 8, kind: output, shape index: {}]
  %s9 = sld [smem:[#allocation0]]
  $region65: #{tpu_custom_call.1} parent=0
    _
  %s11 = ssub.s32 1, %s9
  %s12 = scalar_select 0, %s11, %s9
  loop: start=0, step=1, limit=4
  $region2: #{tpu_custom_call.1} parent=0 // loop_pre_header
    _
  $region3: #{tpu_custom_call.1} parent=0 // loop_header
    %s14 = sphi 0, %s18
    %p15 = scmp.ge.s32.totalorder %s14, 4
    %s24 = sphi 0, %s26
    %s27 = sphi 0, %s24
    %s28 = sphi 0, %s27
    %s44 = sphi 0, %s28
    %s48 = sphi 0, %s48
    %s50 = sphi 0, %s48
    %s51 = sphi 0, %s50
    %s65 = sphi 0, %s51
    %s69 = sphi 0, %s69
    %s71 = sphi 0, %s69
    %s72 = sphi 0, %s71
    %s86 = sphi 0, %s72
    %s90 = sphi 0, %s90
    %s92 = sphi 0, %s90
    %s93 = sphi 0, %s92
    %s107 = sphi 0, %s93
    %s111 = sphi 0, %s111
    %s113 = sphi 0, %s111
    %s114 = sphi 0, %s113
    %s128 = sphi 0, %s114
    %s132 = sphi 0, %s132
    %s134 = sphi 0, %s132
    %s135 = sphi 0, %s134
    %s149 = sphi 0, %s135
    %s153 = sphi 0, %s153
    %s155 = sphi 0, %s153
    %s156 = sphi 0, %s155
    %s170 = sphi 0, %s156
    %s174 = sphi 0, %s174
    %s176 = sphi 0, %s174
    %s177 = sphi 0, %s176
    %s191 = sphi 0, %s177
    %s197 = sphi 0, %s199
    %s200 = sphi 0, %s197
    %s201 = sphi 0, %s200
    %s217 = sphi 0, %s201
  $region4: #{tpu_custom_call.1} parent=0 // loop_header_branch
    %17 = sbr.rel (%p15) target = $region8
  $region5: #{tpu_custom_call.1} parent=0 // loop_body
    %s19 = ssub.s32 %s14, 1
    %s20 = ssub.s32 %s14, 2
    %s21 = sadd.s32 %s14, 1
    %s22 = ssub.s32 %s14, %s21
    %p23 = scmp.eq.s32.totalorder %s22, 0
    %s25 = sadd.s32 %s24, 1
    %s26 = scalar_select %p23, %s24, %s25
    %p29 = pneg %p23
    %p30 = scmp.eq.s32.totalorder %s14, 1
    %p31 = por %p29, %p30
    %p32 = scmp.ne.s32.totalorder %s24, %s27
    %p33 = scmp.eq.s32.totalorder %s14, 0
    %p34 = por %p32, %p33
    %p35 = scmp.ne.s32.totalorder %s24, %s27
    %p36 = scmp.eq.s32.totalorder %s19, 1
    %p37 = por %p35, %p36
    %p38 = scmp.ne.s32.totalorder %s27, %s28
    %p39 = scmp.eq.s32.totalorder %s19, 0
    %p40 = por %p38, %p39
    %p41 = scmp.ne.s32.totalorder %s27, %s28
    %p42 = scmp.eq.s32.totalorder %s20, 1
    %p43 = por %p41, %p42
    %p45 = scmp.ne.s32.totalorder %s28, %s44
    %p46 = scmp.eq.s32.totalorder %s20, 0
    %p47 = por %p45, %p46
    %s49 = sadd.s32 %s48, 1
    %p52 = scmp.eq.s32.totalorder %s14, 1
    %p53 = scmp.ne.s32.totalorder %s48, %s50
    %p54 = scmp.eq.s32.totalorder %s14, 0
    %p55 = por %p53, %p54
    %p56 = scmp.ne.s32.totalorder %s48, %s50
    %p57 = scmp.eq.s32.totalorder %s19, 1
    %p58 = por %p56, %p57
    %p59 = scmp.ne.s32.totalorder %s50, %s51
    %p60 = scmp.eq.s32.totalorder %s19, 0
    %p61 = por %p59, %p60
    %p62 = scmp.ne.s32.totalorder %s50, %s51
    %p63 = scmp.eq.s32.totalorder %s20, 1
    %p64 = por %p62, %p63
    %p66 = scmp.ne.s32.totalorder %s51, %s65
    %p67 = scmp.eq.s32.totalorder %s20, 0
    %p68 = por %p66, %p67
    %s70 = sadd.s32 %s69, 1
    %p73 = scmp.eq.s32.totalorder %s14, 1
    %p74 = scmp.ne.s32.totalorder %s69, %s71
    %p75 = scmp.eq.s32.totalorder %s14, 0
    %p76 = por %p74, %p75
    %p77 = scmp.ne.s32.totalorder %s69, %s71
    %p78 = scmp.eq.s32.totalorder %s19, 1
    %p79 = por %p77, %p78
    %p80 = scmp.ne.s32.totalorder %s71, %s72
    %p81 = scmp.eq.s32.totalorder %s19, 0
    %p82 = por %p80, %p81
    %p83 = scmp.ne.s32.totalorder %s71, %s72
    %p84 = scmp.eq.s32.totalorder %s20, 1
    %p85 = por %p83, %p84
    %p87 = scmp.ne.s32.totalorder %s72, %s86
    %p88 = scmp.eq.s32.totalorder %s20, 0
    %p89 = por %p87, %p88
    %s91 = sadd.s32 %s90, 1
    %p94 = scmp.eq.s32.totalorder %s14, 1
    %p95 = scmp.ne.s32.totalorder %s90, %s92
    %p96 = scmp.eq.s32.totalorder %s14, 0
    %p97 = por %p95, %p96
    %p98 = scmp.ne.s32.totalorder %s90, %s92
    %p99 = scmp.eq.s32.totalorder %s19, 1
    %p100 = por %p98, %p99
    %p101 = scmp.ne.s32.totalorder %s92, %s93
    %p102 = scmp.eq.s32.totalorder %s19, 0
    %p103 = por %p101, %p102
    %p104 = scmp.ne.s32.totalorder %s92, %s93
    %p105 = scmp.eq.s32.totalorder %s20, 1
    %p106 = por %p104, %p105
    %p108 = scmp.ne.s32.totalorder %s93, %s107
    %p109 = scmp.eq.s32.totalorder %s20, 0
    %p110 = por %p108, %p109
    %s112 = sadd.s32 %s111, 1
    %p115 = scmp.eq.s32.totalorder %s14, 1
    %p116 = scmp.ne.s32.totalorder %s111, %s113
    %p117 = scmp.eq.s32.totalorder %s14, 0
    %p118 = por %p116, %p117
    %p119 = scmp.ne.s32.totalorder %s111, %s113
    %p120 = scmp.eq.s32.totalorder %s19, 1
    %p121 = por %p119, %p120
    %p122 = scmp.ne.s32.totalorder %s113, %s114
    %p123 = scmp.eq.s32.totalorder %s19, 0
    %p124 = por %p122, %p123
    %p125 = scmp.ne.s32.totalorder %s113, %s114
    %p126 = scmp.eq.s32.totalorder %s20, 1
    %p127 = por %p125, %p126
    %p129 = scmp.ne.s32.totalorder %s114, %s128
    %p130 = scmp.eq.s32.totalorder %s20, 0
    %p131 = por %p129, %p130
    %s133 = sadd.s32 %s132, 1
    %p136 = scmp.eq.s32.totalorder %s14, 1
    %p137 = scmp.ne.s32.totalorder %s132, %s134
    %p138 = scmp.eq.s32.totalorder %s14, 0
    %p139 = por %p137, %p138
    %p140 = scmp.ne.s32.totalorder %s132, %s134
    %p141 = scmp.eq.s32.totalorder %s19, 1
    %p142 = por %p140, %p141
    %p143 = scmp.ne.s32.totalorder %s134, %s135
    %p144 = scmp.eq.s32.totalorder %s19, 0
    %p145 = por %p143, %p144
    %p146 = scmp.ne.s32.totalorder %s134, %s135
    %p147 = scmp.eq.s32.totalorder %s20, 1
    %p148 = por %p146, %p147
    %p150 = scmp.ne.s32.totalorder %s135, %s149
    %p151 = scmp.eq.s32.totalorder %s20, 0
    %p152 = por %p150, %p151
    %s154 = sadd.s32 %s153, 1
    %p157 = scmp.eq.s32.totalorder %s14, 1
    %p158 = scmp.ne.s32.totalorder %s153, %s155
    %p159 = scmp.eq.s32.totalorder %s14, 0
    %p160 = por %p158, %p159
    %p161 = scmp.ne.s32.totalorder %s153, %s155
    %p162 = scmp.eq.s32.totalorder %s19, 1
    %p163 = por %p161, %p162
    %p164 = scmp.ne.s32.totalorder %s155, %s156
    %p165 = scmp.eq.s32.totalorder %s19, 0
    %p166 = por %p164, %p165
    %p167 = scmp.ne.s32.totalorder %s155, %s156
    %p168 = scmp.eq.s32.totalorder %s20, 1
    %p169 = por %p167, %p168
    %p171 = scmp.ne.s32.totalorder %s156, %s170
    %p172 = scmp.eq.s32.totalorder %s20, 0
    %p173 = por %p171, %p172
    %s175 = sadd.s32 %s174, 1
    %p178 = scmp.eq.s32.totalorder %s14, 1
    %p179 = scmp.ne.s32.totalorder %s174, %s176
    %p180 = scmp.eq.s32.totalorder %s14, 0
    %p181 = por %p179, %p180
    %p182 = scmp.ne.s32.totalorder %s174, %s176
    %p183 = scmp.eq.s32.totalorder %s19, 1
    %p184 = por %p182, %p183
    %p185 = scmp.ne.s32.totalorder %s176, %s177
    %p186 = scmp.eq.s32.totalorder %s19, 0
    %p187 = por %p185, %p186
    %p188 = scmp.ne.s32.totalorder %s176, %s177
    %p189 = scmp.eq.s32.totalorder %s20, 1
    %p190 = por %p188, %p189
    %p192 = scmp.ne.s32.totalorder %s177, %s191
    %p193 = scmp.eq.s32.totalorder %s20, 0
    %p194 = por %p192, %p193
    %s195 = ssub.s32 %s14, %s21
    %p196 = scmp.eq.s32.totalorder %s195, 0
    %s198 = sadd.s32 %s197, 1
    %s199 = scalar_select %p196, %s197, %s198
    %p202 = pneg %p196
    %p203 = scmp.eq.s32.totalorder %s14, 1
    %p204 = por %p202, %p203
    %p205 = scmp.ne.s32.totalorder %s197, %s200
    %p206 = scmp.eq.s32.totalorder %s14, 0
    %p207 = por %p205, %p206
    %p208 = scmp.ne.s32.totalorder %s197, %s200
    %p209 = scmp.eq.s32.totalorder %s19, 1
    %p210 = por %p208, %p209
    %p211 = scmp.ne.s32.totalorder %s200, %s201
    %p212 = scmp.eq.s32.totalorder %s19, 0
    %p213 = por %p211, %p212
    %p214 = scmp.ne.s32.totalorder %s200, %s201
    %p215 = scmp.eq.s32.totalorder %s20, 1
    %p216 = por %p214, %p215
    %p218 = scmp.ne.s32.totalorder %s201, %s217
    %p219 = scmp.eq.s32.totalorder %s20, 0
    %p220 = por %p218, %p219
    %p221 = scmp.le.s32.totalorder 1, %s14
    %p222 = scmp.lt.s32.totalorder %s14, 3
    %p223 = pnand %p221, %p222
    %p224 = pneg %p223
    // Predicated region
    $region9: #{tpu_custom_call.1} parent=5 // pred_check
      _
    $region10: #{tpu_custom_call.1} parent=5 // pred_check_branch
      %226 = sbr.rel (%p223) target = $region12
    $region11: #{tpu_custom_call.1} parent=5 // pred_region
      %s227 = ssub.s32 %s14, 1
      // Predicated region
      $region13: #{tpu_custom_call.1} parent=11 // pred_check
        %p228 = pneg %p61
      $region14: #{tpu_custom_call.1} parent=11 // pred_check_branch
        %230 = sbr.rel (%p228) target = $region16
      $region15: #{tpu_custom_call.1} parent=11 // pred_region
        _
      $region16: #{tpu_custom_call.1} parent=11 // pred_fallthru
        _
      // Predicated region
      $region17: #{tpu_custom_call.1} parent=11 // pred_check
        %p231 = pneg %p82
      $region18: #{tpu_custom_call.1} parent=11 // pred_check_branch
        %233 = sbr.rel (%p231) target = $region20
      $region19: #{tpu_custom_call.1} parent=11 // pred_region
        _
      $region20: #{tpu_custom_call.1} parent=11 // pred_fallthru
        _
      // Predicated region
      $region21: #{tpu_custom_call.1} parent=11 // pred_check
        %p234 = pneg %p103
      $region22: #{tpu_custom_call.1} parent=11 // pred_check_branch
        %236 = sbr.rel (%p234) target = $region24
      $region23: #{tpu_custom_call.1} parent=11 // pred_region
        _
      $region24: #{tpu_custom_call.1} parent=11 // pred_fallthru
        _
      // Predicated region
      $region25: #{tpu_custom_call.1} parent=11 // pred_check
        %p237 = pneg %p124
      $region26: #{tpu_custom_call.1} parent=11 // pred_check_branch
        %239 = sbr.rel (%p237) target = $region28
      $region27: #{tpu_custom_call.1} parent=11 // pred_region
        _
      $region28: #{tpu_custom_call.1} parent=11 // pred_fallthru
        _
      // Predicated region
      $region29: #{tpu_custom_call.1} parent=11 // pred_check
        %p240 = pneg %p145
      $region30: #{tpu_custom_call.1} parent=11 // pred_check_branch
        %242 = sbr.rel (%p240) target = $region32
      $region31: #{tpu_custom_call.1} parent=11 // pred_region
        _
      $region32: #{tpu_custom_call.1} parent=11 // pred_fallthru
        _
      // Predicated region
      $region33: #{tpu_custom_call.1} parent=11 // pred_check
        %p243 = pneg %p166
      $region34: #{tpu_custom_call.1} parent=11 // pred_check_branch
        %245 = sbr.rel (%p243) target = $region36
      $region35: #{tpu_custom_call.1} parent=11 // pred_region
        _
      $region36: #{tpu_custom_call.1} parent=11 // pred_fallthru
        _
      // Predicated region
      $region37: #{tpu_custom_call.1} parent=11 // pred_check
        %p246 = pneg %p187
      $region38: #{tpu_custom_call.1} parent=11 // pred_check_branch
        %248 = sbr.rel (%p246) target = $region40
      $region39: #{tpu_custom_call.1} parent=11 // pred_region
        _
      $region40: #{tpu_custom_call.1} parent=11 // pred_fallthru
        _
    $region12: #{tpu_custom_call.1} parent=5 // pred_fallthru
      _
    %p249 = scmp.lt.s32.totalorder %s14, 2
    // Predicated region
    $region41: #{tpu_custom_call.1} parent=5 // pred_check
      %p250 = pneg %p249
    $region42: #{tpu_custom_call.1} parent=5 // pred_check_branch
      %252 = sbr.rel (%p250) target = $region44
    $region43: #{tpu_custom_call.1} parent=5 // pred_region
      // Predicated region
      $region45: #{tpu_custom_call.1} parent=43 // pred_check
        %p253 = pneg %p34
      $region46: #{tpu_custom_call.1} parent=43 // pred_check_branch
        %255 = sbr.rel (%p253) target = $region48
      $region47: #{tpu_custom_call.1} parent=43 // pred_region
        %p256 = scmp.lt.s32.totalorder %s14, 1
        %s257 = scalar_select %p256, %s14, 1
        %s258 = smul.addr %s257, 32
        %s259 = smul.addr %s258, 8
        %s260 = scalar_lea.vmem %s0, %s259
      $region48: #{tpu_custom_call.1} parent=43 // pred_fallthru
        _
    $region44: #{tpu_custom_call.1} parent=5 // pred_fallthru
      _
    %p261 = scmp.le.s32.totalorder 1, %s14
    %p262 = scmp.lt.s32.totalorder %s14, 3
    %p263 = pnand %p261, %p262
    %p264 = pneg %p263
    // Predicated region
    $region49: #{tpu_custom_call.1} parent=5 // pred_check
      _
    $region50: #{tpu_custom_call.1} parent=5 // pred_check_branch
      %266 = sbr.rel (%p263) target = $region52
    $region51: #{tpu_custom_call.1} parent=5 // pred_region
      %s267 = ssub.s32 %s14, 1
      %p268 = scmp.lt.s32.totalorder %s19, 1
      %s269 = scalar_select %p268, %s19, 1
      %s270 = smul.addr %s269, 32
      %s271 = smul.addr %s270, 8
      %s272 = scalar_lea.vmem %s0, %s271
      %p273 = pneg %p40
      %p274 = pneg %p37
      %p275 = pneg %p61
      %p276 = pneg %p58
      %p277 = pneg %p82
      %p278 = pneg %p79
      %p279 = pneg %p103
      %p280 = pneg %p100
      %p281 = pneg %p124
      %p282 = pneg %p121
      %p283 = pneg %p145
      %p284 = pneg %p142
      %p285 = pneg %p166
      %p286 = pneg %p163
      %p287 = pneg %p187
      %p288 = pneg %p184
      %p289 = pneg %p213
      %p290 = pneg %p210
      %s291 = smul.u32 32, %s19
      %p292 = scmp.lt.s32.totalorder %s291, 63
      %s293 = scalar_select %p292, %s291, 63
      %s294 = smul.addr %s293, 8
      %s295 = scalar_lea.vmem %s8, %s294
      %p296 = scmp.lt.s32.totalorder %s19, 1
      %s297 = scalar_select %p296, %s19, 1
      %s298 = smul.addr %s297, 32
      %s299 = smul.addr %s298, 8
      %s300 = scalar_lea.vmem %s0, %s299
      %s301 = smul.u32 32, %s19
      %p302 = scmp.lt.s32.totalorder %s301, 63
      %s303 = scalar_select %p302, %s301, 63
      %s304 = smul.addr %s303, 8
      %s305 = scalar_lea.vmem %s8, %s304
      %s306 = smul.u32 32, %s19
      %v307 = vld [vmem:[%s300] sm:$0xff]
      %v308 = vld [vmem:[%s300 + $0x8] sm:$0xff]
      %v309 = vld [vmem:[%s300 + $0x10] sm:$0xff]
      %v310 = vld [vmem:[%s300 + $0x18] sm:$0xff]
      %v311 = vld [vmem:[%s300 + $0x20] sm:$0xff]
      %v312 = vld [vmem:[%s300 + $0x28] sm:$0xff]
      %v313 = vld [vmem:[%s300 + $0x30] sm:$0xff]
      %v314 = vld [vmem:[%s300 + $0x38] sm:$0xff]
      %v315 = vld [vmem:[%s300 + $0x40] sm:$0xff]
      %v316 = vld [vmem:[%s300 + $0x48] sm:$0xff]
      %v317 = vld [vmem:[%s300 + $0x50] sm:$0xff]
      %v318 = vld [vmem:[%s300 + $0x58] sm:$0xff]
      %v319 = vld [vmem:[%s300 + $0x60] sm:$0xff]
      %v320 = vld [vmem:[%s300 + $0x68] sm:$0xff]
      %v321 = vld [vmem:[%s300 + $0x70] sm:$0xff]
      %v322 = vld [vmem:[%s300 + $0x78] sm:$0xff]
      %v323 = vld [vmem:[%s300 + $0x80] sm:$0xff]
      %v324 = vld [vmem:[%s300 + $0x88] sm:$0xff]
      %v325 = vld [vmem:[%s300 + $0x90] sm:$0xff]
      %v326 = vld [vmem:[%s300 + $0x98] sm:$0xff]
      %v327 = vld [vmem:[%s300 + $0xa0] sm:$0xff]
      %v328 = vld [vmem:[%s300 + $0xa8] sm:$0xff]
      %v329 = vld [vmem:[%s300 + $0xb0] sm:$0xff]
      %v330 = vld [vmem:[%s300 + $0xb8] sm:$0xff]
      %v331 = vld [vmem:[%s300 + $0xc0] sm:$0xff]
      %v332 = vld [vmem:[%s300 + $0xc8] sm:$0xff]
      %v333 = vld [vmem:[%s300 + $0xd0] sm:$0xff]
      %v334 = vld [vmem:[%s300 + $0xd8] sm:$0xff]
      %v335 = vld [vmem:[%s300 + $0xe0] sm:$0xff]
      %v336 = vld [vmem:[%s300 + $0xe8] sm:$0xff]
      %v337 = vld [vmem:[%s300 + $0xf0] sm:$0xff]
      %v338 = vld [vmem:[%s300 + $0xf8] sm:$0xff]
      %v339 = vld [vmem:[%s1] sm:$0x1]
      %v341 = vlaneseq
      %v342 = vshrl.u32 %v341, 7
      %v343 = vsub.s32 0, %v342
      %v344 = vrot.slane %v339, %v343
      %v346 = vmul.f32 %v307, %v344
      %v347 = vmul.f32 %v308, %v344
      %v348 = vmul.f32 %v309, %v344
      %v349 = vmul.f32 %v310, %v344
      %v350 = vmul.f32 %v311, %v344
      %v351 = vmul.f32 %v312, %v344
      %v352 = vmul.f32 %v313, %v344
      %v353 = vmul.f32 %v314, %v344
      %v354 = vmul.f32 %v315, %v344
      %v355 = vmul.f32 %v316, %v344
      %v356 = vmul.f32 %v317, %v344
      %v357 = vmul.f32 %v318, %v344
      %v358 = vmul.f32 %v319, %v344
      %v359 = vmul.f32 %v320, %v344
      %v360 = vmul.f32 %v321, %v344
      %v361 = vmul.f32 %v322, %v344
      %v362 = vmul.f32 %v323, %v344
      %v363 = vmul.f32 %v324, %v344
      %v364 = vmul.f32 %v325, %v344
      %v365 = vmul.f32 %v326, %v344
      %v366 = vmul.f32 %v327, %v344
      %v367 = vmul.f32 %v328, %v344
      %v368 = vmul.f32 %v329, %v344
      %v369 = vmul.f32 %v330, %v344
      %v370 = vmul.f32 %v331, %v344
      %v371 = vmul.f32 %v332, %v344
      %v372 = vmul.f32 %v333, %v344
      %v373 = vmul.f32 %v334, %v344
      %v374 = vmul.f32 %v335, %v344
      %v375 = vmul.f32 %v336, %v344
      %v376 = vmul.f32 %v337, %v344
      %v377 = vmul.f32 %v338, %v344
      %v378 = vld [vmem:[%s2] sm:$0x1]
      %v380 = vlaneseq
      %v381 = vshrl.u32 %v380, 7
      %v382 = vsub.s32 0, %v381
      %v383 = vrot.slane %v378, %v382
      %v385 = vadd.f32 %v346, %v383
      %v386 = vadd.f32 %v347, %v383
      %v387 = vadd.f32 %v348, %v383
      %v388 = vadd.f32 %v349, %v383
      %v389 = vadd.f32 %v350, %v383
      %v390 = vadd.f32 %v351, %v383
      %v391 = vadd.f32 %v352, %v383
      %v392 = vadd.f32 %v353, %v383
      %v393 = vadd.f32 %v354, %v383
      %v394 = vadd.f32 %v355, %v383
      %v395 = vadd.f32 %v356, %v383
      %v396 = vadd.f32 %v357, %v383
      %v397 = vadd.f32 %v358, %v383
      %v398 = vadd.f32 %v359, %v383
      %v399 = vadd.f32 %v360, %v383
      %v400 = vadd.f32 %v361, %v383
      %v401 = vadd.f32 %v362, %v383
      %v402 = vadd.f32 %v363, %v383
      %v403 = vadd.f32 %v364, %v383
      %v404 = vadd.f32 %v365, %v383
      %v405 = vadd.f32 %v366, %v383
      %v406 = vadd.f32 %v367, %v383
      %v407 = vadd.f32 %v368, %v383
      %v408 = vadd.f32 %v369, %v383
      %v409 = vadd.f32 %v370, %v383
      %v410 = vadd.f32 %v371, %v383
      %v411 = vadd.f32 %v372, %v383
      %v412 = vadd.f32 %v373, %v383
      %v413 = vadd.f32 %v374, %v383
      %v414 = vadd.f32 %v375, %v383
      %v415 = vadd.f32 %v376, %v383
      %v416 = vadd.f32 %v377, %v383
      %v417 = vmax.f32 %v385, 0.0
      %v418 = vmax.f32 %v386, 0.0
      %v419 = vmax.f32 %v387, 0.0
      %v420 = vmax.f32 %v388, 0.0
      %v421 = vmax.f32 %v389, 0.0
      %v422 = vmax.f32 %v390, 0.0
      %v423 = vmax.f32 %v391, 0.0
      %v424 = vmax.f32 %v392, 0.0
      %v425 = vmax.f32 %v393, 0.0
      %v426 = vmax.f32 %v394, 0.0
      %v427 = vmax.f32 %v395, 0.0
      %v428 = vmax.f32 %v396, 0.0
      %v429 = vmax.f32 %v397, 0.0
      %v430 = vmax.f32 %v398, 0.0
      %v431 = vmax.f32 %v399, 0.0
      %v432 = vmax.f32 %v400, 0.0
      %v433 = vmax.f32 %v401, 0.0
      %v434 = vmax.f32 %v402, 0.0
      %v435 = vmax.f32 %v403, 0.0
      %v436 = vmax.f32 %v404, 0.0
      %v437 = vmax.f32 %v405, 0.0
      %v438 = vmax.f32 %v406, 0.0
      %v439 = vmax.f32 %v407, 0.0
      %v440 = vmax.f32 %v408, 0.0
      %v441 = vmax.f32 %v409, 0.0
      %v442 = vmax.f32 %v410, 0.0
      %v443 = vmax.f32 %v411, 0.0
      %v444 = vmax.f32 %v412, 0.0
      %v445 = vmax.f32 %v413, 0.0
      %v446 = vmax.f32 %v414, 0.0
      %v447 = vmax.f32 %v415, 0.0
      %v448 = vmax.f32 %v416, 0.0
      %vm449 = vcmask 31744
      %450 = vst.msk [vmem:[#allocation2] sm:$0xff] %vm449, 0.0
      %451 = vst.msk [vmem:[#allocation2 + $0x8] sm:$0xff] %vm449, 0.0
      %452 = vst.msk [vmem:[#allocation2 + $0x10] sm:$0xff] %vm449, 0.0
      %s453 = scalar_lea.vmem [#allocation2], 408
      %454 = vst.msk [vmem:[%s453] sm:$0xff] %vm449, 0.0
      %455 = vst.msk [vmem:[%s453 + $0x8] sm:$0xff] %vm449, 0.0
      %456 = vst.msk [vmem:[%s453 + $0x10] sm:$0xff] %vm449, 0.0
      %vm457 = vcmask 24576
      %458 = vst.msk [vmem:[#allocation2] sm:$0x1] %vm457, 0.0
      %459 = vst.msk [vmem:[#allocation2 + $0x18] sm:$0x1] %vm457, 0.0
      %460 = vst.msk [vmem:[#allocation2 + $0x30] sm:$0x1] %vm457, 0.0
      %461 = vst.msk [vmem:[#allocation2 + $0x48] sm:$0x1] %vm457, 0.0
      %462 = vst.msk [vmem:[#allocation2 + $0x60] sm:$0x1] %vm457, 0.0
      %463 = vst.msk [vmem:[#allocation2 + $0x78] sm:$0x1] %vm457, 0.0
      %464 = vst.msk [vmem:[#allocation2 + $0x90] sm:$0x1] %vm457, 0.0
      %465 = vst.msk [vmem:[#allocation2 + $0xa8] sm:$0x1] %vm457, 0.0
      %466 = vst.msk [vmem:[#allocation2 + $0xc0] sm:$0x1] %vm457, 0.0
      %467 = vst.msk [vmem:[#allocation2 + $0xd8] sm:$0x1] %vm457, 0.0
      %468 = vst.msk [vmem:[#allocation2 + $0xf0] sm:$0x1] %vm457, 0.0
      %469 = vst.msk [vmem:[#allocation2 + $0x108] sm:$0x1] %vm457, 0.0
      %470 = vst.msk [vmem:[#allocation2 + $0x120] sm:$0x1] %vm457, 0.0
      %471 = vst.msk [vmem:[#allocation2 + $0x138] sm:$0x1] %vm457, 0.0
      %472 = vst.msk [vmem:[#allocation2 + $0x150] sm:$0x1] %vm457, 0.0
      %473 = vst.msk [vmem:[#allocation2 + $0x168] sm:$0x1] %vm457, 0.0
      %474 = vst.msk [vmem:[#allocation2 + $0x180] sm:$0x1] %vm457, 0.0
      %475 = vst.msk [vmem:[#allocation2 + $0x198] sm:$0x1] %vm457, 0.0
      %476 = vst.msk [vmem:[#allocation2 + $0x11] sm:$0x1] %vm457, 0.0
      %477 = vst.msk [vmem:[#allocation2 + $0x29] sm:$0x1] %vm457, 0.0
      %478 = vst.msk [vmem:[#allocation2 + $0x41] sm:$0x1] %vm457, 0.0
      %479 = vst.msk [vmem:[#allocation2 + $0x59] sm:$0x1] %vm457, 0.0
      %480 = vst.msk [vmem:[#allocation2 + $0x71] sm:$0x1] %vm457, 0.0
      %481 = vst.msk [vmem:[#allocation2 + $0x89] sm:$0x1] %vm457, 0.0
      %482 = vst.msk [vmem:[#allocation2 + $0xa1] sm:$0x1] %vm457, 0.0
      %483 = vst.msk [vmem:[#allocation2 + $0xb9] sm:$0x1] %vm457, 0.0
      %484 = vst.msk [vmem:[#allocation2 + $0xd1] sm:$0x1] %vm457, 0.0
      %485 = vst.msk [vmem:[#allocation2 + $0xe9] sm:$0x1] %vm457, 0.0
      %486 = vst.msk [vmem:[#allocation2 + $0x101] sm:$0x1] %vm457, 0.0
      %487 = vst.msk [vmem:[#allocation2 + $0x119] sm:$0x1] %vm457, 0.0
      %488 = vst.msk [vmem:[#allocation2 + $0x131] sm:$0x1] %vm457, 0.0
      %489 = vst.msk [vmem:[#allocation2 + $0x149] sm:$0x1] %vm457, 0.0
      %490 = vst.msk [vmem:[#allocation2 + $0x161] sm:$0x1] %vm457, 0.0
      %491 = vst.msk [vmem:[#allocation2 + $0x179] sm:$0x1] %vm457, 0.0
      %492 = vst.msk [vmem:[#allocation2 + $0x191] sm:$0x1] %vm457, 0.0
      %493 = vst.msk [vmem:[#allocation2 + $0x1a9] sm:$0x1] %vm457, 0.0
      %s494 = scalar_lea.vmem [#allocation2], 24
      %495 = vst.msk [vmem:[%s494 + $0x1] sm:$0xff] %vm449, %v417
      %496 = vst.msk [vmem:[%s494 + $0x9] sm:$0xff] %vm449, %v418
      %497 = vst.msk [vmem:[%s494 + $0x19] sm:$0xff] %vm449, %v419
      %498 = vst.msk [vmem:[%s494 + $0x21] sm:$0xff] %vm449, %v420
      %499 = vst.msk [vmem:[%s494 + $0x31] sm:$0xff] %vm449, %v421
      %500 = vst.msk [vmem:[%s494 + $0x39] sm:$0xff] %vm449, %v422
      %501 = vst.msk [vmem:[%s494 + $0x49] sm:$0xff] %vm449, %v423
      %502 = vst.msk [vmem:[%s494 + $0x51] sm:$0xff] %vm449, %v424
      %503 = vst.msk [vmem:[%s494 + $0x61] sm:$0xff] %vm449, %v425
      %504 = vst.msk [vmem:[%s494 + $0x69] sm:$0xff] %vm449, %v426
      %505 = vst.msk [vmem:[%s494 + $0x79] sm:$0xff] %vm449, %v427
      %506 = vst.msk [vmem:[%s494 + $0x81] sm:$0xff] %vm449, %v428
      %507 = vst.msk [vmem:[%s494 + $0x91] sm:$0xff] %vm449, %v429
      %508 = vst.msk [vmem:[%s494 + $0x99] sm:$0xff] %vm449, %v430
      %509 = vst.msk [vmem:[%s494 + $0xa9] sm:$0xff] %vm449, %v431
      %510 = vst.msk [vmem:[%s494 + $0xb1] sm:$0xff] %vm449, %v432
      %511 = vst.msk [vmem:[%s494 + $0xc1] sm:$0xff] %vm449, %v433
      %512 = vst.msk [vmem:[%s494 + $0xc9] sm:$0xff] %vm449, %v434
      %513 = vst.msk [vmem:[%s494 + $0xd9] sm:$0xff] %vm449, %v435
      %514 = vst.msk [vmem:[%s494 + $0xe1] sm:$0xff] %vm449, %v436
      %515 = vst.msk [vmem:[%s494 + $0xf1] sm:$0xff] %vm449, %v437
      %516 = vst.msk [vmem:[%s494 + $0xf9] sm:$0xff] %vm449, %v438
      %517 = vst.msk [vmem:[%s494 + $0x109] sm:$0xff] %vm449, %v439
      %518 = vst.msk [vmem:[%s494 + $0x111] sm:$0xff] %vm449, %v440
      %519 = vst.msk [vmem:[%s494 + $0x121] sm:$0xff] %vm449, %v441
      %520 = vst.msk [vmem:[%s494 + $0x129] sm:$0xff] %vm449, %v442
      %521 = vst.msk [vmem:[%s494 + $0x139] sm:$0xff] %vm449, %v443
      %522 = vst.msk [vmem:[%s494 + $0x141] sm:$0xff] %vm449, %v444
      %523 = vst.msk [vmem:[%s494 + $0x151] sm:$0xff] %vm449, %v445
      %524 = vst.msk [vmem:[%s494 + $0x159] sm:$0xff] %vm449, %v446
      %525 = vst.msk [vmem:[%s494 + $0x169] sm:$0xff] %vm449, %v447
      %526 = vst.msk [vmem:[%s494 + $0x171] sm:$0xff] %vm449, %v448
      %559 = vrot.lane.b32.xlu0 %v417, 72
      %v560 = vpop.permute.xlu0 %559
      %561 = vrot.lane.b32.xlu0 %v418, 72
      %v562 = vpop.permute.xlu0 %561
      %563 = vrot.lane.b32.xlu0 %v419, 72
      %v564 = vpop.permute.xlu0 %563
      %565 = vrot.lane.b32.xlu0 %v420, 72
      %v566 = vpop.permute.xlu0 %565
      %567 = vrot.lane.b32.xlu0 %v421, 72
      %v568 = vpop.permute.xlu0 %567
      %569 = vrot.lane.b32.xlu0 %v422, 72
      %v570 = vpop.permute.xlu0 %569
      %571 = vrot.lane.b32.xlu0 %v423, 72
      %v572 = vpop.permute.xlu0 %571
      %573 = vrot.lane.b32.xlu0 %v424, 72
      %v574 = vpop.permute.xlu0 %573
      %575 = vrot.lane.b32.xlu0 %v425, 72
      %v576 = vpop.permute.xlu0 %575
      %577 = vrot.lane.b32.xlu0 %v426, 72
      %v578 = vpop.permute.xlu0 %577
      %579 = vrot.lane.b32.xlu0 %v427, 72
      %v580 = vpop.permute.xlu0 %579
      %581 = vrot.lane.b32.xlu0 %v428, 72
      %v582 = vpop.permute.xlu0 %581
      %583 = vrot.lane.b32.xlu0 %v429, 72
      %v584 = vpop.permute.xlu0 %583
      %585 = vrot.lane.b32.xlu0 %v430, 72
      %v586 = vpop.permute.xlu0 %585
      %587 = vrot.lane.b32.xlu0 %v431, 72
      %v588 = vpop.permute.xlu0 %587
      %589 = vrot.lane.b32.xlu0 %v432, 72
      %v590 = vpop.permute.xlu0 %589
      %591 = vrot.lane.b32.xlu0 %v433, 72
      %v592 = vpop.permute.xlu0 %591
      %593 = vrot.lane.b32.xlu0 %v434, 72
      %v594 = vpop.permute.xlu0 %593
      %595 = vrot.lane.b32.xlu0 %v435, 72
      %v596 = vpop.permute.xlu0 %595
      %597 = vrot.lane.b32.xlu0 %v436, 72
      %v598 = vpop.permute.xlu0 %597
      %599 = vrot.lane.b32.xlu0 %v437, 72
      %v600 = vpop.permute.xlu0 %599
      %601 = vrot.lane.b32.xlu0 %v438, 72
      %v602 = vpop.permute.xlu0 %601
      %603 = vrot.lane.b32.xlu0 %v439, 72
      %v604 = vpop.permute.xlu0 %603
      %605 = vrot.lane.b32.xlu0 %v440, 72
      %v606 = vpop.permute.xlu0 %605
      %607 = vrot.lane.b32.xlu0 %v441, 72
      %v608 = vpop.permute.xlu0 %607
      %609 = vrot.lane.b32.xlu0 %v442, 72
      %v610 = vpop.permute.xlu0 %609
      %611 = vrot.lane.b32.xlu0 %v443, 72
      %v612 = vpop.permute.xlu0 %611
      %613 = vrot.lane.b32.xlu0 %v444, 72
      %v614 = vpop.permute.xlu0 %613
      %615 = vrot.lane.b32.xlu0 %v445, 72
      %v616 = vpop.permute.xlu0 %615
      %617 = vrot.lane.b32.xlu0 %v446, 72
      %v618 = vpop.permute.xlu0 %617
      %619 = vrot.lane.b32.xlu0 %v447, 72
      %v620 = vpop.permute.xlu0 %619
      %621 = vrot.lane.b32.xlu0 %v448, 72
      %v622 = vpop.permute.xlu0 %621
      %vm655 = vcmask 622144
      %656 = vst.msk [vmem:[#allocation4] sm:$0xff] %vm655, %v560
      %657 = vst.msk [vmem:[#allocation4 + $0x8] sm:$0xff] %vm655, %v562
      %658 = vst.msk [vmem:[#allocation4 + $0x10] sm:$0xff] %vm655, %v564
      %659 = vst.msk [vmem:[#allocation4 + $0x18] sm:$0xff] %vm655, %v566
      %660 = vst.msk [vmem:[#allocation4 + $0x20] sm:$0xff] %vm655, %v568
      %661 = vst.msk [vmem:[#allocation4 + $0x28] sm:$0xff] %vm655, %v570
      %662 = vst.msk [vmem:[#allocation4 + $0x30] sm:$0xff] %vm655, %v572
      %663 = vst.msk [vmem:[#allocation4 + $0x38] sm:$0xff] %vm655, %v574
      %664 = vst.msk [vmem:[#allocation4 + $0x40] sm:$0xff] %vm655, %v576
      %665 = vst.msk [vmem:[#allocation4 + $0x48] sm:$0xff] %vm655, %v578
      %666 = vst.msk [vmem:[#allocation4 + $0x50] sm:$0xff] %vm655, %v580
      %667 = vst.msk [vmem:[#allocation4 + $0x58] sm:$0xff] %vm655, %v582
      %668 = vst.msk [vmem:[#allocation4 + $0x60] sm:$0xff] %vm655, %v584
      %669 = vst.msk [vmem:[#allocation4 + $0x68] sm:$0xff] %vm655, %v586
      %670 = vst.msk [vmem:[#allocation4 + $0x70] sm:$0xff] %vm655, %v588
      %671 = vst.msk [vmem:[#allocation4 + $0x78] sm:$0xff] %vm655, %v590
      %672 = vst.msk [vmem:[#allocation4 + $0x80] sm:$0xff] %vm655, %v592
      %673 = vst.msk [vmem:[#allocation4 + $0x88] sm:$0xff] %vm655, %v594
      %674 = vst.msk [vmem:[#allocation4 + $0x90] sm:$0xff] %vm655, %v596
      %675 = vst.msk [vmem:[#allocation4 + $0x98] sm:$0xff] %vm655, %v598
      %676 = vst.msk [vmem:[#allocation4 + $0xa0] sm:$0xff] %vm655, %v600
      %677 = vst.msk [vmem:[#allocation4 + $0xa8] sm:$0xff] %vm655, %v602
      %678 = vst.msk [vmem:[#allocation4 + $0xb0] sm:$0xff] %vm655, %v604
      %679 = vst.msk [vmem:[#allocation4 + $0xb8] sm:$0xff] %vm655, %v606
      %680 = vst.msk [vmem:[#allocation4 + $0xc0] sm:$0xff] %vm655, %v608
      %681 = vst.msk [vmem:[#allocation4 + $0xc8] sm:$0xff] %vm655, %v610
      %682 = vst.msk [vmem:[#allocation4 + $0xd0] sm:$0xff] %vm655, %v612
      %683 = vst.msk [vmem:[#allocation4 + $0xd8] sm:$0xff] %vm655, %v614
      %684 = vst.msk [vmem:[#allocation4 + $0xe0] sm:$0xff] %vm655, %v616
      %685 = vst.msk [vmem:[#allocation4 + $0xe8] sm:$0xff] %vm655, %v618
      %686 = vst.msk [vmem:[#allocation4 + $0xf0] sm:$0xff] %vm655, %v620
      %687 = vst.msk [vmem:[#allocation4 + $0xf8] sm:$0xff] %vm655, %v622
      %v688 = vld [vmem:[#allocation2] sm:$0xff]
      %v689 = vld [vmem:[#allocation2 + $0x8] sm:$0xff]
      %v690 = vld [vmem:[#allocation2 + $0x18] sm:$0xff]
      %v691 = vld [vmem:[#allocation2 + $0x20] sm:$0xff]
      %v692 = vld [vmem:[#allocation2 + $0x30] sm:$0xff]
      %v693 = vld [vmem:[#allocation2 + $0x38] sm:$0xff]
      %v694 = vld [vmem:[#allocation2 + $0x48] sm:$0xff]
      %v695 = vld [vmem:[#allocation2 + $0x50] sm:$0xff]
      %v696 = vld [vmem:[#allocation2 + $0x60] sm:$0xff]
      %v697 = vld [vmem:[#allocation2 + $0x68] sm:$0xff]
      %v698 = vld [vmem:[#allocation2 + $0x78] sm:$0xff]
      %v699 = vld [vmem:[#allocation2 + $0x80] sm:$0xff]
      %v700 = vld [vmem:[#allocation2 + $0x90] sm:$0xff]
      %v701 = vld [vmem:[#allocation2 + $0x98] sm:$0xff]
      %v702 = vld [vmem:[#allocation2 + $0xa8] sm:$0xff]
      %v703 = vld [vmem:[#allocation2 + $0xb0] sm:$0xff]
      %v704 = vld [vmem:[#allocation2 + $0xc0] sm:$0xff]
      %v705 = vld [vmem:[#allocation2 + $0xc8] sm:$0xff]
      %v706 = vld [vmem:[#allocation2 + $0xd8] sm:$0xff]
      %v707 = vld [vmem:[#allocation2 + $0xe0] sm:$0xff]
      %v708 = vld [vmem:[#allocation2 + $0xf0] sm:$0xff]
      %v709 = vld [vmem:[#allocation2 + $0xf8] sm:$0xff]
      %v710 = vld [vmem:[#allocation2 + $0x108] sm:$0xff]
      %v711 = vld [vmem:[#allocation2 + $0x110] sm:$0xff]
      %v712 = vld [vmem:[#allocation2 + $0x120] sm:$0xff]
      %v713 = vld [vmem:[#allocation2 + $0x128] sm:$0xff]
      %v714 = vld [vmem:[#allocation2 + $0x138] sm:$0xff]
      %v715 = vld [vmem:[#allocation2 + $0x140] sm:$0xff]
      %v716 = vld [vmem:[#allocation2 + $0x150] sm:$0xff]
      %v717 = vld [vmem:[#allocation2 + $0x158] sm:$0xff]
      %v718 = vld [vmem:[#allocation2 + $0x168] sm:$0xff]
      %v719 = vld [vmem:[#allocation2 + $0x170] sm:$0xff]
      %720 = vst.msk [vmem:[#allocation4] sm:$0xff] %vm449, %v688
      %721 = vst.msk [vmem:[#allocation4 + $0x8] sm:$0xff] %vm449, %v689
      %722 = vst.msk [vmem:[#allocation4 + $0x10] sm:$0xff] %vm449, %v690
      %723 = vst.msk [vmem:[#allocation4 + $0x18] sm:$0xff] %vm449, %v691
      %724 = vst.msk [vmem:[#allocation4 + $0x20] sm:$0xff] %vm449, %v692
      %725 = vst.msk [vmem:[#allocation4 + $0x28] sm:$0xff] %vm449, %v693
      %726 = vst.msk [vmem:[#allocation4 + $0x30] sm:$0xff] %vm449, %v694
      %727 = vst.msk [vmem:[#allocation4 + $0x38] sm:$0xff] %vm449, %v695
      %728 = vst.msk [vmem:[#allocation4 + $0x40] sm:$0xff] %vm449, %v696
      %729 = vst.msk [vmem:[#allocation4 + $0x48] sm:$0xff] %vm449, %v697
      %730 = vst.msk [vmem:[#allocation4 + $0x50] sm:$0xff] %vm449, %v698
      %731 = vst.msk [vmem:[#allocation4 + $0x58] sm:$0xff] %vm449, %v699
      %732 = vst.msk [vmem:[#allocation4 + $0x60] sm:$0xff] %vm449, %v700
      %733 = vst.msk [vmem:[#allocation4 + $0x68] sm:$0xff] %vm449, %v701
      %734 = vst.msk [vmem:[#allocation4 + $0x70] sm:$0xff] %vm449, %v702
      %735 = vst.msk [vmem:[#allocation4 + $0x78] sm:$0xff] %vm449, %v703
      %736 = vst.msk [vmem:[#allocation4 + $0x80] sm:$0xff] %vm449, %v704
      %737 = vst.msk [vmem:[#allocation4 + $0x88] sm:$0xff] %vm449, %v705
      %738 = vst.msk [vmem:[#allocation4 + $0x90] sm:$0xff] %vm449, %v706
      %739 = vst.msk [vmem:[#allocation4 + $0x98] sm:$0xff] %vm449, %v707
      %740 = vst.msk [vmem:[#allocation4 + $0xa0] sm:$0xff] %vm449, %v708
      %741 = vst.msk [vmem:[#allocation4 + $0xa8] sm:$0xff] %vm449, %v709
      %742 = vst.msk [vmem:[#allocation4 + $0xb0] sm:$0xff] %vm449, %v710
      %743 = vst.msk [vmem:[#allocation4 + $0xb8] sm:$0xff] %vm449, %v711
      %744 = vst.msk [vmem:[#allocation4 + $0xc0] sm:$0xff] %vm449, %v712
      %745 = vst.msk [vmem:[#allocation4 + $0xc8] sm:$0xff] %vm449, %v713
      %746 = vst.msk [vmem:[#allocation4 + $0xd0] sm:$0xff] %vm449, %v714
      %747 = vst.msk [vmem:[#allocation4 + $0xd8] sm:$0xff] %vm449, %v715
      %748 = vst.msk [vmem:[#allocation4 + $0xe0] sm:$0xff] %vm449, %v716
      %749 = vst.msk [vmem:[#allocation4 + $0xe8] sm:$0xff] %vm449, %v717
      %750 = vst.msk [vmem:[#allocation4 + $0xf0] sm:$0xff] %vm449, %v718
      %751 = vst.msk [vmem:[#allocation4 + $0xf8] sm:$0xff] %vm449, %v719
      %v752 = vld [vmem:[#allocation2 + $0x1] sm:$0xff]
      %v753 = vld [vmem:[#allocation2 + $0x9] sm:$0xff]
      %v754 = vld [vmem:[#allocation2 + $0x19] sm:$0xff]
      %v755 = vld [vmem:[#allocation2 + $0x21] sm:$0xff]
      %v756 = vld [vmem:[#allocation2 + $0x31] sm:$0xff]
      %v757 = vld [vmem:[#allocation2 + $0x39] sm:$0xff]
      %v758 = vld [vmem:[#allocation2 + $0x49] sm:$0xff]
      %v759 = vld [vmem:[#allocation2 + $0x51] sm:$0xff]
      %v760 = vld [vmem:[#allocation2 + $0x61] sm:$0xff]
      %v761 = vld [vmem:[#allocation2 + $0x69] sm:$0xff]
      %v762 = vld [vmem:[#allocation2 + $0x79] sm:$0xff]
      %v763 = vld [vmem:[#allocation2 + $0x81] sm:$0xff]
      %v764 = vld [vmem:[#allocation2 + $0x91] sm:$0xff]
      %v765 = vld [vmem:[#allocation2 + $0x99] sm:$0xff]
      %v766 = vld [vmem:[#allocation2 + $0xa9] sm:$0xff]
      %v767 = vld [vmem:[#allocation2 + $0xb1] sm:$0xff]
      %v768 = vld [vmem:[#allocation2 + $0xc1] sm:$0xff]
      %v769 = vld [vmem:[#allocation2 + $0xc9] sm:$0xff]
      %v770 = vld [vmem:[#allocation2 + $0xd9] sm:$0xff]
      %v771 = vld [vmem:[#allocation2 + $0xe1] sm:$0xff]
      %v772 = vld [vmem:[#allocation2 + $0xf1] sm:$0xff]
      %v773 = vld [vmem:[#allocation2 + $0xf9] sm:$0xff]
      %v774 = vld [vmem:[#allocation2 + $0x109] sm:$0xff]
      %v775 = vld [vmem:[#allocation2 + $0x111] sm:$0xff]
      %v776 = vld [vmem:[#allocation2 + $0x121] sm:$0xff]
      %v777 = vld [vmem:[#allocation2 + $0x129] sm:$0xff]
      %v778 = vld [vmem:[#allocation2 + $0x139] sm:$0xff]
      %v779 = vld [vmem:[#allocation2 + $0x141] sm:$0xff]
      %v780 = vld [vmem:[#allocation2 + $0x151] sm:$0xff]
      %v781 = vld [vmem:[#allocation2 + $0x159] sm:$0xff]
      %v782 = vld [vmem:[#allocation2 + $0x169] sm:$0xff]
      %v783 = vld [vmem:[#allocation2 + $0x171] sm:$0xff]
      %816 = vrot.lane.b32.xlu0 %v752, 4
      %v817 = vpop.permute.xlu0 %816
      %818 = vrot.lane.b32.xlu0 %v753, 4
      %v819 = vpop.permute.xlu0 %818
      %820 = vrot.lane.b32.xlu0 %v754, 4
      %v821 = vpop.permute.xlu0 %820
      %822 = vrot.lane.b32.xlu0 %v755, 4
      %v823 = vpop.permute.xlu0 %822
      %824 = vrot.lane.b32.xlu0 %v756, 4
      %v825 = vpop.permute.xlu0 %824
      %826 = vrot.lane.b32.xlu0 %v757, 4
      %v827 = vpop.permute.xlu0 %826
      %828 = vrot.lane.b32.xlu0 %v758, 4
      %v829 = vpop.permute.xlu0 %828
      %830 = vrot.lane.b32.xlu0 %v759, 4
      %v831 = vpop.permute.xlu0 %830
      %832 = vrot.lane.b32.xlu0 %v760, 4
      %v833 = vpop.permute.xlu0 %832
      %834 = vrot.lane.b32.xlu0 %v761, 4
      %v835 = vpop.permute.xlu0 %834
      %836 = vrot.lane.b32.xlu0 %v762, 4
      %v837 = vpop.permute.xlu0 %836
      %838 = vrot.lane.b32.xlu0 %v763, 4
      %v839 = vpop.permute.xlu0 %838
      %840 = vrot.lane.b32.xlu0 %v764, 4
      %v841 = vpop.permute.xlu0 %840
      %842 = vrot.lane.b32.xlu0 %v765, 4
      %v843 = vpop.permute.xlu0 %842
      %844 = vrot.lane.b32.xlu0 %v766, 4
      %v845 = vpop.permute.xlu0 %844
      %846 = vrot.lane.b32.xlu0 %v767, 4
      %v847 = vpop.permute.xlu0 %846
      %848 = vrot.lane.b32.xlu0 %v768, 4
      %v849 = vpop.permute.xlu0 %848
      %850 = vrot.lane.b32.xlu0 %v769, 4
      %v851 = vpop.permute.xlu0 %850
      %852 = vrot.lane.b32.xlu0 %v770, 4
      %v853 = vpop.permute.xlu0 %852
      %854 = vrot.lane.b32.xlu0 %v771, 4
      %v855 = vpop.permute.xlu0 %854
      %856 = vrot.lane.b32.xlu0 %v772, 4
      %v857 = vpop.permute.xlu0 %856
      %858 = vrot.lane.b32.xlu0 %v773, 4
      %v859 = vpop.permute.xlu0 %858
      %860 = vrot.lane.b32.xlu0 %v774, 4
      %v861 = vpop.permute.xlu0 %860
      %862 = vrot.lane.b32.xlu0 %v775, 4
      %v863 = vpop.permute.xlu0 %862
      %864 = vrot.lane.b32.xlu0 %v776, 4
      %v865 = vpop.permute.xlu0 %864
      %866 = vrot.lane.b32.xlu0 %v777, 4
      %v867 = vpop.permute.xlu0 %866
      %868 = vrot.lane.b32.xlu0 %v778, 4
      %v869 = vpop.permute.xlu0 %868
      %870 = vrot.lane.b32.xlu0 %v779, 4
      %v871 = vpop.permute.xlu0 %870
      %872 = vrot.lane.b32.xlu0 %v780, 4
      %v873 = vpop.permute.xlu0 %872
      %874 = vrot.lane.b32.xlu0 %v781, 4
      %v875 = vpop.permute.xlu0 %874
      %876 = vrot.lane.b32.xlu0 %v782, 4
      %v877 = vpop.permute.xlu0 %876
      %878 = vrot.lane.b32.xlu0 %v783, 4
      %v879 = vpop.permute.xlu0 %878
      %vm912 = vcmask 64544
      %913 = vst.msk [vmem:[#allocation4] sm:$0xff] %vm912, %v817
      %914 = vst.msk [vmem:[#allocation4 + $0x8] sm:$0xff] %vm912, %v819
      %915 = vst.msk [vmem:[#allocation4 + $0x10] sm:$0xff] %vm912, %v821
      %916 = vst.msk [vmem:[#allocation4 + $0x18] sm:$0xff] %vm912, %v823
      %917 = vst.msk [vmem:[#allocation4 + $0x20] sm:$0xff] %vm912, %v825
      %918 = vst.msk [vmem:[#allocation4 + $0x28] sm:$0xff] %vm912, %v827
      %919 = vst.msk [vmem:[#allocation4 + $0x30] sm:$0xff] %vm912, %v829
      %920 = vst.msk [vmem:[#allocation4 + $0x38] sm:$0xff] %vm912, %v831
      %921 = vst.msk [vmem:[#allocation4 + $0x40] sm:$0xff] %vm912, %v833
      %922 = vst.msk [vmem:[#allocation4 + $0x48] sm:$0xff] %vm912, %v835
      %923 = vst.msk [vmem:[#allocation4 + $0x50] sm:$0xff] %vm912, %v837
      %924 = vst.msk [vmem:[#allocation4 + $0x58] sm:$0xff] %vm912, %v839
      %925 = vst.msk [vmem:[#allocation4 + $0x60] sm:$0xff] %vm912, %v841
      %926 = vst.msk [vmem:[#allocation4 + $0x68] sm:$0xff] %vm912, %v843
      %927 = vst.msk [vmem:[#allocation4 + $0x70] sm:$0xff] %vm912, %v845
      %928 = vst.msk [vmem:[#allocation4 + $0x78] sm:$0xff] %vm912, %v847
      %929 = vst.msk [vmem:[#allocation4 + $0x80] sm:$0xff] %vm912, %v849
      %930 = vst.msk [vmem:[#allocation4 + $0x88] sm:$0xff] %vm912, %v851
      %931 = vst.msk [vmem:[#allocation4 + $0x90] sm:$0xff] %vm912, %v853
      %932 = vst.msk [vmem:[#allocation4 + $0x98] sm:$0xff] %vm912, %v855
      %933 = vst.msk [vmem:[#allocation4 + $0xa0] sm:$0xff] %vm912, %v857
      %934 = vst.msk [vmem:[#allocation4 + $0xa8] sm:$0xff] %vm912, %v859
      %935 = vst.msk [vmem:[#allocation4 + $0xb0] sm:$0xff] %vm912, %v861
      %936 = vst.msk [vmem:[#allocation4 + $0xb8] sm:$0xff] %vm912, %v863
      %937 = vst.msk [vmem:[#allocation4 + $0xc0] sm:$0xff] %vm912, %v865
      %938 = vst.msk [vmem:[#allocation4 + $0xc8] sm:$0xff] %vm912, %v867
      %939 = vst.msk [vmem:[#allocation4 + $0xd0] sm:$0xff] %vm912, %v869
      %940 = vst.msk [vmem:[#allocation4 + $0xd8] sm:$0xff] %vm912, %v871
      %941 = vst.msk [vmem:[#allocation4 + $0xe0] sm:$0xff] %vm912, %v873
      %942 = vst.msk [vmem:[#allocation4 + $0xe8] sm:$0xff] %vm912, %v875
      %943 = vst.msk [vmem:[#allocation4 + $0xf0] sm:$0xff] %vm912, %v877
      %944 = vst.msk [vmem:[#allocation4 + $0xf8] sm:$0xff] %vm912, %v879
      %v945 = vld [vmem:[#allocation2 + $0x2] sm:$0xff]
      %v946 = vld [vmem:[#allocation2 + $0xa] sm:$0xff]
      %v947 = vld [vmem:[#allocation2 + $0x1a] sm:$0xff]
      %v948 = vld [vmem:[#allocation2 + $0x22] sm:$0xff]
      %v949 = vld [vmem:[#allocation2 + $0x32] sm:$0xff]
      %v950 = vld [vmem:[#allocation2 + $0x3a] sm:$0xff]
      %v951 = vld [vmem:[#allocation2 + $0x4a] sm:$0xff]
      %v952 = vld [vmem:[#allocation2 + $0x52] sm:$0xff]
      %v953 = vld [vmem:[#allocation2 + $0x62] sm:$0xff]
      %v954 = vld [vmem:[#allocation2 + $0x6a] sm:$0xff]
      %v955 = vld [vmem:[#allocation2 + $0x7a] sm:$0xff]
      %v956 = vld [vmem:[#allocation2 + $0x82] sm:$0xff]
      %v957 = vld [vmem:[#allocation2 + $0x92] sm:$0xff]
      %v958 = vld [vmem:[#allocation2 + $0x9a] sm:$0xff]
      %v959 = vld [vmem:[#allocation2 + $0xaa] sm:$0xff]
      %v960 = vld [vmem:[#allocation2 + $0xb2] sm:$0xff]
      %v961 = vld [vmem:[#allocation2 + $0xc2] sm:$0xff]
      %v962 = vld [vmem:[#allocation2 + $0xca] sm:$0xff]
      %v963 = vld [vmem:[#allocation2 + $0xda] sm:$0xff]
      %v964 = vld [vmem:[#allocation2 + $0xe2] sm:$0xff]
      %v965 = vld [vmem:[#allocation2 + $0xf2] sm:$0xff]
      %v966 = vld [vmem:[#allocation2 + $0xfa] sm:$0xff]
      %v967 = vld [vmem:[#allocation2 + $0x10a] sm:$0xff]
      %v968 = vld [vmem:[#allocation2 + $0x112] sm:$0xff]
      %v969 = vld [vmem:[#allocation2 + $0x122] sm:$0xff]
      %v970 = vld [vmem:[#allocation2 + $0x12a] sm:$0xff]
      %v971 = vld [vmem:[#allocation2 + $0x13a] sm:$0xff]
      %v972 = vld [vmem:[#allocation2 + $0x142] sm:$0xff]
      %v973 = vld [vmem:[#allocation2 + $0x152] sm:$0xff]
      %v974 = vld [vmem:[#allocation2 + $0x15a] sm:$0xff]
      %v975 = vld [vmem:[#allocation2 + $0x16a] sm:$0xff]
      %v976 = vld [vmem:[#allocation2 + $0x172] sm:$0xff]
      %1009 = vrot.lane.b32.xlu0 %v945, 8
      %v1010 = vpop.permute.xlu0 %1009
      %1011 = vrot.lane.b32.xlu0 %v946, 8
      %v1012 = vpop.permute.xlu0 %1011
      %1013 = vrot.lane.b32.xlu0 %v947, 8
      %v1014 = vpop.permute.xlu0 %1013
      %1015 = vrot.lane.b32.xlu0 %v948, 8
      %v1016 = vpop.permute.xlu0 %1015
      %1017 = vrot.lane.b32.xlu0 %v949, 8
      %v1018 = vpop.permute.xlu0 %1017
      %1019 = vrot.lane.b32.xlu0 %v950, 8
      %v1020 = vpop.permute.xlu0 %1019
      %1021 = vrot.lane.b32.xlu0 %v951, 8
      %v1022 = vpop.permute.xlu0 %1021
      %1023 = vrot.lane.b32.xlu0 %v952, 8
      %v1024 = vpop.permute.xlu0 %1023
      %1025 = vrot.lane.b32.xlu0 %v953, 8
      %v1026 = vpop.permute.xlu0 %1025
      %1027 = vrot.lane.b32.xlu0 %v954, 8
      %v1028 = vpop.permute.xlu0 %1027
      %1029 = vrot.lane.b32.xlu0 %v955, 8
      %v1030 = vpop.permute.xlu0 %1029
      %1031 = vrot.lane.b32.xlu0 %v956, 8
      %v1032 = vpop.permute.xlu0 %1031
      %1033 = vrot.lane.b32.xlu0 %v957, 8
      %v1034 = vpop.permute.xlu0 %1033
      %1035 = vrot.lane.b32.xlu0 %v958, 8
      %v1036 = vpop.permute.xlu0 %1035
      %1037 = vrot.lane.b32.xlu0 %v959, 8
      %v1038 = vpop.permute.xlu0 %1037
      %1039 = vrot.lane.b32.xlu0 %v960, 8
      %v1040 = vpop.permute.xlu0 %1039
      %1041 = vrot.lane.b32.xlu0 %v961, 8
      %v1042 = vpop.permute.xlu0 %1041
      %1043 = vrot.lane.b32.xlu0 %v962, 8
      %v1044 = vpop.permute.xlu0 %1043
      %1045 = vrot.lane.b32.xlu0 %v963, 8
      %v1046 = vpop.permute.xlu0 %1045
      %1047 = vrot.lane.b32.xlu0 %v964, 8
      %v1048 = vpop.permute.xlu0 %1047
      %1049 = vrot.lane.b32.xlu0 %v965, 8
      %v1050 = vpop.permute.xlu0 %1049
      %1051 = vrot.lane.b32.xlu0 %v966, 8
      %v1052 = vpop.permute.xlu0 %1051
      %1053 = vrot.lane.b32.xlu0 %v967, 8
      %v1054 = vpop.permute.xlu0 %1053
      %1055 = vrot.lane.b32.xlu0 %v968, 8
      %v1056 = vpop.permute.xlu0 %1055
      %1057 = vrot.lane.b32.xlu0 %v969, 8
      %v1058 = vpop.permute.xlu0 %1057
      %1059 = vrot.lane.b32.xlu0 %v970, 8
      %v1060 = vpop.permute.xlu0 %1059
      %1061 = vrot.lane.b32.xlu0 %v971, 8
      %v1062 = vpop.permute.xlu0 %1061
      %1063 = vrot.lane.b32.xlu0 %v972, 8
      %v1064 = vpop.permute.xlu0 %1063
      %1065 = vrot.lane.b32.xlu0 %v973, 8
      %v1066 = vpop.permute.xlu0 %1065
      %1067 = vrot.lane.b32.xlu0 %v974, 8
      %v1068 = vpop.permute.xlu0 %1067
      %1069 = vrot.lane.b32.xlu0 %v975, 8
      %v1070 = vpop.permute.xlu0 %1069
      %1071 = vrot.lane.b32.xlu0 %v976, 8
      %v1072 = vpop.permute.xlu0 %1071
      %vm1105 = vcmask 97344
      %1106 = vst.msk [vmem:[#allocation4] sm:$0xff] %vm1105, %v1010
      %1107 = vst.msk [vmem:[#allocation4 + $0x8] sm:$0xff] %vm1105, %v1012
      %1108 = vst.msk [vmem:[#allocation4 + $0x10] sm:$0xff] %vm1105, %v1014
      %1109 = vst.msk [vmem:[#allocation4 + $0x18] sm:$0xff] %vm1105, %v1016
      %1110 = vst.msk [vmem:[#allocation4 + $0x20] sm:$0xff] %vm1105, %v1018
      %1111 = vst.msk [vmem:[#allocation4 + $0x28] sm:$0xff] %vm1105, %v1020
      %1112 = vst.msk [vmem:[#allocation4 + $0x30] sm:$0xff] %vm1105, %v1022
      %1113 = vst.msk [vmem:[#allocation4 + $0x38] sm:$0xff] %vm1105, %v1024
      %1114 = vst.msk [vmem:[#allocation4 + $0x40] sm:$0xff] %vm1105, %v1026
      %1115 = vst.msk [vmem:[#allocation4 + $0x48] sm:$0xff] %vm1105, %v1028
      %1116 = vst.msk [vmem:[#allocation4 + $0x50] sm:$0xff] %vm1105, %v1030
      %1117 = vst.msk [vmem:[#allocation4 + $0x58] sm:$0xff] %vm1105, %v1032
      %1118 = vst.msk [vmem:[#allocation4 + $0x60] sm:$0xff] %vm1105, %v1034
      %1119 = vst.msk [vmem:[#allocation4 + $0x68] sm:$0xff] %vm1105, %v1036
      %1120 = vst.msk [vmem:[#allocation4 + $0x70] sm:$0xff] %vm1105, %v1038
      %1121 = vst.msk [vmem:[#allocation4 + $0x78] sm:$0xff] %vm1105, %v1040
      %1122 = vst.msk [vmem:[#allocation4 + $0x80] sm:$0xff] %vm1105, %v1042
      %1123 = vst.msk [vmem:[#allocation4 + $0x88] sm:$0xff] %vm1105, %v1044
      %1124 = vst.msk [vmem:[#allocation4 + $0x90] sm:$0xff] %vm1105, %v1046
      %1125 = vst.msk [vmem:[#allocation4 + $0x98] sm:$0xff] %vm1105, %v1048
      %1126 = vst.msk [vmem:[#allocation4 + $0xa0] sm:$0xff] %vm1105, %v1050
      %1127 = vst.msk [vmem:[#allocation4 + $0xa8] sm:$0xff] %vm1105, %v1052
      %1128 = vst.msk [vmem:[#allocation4 + $0xb0] sm:$0xff] %vm1105, %v1054
      %1129 = vst.msk [vmem:[#allocation4 + $0xb8] sm:$0xff] %vm1105, %v1056
      %1130 = vst.msk [vmem:[#allocation4 + $0xc0] sm:$0xff] %vm1105, %v1058
      %1131 = vst.msk [vmem:[#allocation4 + $0xc8] sm:$0xff] %vm1105, %v1060
      %1132 = vst.msk [vmem:[#allocation4 + $0xd0] sm:$0xff] %vm1105, %v1062
      %1133 = vst.msk [vmem:[#allocation4 + $0xd8] sm:$0xff] %vm1105, %v1064
      %1134 = vst.msk [vmem:[#allocation4 + $0xe0] sm:$0xff] %vm1105, %v1066
      %1135 = vst.msk [vmem:[#allocation4 + $0xe8] sm:$0xff] %vm1105, %v1068
      %1136 = vst.msk [vmem:[#allocation4 + $0xf0] sm:$0xff] %vm1105, %v1070
      %1137 = vst.msk [vmem:[#allocation4 + $0xf8] sm:$0xff] %vm1105, %v1072
      %v1138 = vld [vmem:[%s494] sm:$0xff]
      %v1139 = vld [vmem:[%s494 + $0x8] sm:$0xff]
      %v1140 = vld [vmem:[%s494 + $0x18] sm:$0xff]
      %v1141 = vld [vmem:[%s494 + $0x20] sm:$0xff]
      %v1142 = vld [vmem:[%s494 + $0x30] sm:$0xff]
      %v1143 = vld [vmem:[%s494 + $0x38] sm:$0xff]
      %v1144 = vld [vmem:[%s494 + $0x48] sm:$0xff]
      %v1145 = vld [vmem:[%s494 + $0x50] sm:$0xff]
      %v1146 = vld [vmem:[%s494 + $0x60] sm:$0xff]
      %v1147 = vld [vmem:[%s494 + $0x68] sm:$0xff]
      %v1148 = vld [vmem:[%s494 + $0x78] sm:$0xff]
      %v1149 = vld [vmem:[%s494 + $0x80] sm:$0xff]
      %v1150 = vld [vmem:[%s494 + $0x90] sm:$0xff]
      %v1151 = vld [vmem:[%s494 + $0x98] sm:$0xff]
      %v1152 = vld [vmem:[%s494 + $0xa8] sm:$0xff]
      %v1153 = vld [vmem:[%s494 + $0xb0] sm:$0xff]
      %v1154 = vld [vmem:[%s494 + $0xc0] sm:$0xff]
      %v1155 = vld [vmem:[%s494 + $0xc8] sm:$0xff]
      %v1156 = vld [vmem:[%s494 + $0xd8] sm:$0xff]
      %v1157 = vld [vmem:[%s494 + $0xe0] sm:$0xff]
      %v1158 = vld [vmem:[%s494 + $0xf0] sm:$0xff]
      %v1159 = vld [vmem:[%s494 + $0xf8] sm:$0xff]
      %v1160 = vld [vmem:[%s494 + $0x108] sm:$0xff]
      %v1161 = vld [vmem:[%s494 + $0x110] sm:$0xff]
      %v1162 = vld [vmem:[%s494 + $0x120] sm:$0xff]
      %v1163 = vld [vmem:[%s494 + $0x128] sm:$0xff]
      %v1164 = vld [vmem:[%s494 + $0x138] sm:$0xff]
      %v1165 = vld [vmem:[%s494 + $0x140] sm:$0xff]
      %v1166 = vld [vmem:[%s494 + $0x150] sm:$0xff]
      %v1167 = vld [vmem:[%s494 + $0x158] sm:$0xff]
      %v1168 = vld [vmem:[%s494 + $0x168] sm:$0xff]
      %v1169 = vld [vmem:[%s494 + $0x170] sm:$0xff]
      %1202 = vrot.lane.b32.xlu0 %v1138, 12
      %v1203 = vpop.permute.xlu0 %1202
      %1204 = vrot.lane.b32.xlu0 %v1139, 12
      %v1205 = vpop.permute.xlu0 %1204
      %1206 = vrot.lane.b32.xlu0 %v1140, 12
      %v1207 = vpop.permute.xlu0 %1206
      %1208 = vrot.lane.b32.xlu0 %v1141, 12
      %v1209 = vpop.permute.xlu0 %1208
      %1210 = vrot.lane.b32.xlu0 %v1142, 12
      %v1211 = vpop.permute.xlu0 %1210
      %1212 = vrot.lane.b32.xlu0 %v1143, 12
      %v1213 = vpop.permute.xlu0 %1212
      %1214 = vrot.lane.b32.xlu0 %v1144, 12
      %v1215 = vpop.permute.xlu0 %1214
      %1216 = vrot.lane.b32.xlu0 %v1145, 12
      %v1217 = vpop.permute.xlu0 %1216
      %1218 = vrot.lane.b32.xlu0 %v1146, 12
      %v1219 = vpop.permute.xlu0 %1218
      %1220 = vrot.lane.b32.xlu0 %v1147, 12
      %v1221 = vpop.permute.xlu0 %1220
      %1222 = vrot.lane.b32.xlu0 %v1148, 12
      %v1223 = vpop.permute.xlu0 %1222
      %1224 = vrot.lane.b32.xlu0 %v1149, 12
      %v1225 = vpop.permute.xlu0 %1224
      %1226 = vrot.lane.b32.xlu0 %v1150, 12
      %v1227 = vpop.permute.xlu0 %1226
      %1228 = vrot.lane.b32.xlu0 %v1151, 12
      %v1229 = vpop.permute.xlu0 %1228
      %1230 = vrot.lane.b32.xlu0 %v1152, 12
      %v1231 = vpop.permute.xlu0 %1230
      %1232 = vrot.lane.b32.xlu0 %v1153, 12
      %v1233 = vpop.permute.xlu0 %1232
      %1234 = vrot.lane.b32.xlu0 %v1154, 12
      %v1235 = vpop.permute.xlu0 %1234
      %1236 = vrot.lane.b32.xlu0 %v1155, 12
      %v1237 = vpop.permute.xlu0 %1236
      %1238 = vrot.lane.b32.xlu0 %v1156, 12
      %v1239 = vpop.permute.xlu0 %1238
      %1240 = vrot.lane.b32.xlu0 %v1157, 12
      %v1241 = vpop.permute.xlu0 %1240
      %1242 = vrot.lane.b32.xlu0 %v1158, 12
      %v1243 = vpop.permute.xlu0 %1242
      %1244 = vrot.lane.b32.xlu0 %v1159, 12
      %v1245 = vpop.permute.xlu0 %1244
      %1246 = vrot.lane.b32.xlu0 %v1160, 12
      %v1247 = vpop.permute.xlu0 %1246
      %1248 = vrot.lane.b32.xlu0 %v1161, 12
      %v1249 = vpop.permute.xlu0 %1248
      %1250 = vrot.lane.b32.xlu0 %v1162, 12
      %v1251 = vpop.permute.xlu0 %1250
      %1252 = vrot.lane.b32.xlu0 %v1163, 12
      %v1253 = vpop.permute.xlu0 %1252
      %1254 = vrot.lane.b32.xlu0 %v1164, 12
      %v1255 = vpop.permute.xlu0 %1254
      %1256 = vrot.lane.b32.xlu0 %v1165, 12
      %v1257 = vpop.permute.xlu0 %1256
      %1258 = vrot.lane.b32.xlu0 %v1166, 12
      %v1259 = vpop.permute.xlu0 %1258
      %1260 = vrot.lane.b32.xlu0 %v1167, 12
      %v1261 = vpop.permute.xlu0 %1260
      %1262 = vrot.lane.b32.xlu0 %v1168, 12
      %v1263 = vpop.permute.xlu0 %1262
      %1264 = vrot.lane.b32.xlu0 %v1169, 12
      %v1265 = vpop.permute.xlu0 %1264
      %vm1298 = vcmask 130144
      %1299 = vst.msk [vmem:[#allocation4] sm:$0xff] %vm1298, %v1203
      %1300 = vst.msk [vmem:[#allocation4 + $0x8] sm:$0xff] %vm1298, %v1205
      %1301 = vst.msk [vmem:[#allocation4 + $0x10] sm:$0xff] %vm1298, %v1207
      %1302 = vst.msk [vmem:[#allocation4 + $0x18] sm:$0xff] %vm1298, %v1209
      %1303 = vst.msk [vmem:[#allocation4 + $0x20] sm:$0xff] %vm1298, %v1211
      %1304 = vst.msk [vmem:[#allocation4 + $0x28] sm:$0xff] %vm1298, %v1213
      %1305 = vst.msk [vmem:[#allocation4 + $0x30] sm:$0xff] %vm1298, %v1215
      %1306 = vst.msk [vmem:[#allocation4 + $0x38] sm:$0xff] %vm1298, %v1217
      %1307 = vst.msk [vmem:[#allocation4 + $0x40] sm:$0xff] %vm1298, %v1219
      %1308 = vst.msk [vmem:[#allocation4 + $0x48] sm:$0xff] %vm1298, %v1221
      %1309 = vst.msk [vmem:[#allocation4 + $0x50] sm:$0xff] %vm1298, %v1223
      %1310 = vst.msk [vmem:[#allocation4 + $0x58] sm:$0xff] %vm1298, %v1225
      %1311 = vst.msk [vmem:[#allocation4 + $0x60] sm:$0xff] %vm1298, %v1227
      %1312 = vst.msk [vmem:[#allocation4 + $0x68] sm:$0xff] %vm1298, %v1229
      %1313 = vst.msk [vmem:[#allocation4 + $0x70] sm:$0xff] %vm1298, %v1231
      %1314 = vst.msk [vmem:[#allocation4 + $0x78] sm:$0xff] %vm1298, %v1233
      %1315 = vst.msk [vmem:[#allocation4 + $0x80] sm:$0xff] %vm1298, %v1235
      %1316 = vst.msk [vmem:[#allocation4 + $0x88] sm:$0xff] %vm1298, %v1237
      %1317 = vst.msk [vmem:[#allocation4 + $0x90] sm:$0xff] %vm1298, %v1239
      %1318 = vst.msk [vmem:[#allocation4 + $0x98] sm:$0xff] %vm1298, %v1241
      %1319 = vst.msk [vmem:[#allocation4 + $0xa0] sm:$0xff] %vm1298, %v1243
      %1320 = vst.msk [vmem:[#allocation4 + $0xa8] sm:$0xff] %vm1298, %v1245
      %1321 = vst.msk [vmem:[#allocation4 + $0xb0] sm:$0xff] %vm1298, %v1247
      %1322 = vst.msk [vmem:[#allocation4 + $0xb8] sm:$0xff] %vm1298, %v1249
      %1323 = vst.msk [vmem:[#allocation4 + $0xc0] sm:$0xff] %vm1298, %v1251
      %1324 = vst.msk [vmem:[#allocation4 + $0xc8] sm:$0xff] %vm1298, %v1253
      %1325 = vst.msk [vmem:[#allocation4 + $0xd0] sm:$0xff] %vm1298, %v1255
      %1326 = vst.msk [vmem:[#allocation4 + $0xd8] sm:$0xff] %vm1298, %v1257
      %1327 = vst.msk [vmem:[#allocation4 + $0xe0] sm:$0xff] %vm1298, %v1259
      %1328 = vst.msk [vmem:[#allocation4 + $0xe8] sm:$0xff] %vm1298, %v1261
      %1329 = vst.msk [vmem:[#allocation4 + $0xf0] sm:$0xff] %vm1298, %v1263
      %1330 = vst.msk [vmem:[#allocation4 + $0xf8] sm:$0xff] %vm1298, %v1265
      %v1331 = vld [vmem:[%s494 + $0x1] sm:$0xff]
      %v1332 = vld [vmem:[%s494 + $0x9] sm:$0xff]
      %v1333 = vld [vmem:[%s494 + $0x19] sm:$0xff]
      %v1334 = vld [vmem:[%s494 + $0x21] sm:$0xff]
      %v1335 = vld [vmem:[%s494 + $0x31] sm:$0xff]
      %v1336 = vld [vmem:[%s494 + $0x39] sm:$0xff]
      %v1337 = vld [vmem:[%s494 + $0x49] sm:$0xff]
      %v1338 = vld [vmem:[%s494 + $0x51] sm:$0xff]
      %v1339 = vld [vmem:[%s494 + $0x61] sm:$0xff]
      %v1340 = vld [vmem:[%s494 + $0x69] sm:$0xff]
      %v1341 = vld [vmem:[%s494 + $0x79] sm:$0xff]
      %v1342 = vld [vmem:[%s494 + $0x81] sm:$0xff]
      %v1343 = vld [vmem:[%s494 + $0x91] sm:$0xff]
      %v1344 = vld [vmem:[%s494 + $0x99] sm:$0xff]
      %v1345 = vld [vmem:[%s494 + $0xa9] sm:$0xff]
      %v1346 = vld [vmem:[%s494 + $0xb1] sm:$0xff]
      %v1347 = vld [vmem:[%s494 + $0xc1] sm:$0xff]
      %v1348 = vld [vmem:[%s494 + $0xc9] sm:$0xff]
      %v1349 = vld [vmem:[%s494 + $0xd9] sm:$0xff]
      %v1350 = vld [vmem:[%s494 + $0xe1] sm:$0xff]
      %v1351 = vld [vmem:[%s494 + $0xf1] sm:$0xff]
      %v1352 = vld [vmem:[%s494 + $0xf9] sm:$0xff]
      %v1353 = vld [vmem:[%s494 + $0x109] sm:$0xff]
      %v1354 = vld [vmem:[%s494 + $0x111] sm:$0xff]
      %v1355 = vld [vmem:[%s494 + $0x121] sm:$0xff]
      %v1356 = vld [vmem:[%s494 + $0x129] sm:$0xff]
      %v1357 = vld [vmem:[%s494 + $0x139] sm:$0xff]
      %v1358 = vld [vmem:[%s494 + $0x141] sm:$0xff]
      %v1359 = vld [vmem:[%s494 + $0x151] sm:$0xff]
      %v1360 = vld [vmem:[%s494 + $0x159] sm:$0xff]
      %v1361 = vld [vmem:[%s494 + $0x169] sm:$0xff]
      %v1362 = vld [vmem:[%s494 + $0x171] sm:$0xff]
      %1395 = vrot.lane.b32.xlu0 %v1331, 16
      %v1396 = vpop.permute.xlu0 %1395
      %1397 = vrot.lane.b32.xlu0 %v1332, 16
      %v1398 = vpop.permute.xlu0 %1397
      %1399 = vrot.lane.b32.xlu0 %v1333, 16
      %v1400 = vpop.permute.xlu0 %1399
      %1401 = vrot.lane.b32.xlu0 %v1334, 16
      %v1402 = vpop.permute.xlu0 %1401
      %1403 = vrot.lane.b32.xlu0 %v1335, 16
      %v1404 = vpop.permute.xlu0 %1403
      %1405 = vrot.lane.b32.xlu0 %v1336, 16
      %v1406 = vpop.permute.xlu0 %1405
      %1407 = vrot.lane.b32.xlu0 %v1337, 16
      %v1408 = vpop.permute.xlu0 %1407
      %1409 = vrot.lane.b32.xlu0 %v1338, 16
      %v1410 = vpop.permute.xlu0 %1409
      %1411 = vrot.lane.b32.xlu0 %v1339, 16
      %v1412 = vpop.permute.xlu0 %1411
      %1413 = vrot.lane.b32.xlu0 %v1340, 16
      %v1414 = vpop.permute.xlu0 %1413
      %1415 = vrot.lane.b32.xlu0 %v1341, 16
      %v1416 = vpop.permute.xlu0 %1415
      %1417 = vrot.lane.b32.xlu0 %v1342, 16
      %v1418 = vpop.permute.xlu0 %1417
      %1419 = vrot.lane.b32.xlu0 %v1343, 16
      %v1420 = vpop.permute.xlu0 %1419
      %1421 = vrot.lane.b32.xlu0 %v1344, 16
      %v1422 = vpop.permute.xlu0 %1421
      %1423 = vrot.lane.b32.xlu0 %v1345, 16
      %v1424 = vpop.permute.xlu0 %1423
      %1425 = vrot.lane.b32.xlu0 %v1346, 16
      %v1426 = vpop.permute.xlu0 %1425
      %1427 = vrot.lane.b32.xlu0 %v1347, 16
      %v1428 = vpop.permute.xlu0 %1427
      %1429 = vrot.lane.b32.xlu0 %v1348, 16
      %v1430 = vpop.permute.xlu0 %1429
      %1431 = vrot.lane.b32.xlu0 %v1349, 16
      %v1432 = vpop.permute.xlu0 %1431
      %1433 = vrot.lane.b32.xlu0 %v1350, 16
      %v1434 = vpop.permute.xlu0 %1433
      %1435 = vrot.lane.b32.xlu0 %v1351, 16
      %v1436 = vpop.permute.xlu0 %1435
      %1437 = vrot.lane.b32.xlu0 %v1352, 16
      %v1438 = vpop.permute.xlu0 %1437
      %1439 = vrot.lane.b32.xlu0 %v1353, 16
      %v1440 = vpop.permute.xlu0 %1439
      %1441 = vrot.lane.b32.xlu0 %v1354, 16
      %v1442 = vpop.permute.xlu0 %1441
      %1443 = vrot.lane.b32.xlu0 %v1355, 16
      %v1444 = vpop.permute.xlu0 %1443
      %1445 = vrot.lane.b32.xlu0 %v1356, 16
      %v1446 = vpop.permute.xlu0 %1445
      %1447 = vrot.lane.b32.xlu0 %v1357, 16
      %v1448 = vpop.permute.xlu0 %1447
      %1449 = vrot.lane.b32.xlu0 %v1358, 16
      %v1450 = vpop.permute.xlu0 %1449
      %1451 = vrot.lane.b32.xlu0 %v1359, 16
      %v1452 = vpop.permute.xlu0 %1451
      %1453 = vrot.lane.b32.xlu0 %v1360, 16
      %v1454 = vpop.permute.xlu0 %1453
      %1455 = vrot.lane.b32.xlu0 %v1361, 16
      %v1456 = vpop.permute.xlu0 %1455
      %1457 = vrot.lane.b32.xlu0 %v1362, 16
      %v1458 = vpop.permute.xlu0 %1457
      %vm1491 = vcmask 162944
      %1492 = vst.msk [vmem:[#allocation4] sm:$0xff] %vm1491, %v1396
      %1493 = vst.msk [vmem:[#allocation4 + $0x8] sm:$0xff] %vm1491, %v1398
      %1494 = vst.msk [vmem:[#allocation4 + $0x10] sm:$0xff] %vm1491, %v1400
      %1495 = vst.msk [vmem:[#allocation4 + $0x18] sm:$0xff] %vm1491, %v1402
      %1496 = vst.msk [vmem:[#allocation4 + $0x20] sm:$0xff] %vm1491, %v1404
      %1497 = vst.msk [vmem:[#allocation4 + $0x28] sm:$0xff] %vm1491, %v1406
      %1498 = vst.msk [vmem:[#allocation4 + $0x30] sm:$0xff] %vm1491, %v1408
      %1499 = vst.msk [vmem:[#allocation4 + $0x38] sm:$0xff] %vm1491, %v1410
      %1500 = vst.msk [vmem:[#allocation4 + $0x40] sm:$0xff] %vm1491, %v1412
      %1501 = vst.msk [vmem:[#allocation4 + $0x48] sm:$0xff] %vm1491, %v1414
      %1502 = vst.msk [vmem:[#allocation4 + $0x50] sm:$0xff] %vm1491, %v1416
      %1503 = vst.msk [vmem:[#allocation4 + $0x58] sm:$0xff] %vm1491, %v1418
      %1504 = vst.msk [vmem:[#allocation4 + $0x60] sm:$0xff] %vm1491, %v1420
      %1505 = vst.msk [vmem:[#allocation4 + $0x68] sm:$0xff] %vm1491, %v1422
      %1506 = vst.msk [vmem:[#allocation4 + $0x70] sm:$0xff] %vm1491, %v1424
      %1507 = vst.msk [vmem:[#allocation4 + $0x78] sm:$0xff] %vm1491, %v1426
      %1508 = vst.msk [vmem:[#allocation4 + $0x80] sm:$0xff] %vm1491, %v1428
      %1509 = vst.msk [vmem:[#allocation4 + $0x88] sm:$0xff] %vm1491, %v1430
      %1510 = vst.msk [vmem:[#allocation4 + $0x90] sm:$0xff] %vm1491, %v1432
      %1511 = vst.msk [vmem:[#allocation4 + $0x98] sm:$0xff] %vm1491, %v1434
      %1512 = vst.msk [vmem:[#allocation4 + $0xa0] sm:$0xff] %vm1491, %v1436
      %1513 = vst.msk [vmem:[#allocation4 + $0xa8] sm:$0xff] %vm1491, %v1438
      %1514 = vst.msk [vmem:[#allocation4 + $0xb0] sm:$0xff] %vm1491, %v1440
      %1515 = vst.msk [vmem:[#allocation4 + $0xb8] sm:$0xff] %vm1491, %v1442
      %1516 = vst.msk [vmem:[#allocation4 + $0xc0] sm:$0xff] %vm1491, %v1444
      %1517 = vst.msk [vmem:[#allocation4 + $0xc8] sm:$0xff] %vm1491, %v1446
      %1518 = vst.msk [vmem:[#allocation4 + $0xd0] sm:$0xff] %vm1491, %v1448
      %1519 = vst.msk [vmem:[#allocation4 + $0xd8] sm:$0xff] %vm1491, %v1450
      %1520 = vst.msk [vmem:[#allocation4 + $0xe0] sm:$0xff] %vm1491, %v1452
      %1521 = vst.msk [vmem:[#allocation4 + $0xe8] sm:$0xff] %vm1491, %v1454
      %1522 = vst.msk [vmem:[#allocation4 + $0xf0] sm:$0xff] %vm1491, %v1456
      %1523 = vst.msk [vmem:[#allocation4 + $0xf8] sm:$0xff] %vm1491, %v1458
      %v1524 = vld [vmem:[%s494 + $0x2] sm:$0xff]
      %v1525 = vld [vmem:[%s494 + $0xa] sm:$0xff]
      %v1526 = vld [vmem:[%s494 + $0x1a] sm:$0xff]
      %v1527 = vld [vmem:[%s494 + $0x22] sm:$0xff]
      %v1528 = vld [vmem:[%s494 + $0x32] sm:$0xff]
      %v1529 = vld [vmem:[%s494 + $0x3a] sm:$0xff]
      %v1530 = vld [vmem:[%s494 + $0x4a] sm:$0xff]
      %v1531 = vld [vmem:[%s494 + $0x52] sm:$0xff]
      %v1532 = vld [vmem:[%s494 + $0x62] sm:$0xff]
      %v1533 = vld [vmem:[%s494 + $0x6a] sm:$0xff]
      %v1534 = vld [vmem:[%s494 + $0x7a] sm:$0xff]
      %v1535 = vld [vmem:[%s494 + $0x82] sm:$0xff]
      %v1536 = vld [vmem:[%s494 + $0x92] sm:$0xff]
      %v1537 = vld [vmem:[%s494 + $0x9a] sm:$0xff]
      %v1538 = vld [vmem:[%s494 + $0xaa] sm:$0xff]
      %v1539 = vld [vmem:[%s494 + $0xb2] sm:$0xff]
      %v1540 = vld [vmem:[%s494 + $0xc2] sm:$0xff]
      %v1541 = vld [vmem:[%s494 + $0xca] sm:$0xff]
      %v1542 = vld [vmem:[%s494 + $0xda] sm:$0xff]
      %v1543 = vld [vmem:[%s494 + $0xe2] sm:$0xff]
      %v1544 = vld [vmem:[%s494 + $0xf2] sm:$0xff]
      %v1545 = vld [vmem:[%s494 + $0xfa] sm:$0xff]
      %v1546 = vld [vmem:[%s494 + $0x10a] sm:$0xff]
      %v1547 = vld [vmem:[%s494 + $0x112] sm:$0xff]
      %v1548 = vld [vmem:[%s494 + $0x122] sm:$0xff]
      %v1549 = vld [vmem:[%s494 + $0x12a] sm:$0xff]
      %v1550 = vld [vmem:[%s494 + $0x13a] sm:$0xff]
      %v1551 = vld [vmem:[%s494 + $0x142] sm:$0xff]
      %v1552 = vld [vmem:[%s494 + $0x152] sm:$0xff]
      %v1553 = vld [vmem:[%s494 + $0x15a] sm:$0xff]
      %v1554 = vld [vmem:[%s494 + $0x16a] sm:$0xff]
      %v1555 = vld [vmem:[%s494 + $0x172] sm:$0xff]
      %1588 = vrot.lane.b32.xlu0 %v1524, 20
      %v1589 = vpop.permute.xlu0 %1588
      %1590 = vrot.lane.b32.xlu0 %v1525, 20
      %v1591 = vpop.permute.xlu0 %1590
      %1592 = vrot.lane.b32.xlu0 %v1526, 20
      %v1593 = vpop.permute.xlu0 %1592
      %1594 = vrot.lane.b32.xlu0 %v1527, 20
      %v1595 = vpop.permute.xlu0 %1594
      %1596 = vrot.lane.b32.xlu0 %v1528, 20
      %v1597 = vpop.permute.xlu0 %1596
      %1598 = vrot.lane.b32.xlu0 %v1529, 20
      %v1599 = vpop.permute.xlu0 %1598
      %1600 = vrot.lane.b32.xlu0 %v1530, 20
      %v1601 = vpop.permute.xlu0 %1600
      %1602 = vrot.lane.b32.xlu0 %v1531, 20
      %v1603 = vpop.permute.xlu0 %1602
      %1604 = vrot.lane.b32.xlu0 %v1532, 20
      %v1605 = vpop.permute.xlu0 %1604
      %1606 = vrot.lane.b32.xlu0 %v1533, 20
      %v1607 = vpop.permute.xlu0 %1606
      %1608 = vrot.lane.b32.xlu0 %v1534, 20
      %v1609 = vpop.permute.xlu0 %1608
      %1610 = vrot.lane.b32.xlu0 %v1535, 20
      %v1611 = vpop.permute.xlu0 %1610
      %1612 = vrot.lane.b32.xlu0 %v1536, 20
      %v1613 = vpop.permute.xlu0 %1612
      %1614 = vrot.lane.b32.xlu0 %v1537, 20
      %v1615 = vpop.permute.xlu0 %1614
      %1616 = vrot.lane.b32.xlu0 %v1538, 20
      %v1617 = vpop.permute.xlu0 %1616
      %1618 = vrot.lane.b32.xlu0 %v1539, 20
      %v1619 = vpop.permute.xlu0 %1618
      %1620 = vrot.lane.b32.xlu0 %v1540, 20
      %v1621 = vpop.permute.xlu0 %1620
      %1622 = vrot.lane.b32.xlu0 %v1541, 20
      %v1623 = vpop.permute.xlu0 %1622
      %1624 = vrot.lane.b32.xlu0 %v1542, 20
      %v1625 = vpop.permute.xlu0 %1624
      %1626 = vrot.lane.b32.xlu0 %v1543, 20
      %v1627 = vpop.permute.xlu0 %1626
      %1628 = vrot.lane.b32.xlu0 %v1544, 20
      %v1629 = vpop.permute.xlu0 %1628
      %1630 = vrot.lane.b32.xlu0 %v1545, 20
      %v1631 = vpop.permute.xlu0 %1630
      %1632 = vrot.lane.b32.xlu0 %v1546, 20
      %v1633 = vpop.permute.xlu0 %1632
      %1634 = vrot.lane.b32.xlu0 %v1547, 20
      %v1635 = vpop.permute.xlu0 %1634
      %1636 = vrot.lane.b32.xlu0 %v1548, 20
      %v1637 = vpop.permute.xlu0 %1636
      %1638 = vrot.lane.b32.xlu0 %v1549, 20
      %v1639 = vpop.permute.xlu0 %1638
      %1640 = vrot.lane.b32.xlu0 %v1550, 20
      %v1641 = vpop.permute.xlu0 %1640
      %1642 = vrot.lane.b32.xlu0 %v1551, 20
      %v1643 = vpop.permute.xlu0 %1642
      %1644 = vrot.lane.b32.xlu0 %v1552, 20
      %v1645 = vpop.permute.xlu0 %1644
      %1646 = vrot.lane.b32.xlu0 %v1553, 20
      %v1647 = vpop.permute.xlu0 %1646
      %1648 = vrot.lane.b32.xlu0 %v1554, 20
      %v1649 = vpop.permute.xlu0 %1648
      %1650 = vrot.lane.b32.xlu0 %v1555, 20
      %v1651 = vpop.permute.xlu0 %1650
      %vm1684 = vcmask 195744
      %1685 = vst.msk [vmem:[#allocation4] sm:$0xff] %vm1684, %v1589
      %1686 = vst.msk [vmem:[#allocation4 + $0x8] sm:$0xff] %vm1684, %v1591
      %1687 = vst.msk [vmem:[#allocation4 + $0x10] sm:$0xff] %vm1684, %v1593
      %1688 = vst.msk [vmem:[#allocation4 + $0x18] sm:$0xff] %vm1684, %v1595
      %1689 = vst.msk [vmem:[#allocation4 + $0x20] sm:$0xff] %vm1684, %v1597
      %1690 = vst.msk [vmem:[#allocation4 + $0x28] sm:$0xff] %vm1684, %v1599
      %1691 = vst.msk [vmem:[#allocation4 + $0x30] sm:$0xff] %vm1684, %v1601
      %1692 = vst.msk [vmem:[#allocation4 + $0x38] sm:$0xff] %vm1684, %v1603
      %1693 = vst.msk [vmem:[#allocation4 + $0x40] sm:$0xff] %vm1684, %v1605
      %1694 = vst.msk [vmem:[#allocation4 + $0x48] sm:$0xff] %vm1684, %v1607
      %1695 = vst.msk [vmem:[#allocation4 + $0x50] sm:$0xff] %vm1684, %v1609
      %1696 = vst.msk [vmem:[#allocation4 + $0x58] sm:$0xff] %vm1684, %v1611
      %1697 = vst.msk [vmem:[#allocation4 + $0x60] sm:$0xff] %vm1684, %v1613
      %1698 = vst.msk [vmem:[#allocation4 + $0x68] sm:$0xff] %vm1684, %v1615
      %1699 = vst.msk [vmem:[#allocation4 + $0x70] sm:$0xff] %vm1684, %v1617
      %1700 = vst.msk [vmem:[#allocation4 + $0x78] sm:$0xff] %vm1684, %v1619
      %1701 = vst.msk [vmem:[#allocation4 + $0x80] sm:$0xff] %vm1684, %v1621
      %1702 = vst.msk [vmem:[#allocation4 + $0x88] sm:$0xff] %vm1684, %v1623
      %1703 = vst.msk [vmem:[#allocation4 + $0x90] sm:$0xff] %vm1684, %v1625
      %1704 = vst.msk [vmem:[#allocation4 + $0x98] sm:$0xff] %vm1684, %v1627
      %1705 = vst.msk [vmem:[#allocation4 + $0xa0] sm:$0xff] %vm1684, %v1629
      %1706 = vst.msk [vmem:[#allocation4 + $0xa8] sm:$0xff] %vm1684, %v1631
      %1707 = vst.msk [vmem:[#allocation4 + $0xb0] sm:$0xff] %vm1684, %v1633
      %1708 = vst.msk [vmem:[#allocation4 + $0xb8] sm:$0xff] %vm1684, %v1635
      %1709 = vst.msk [vmem:[#allocation4 + $0xc0] sm:$0xff] %vm1684, %v1637
      %1710 = vst.msk [vmem:[#allocation4 + $0xc8] sm:$0xff] %vm1684, %v1639
      %1711 = vst.msk [vmem:[#allocation4 + $0xd0] sm:$0xff] %vm1684, %v1641
      %1712 = vst.msk [vmem:[#allocation4 + $0xd8] sm:$0xff] %vm1684, %v1643
      %1713 = vst.msk [vmem:[#allocation4 + $0xe0] sm:$0xff] %vm1684, %v1645
      %1714 = vst.msk [vmem:[#allocation4 + $0xe8] sm:$0xff] %vm1684, %v1647
      %1715 = vst.msk [vmem:[#allocation4 + $0xf0] sm:$0xff] %vm1684, %v1649
      %1716 = vst.msk [vmem:[#allocation4 + $0xf8] sm:$0xff] %vm1684, %v1651
      %s1717 = scalar_lea.vmem [#allocation2], 48
      %v1718 = vld [vmem:[%s1717] sm:$0xff]
      %v1719 = vld [vmem:[%s1717 + $0x8] sm:$0xff]
      %v1720 = vld [vmem:[%s1717 + $0x18] sm:$0xff]
      %v1721 = vld [vmem:[%s1717 + $0x20] sm:$0xff]
      %v1722 = vld [vmem:[%s1717 + $0x30] sm:$0xff]
      %v1723 = vld [vmem:[%s1717 + $0x38] sm:$0xff]
      %v1724 = vld [vmem:[%s1717 + $0x48] sm:$0xff]
      %v1725 = vld [vmem:[%s1717 + $0x50] sm:$0xff]
      %v1726 = vld [vmem:[%s1717 + $0x60] sm:$0xff]
      %v1727 = vld [vmem:[%s1717 + $0x68] sm:$0xff]
      %v1728 = vld [vmem:[%s1717 + $0x78] sm:$0xff]
      %v1729 = vld [vmem:[%s1717 + $0x80] sm:$0xff]
      %v1730 = vld [vmem:[%s1717 + $0x90] sm:$0xff]
      %v1731 = vld [vmem:[%s1717 + $0x98] sm:$0xff]
      %v1732 = vld [vmem:[%s1717 + $0xa8] sm:$0xff]
      %v1733 = vld [vmem:[%s1717 + $0xb0] sm:$0xff]
      %v1734 = vld [vmem:[%s1717 + $0xc0] sm:$0xff]
      %v1735 = vld [vmem:[%s1717 + $0xc8] sm:$0xff]
      %v1736 = vld [vmem:[%s1717 + $0xd8] sm:$0xff]
      %v1737 = vld [vmem:[%s1717 + $0xe0] sm:$0xff]
      %v1738 = vld [vmem:[%s1717 + $0xf0] sm:$0xff]
      %v1739 = vld [vmem:[%s1717 + $0xf8] sm:$0xff]
      %v1740 = vld [vmem:[%s1717 + $0x108] sm:$0xff]
      %v1741 = vld [vmem:[%s1717 + $0x110] sm:$0xff]
      %v1742 = vld [vmem:[%s1717 + $0x120] sm:$0xff]
      %v1743 = vld [vmem:[%s1717 + $0x128] sm:$0xff]
      %v1744 = vld [vmem:[%s1717 + $0x138] sm:$0xff]
      %v1745 = vld [vmem:[%s1717 + $0x140] sm:$0xff]
      %v1746 = vld [vmem:[%s1717 + $0x150] sm:$0xff]
      %v1747 = vld [vmem:[%s1717 + $0x158] sm:$0xff]
      %v1748 = vld [vmem:[%s1717 + $0x168] sm:$0xff]
      %v1749 = vld [vmem:[%s1717 + $0x170] sm:$0xff]
      %1782 = vrot.lane.b32.xlu0 %v1718, 24
      %v1783 = vpop.permute.xlu0 %1782
      %1784 = vrot.lane.b32.xlu0 %v1719, 24
      %v1785 = vpop.permute.xlu0 %1784
      %1786 = vrot.lane.b32.xlu0 %v1720, 24
      %v1787 = vpop.permute.xlu0 %1786
      %1788 = vrot.lane.b32.xlu0 %v1721, 24
      %v1789 = vpop.permute.xlu0 %1788
      %1790 = vrot.lane.b32.xlu0 %v1722, 24
      %v1791 = vpop.permute.xlu0 %1790
      %1792 = vrot.lane.b32.xlu0 %v1723, 24
      %v1793 = vpop.permute.xlu0 %1792
      %1794 = vrot.lane.b32.xlu0 %v1724, 24
      %v1795 = vpop.permute.xlu0 %1794
      %1796 = vrot.lane.b32.xlu0 %v1725, 24
      %v1797 = vpop.permute.xlu0 %1796
      %1798 = vrot.lane.b32.xlu0 %v1726, 24
      %v1799 = vpop.permute.xlu0 %1798
      %1800 = vrot.lane.b32.xlu0 %v1727, 24
      %v1801 = vpop.permute.xlu0 %1800
      %1802 = vrot.lane.b32.xlu0 %v1728, 24
      %v1803 = vpop.permute.xlu0 %1802
      %1804 = vrot.lane.b32.xlu0 %v1729, 24
      %v1805 = vpop.permute.xlu0 %1804
      %1806 = vrot.lane.b32.xlu0 %v1730, 24
      %v1807 = vpop.permute.xlu0 %1806
      %1808 = vrot.lane.b32.xlu0 %v1731, 24
      %v1809 = vpop.permute.xlu0 %1808
      %1810 = vrot.lane.b32.xlu0 %v1732, 24
      %v1811 = vpop.permute.xlu0 %1810
      %1812 = vrot.lane.b32.xlu0 %v1733, 24
      %v1813 = vpop.permute.xlu0 %1812
      %1814 = vrot.lane.b32.xlu0 %v1734, 24
      %v1815 = vpop.permute.xlu0 %1814
      %1816 = vrot.lane.b32.xlu0 %v1735, 24
      %v1817 = vpop.permute.xlu0 %1816
      %1818 = vrot.lane.b32.xlu0 %v1736, 24
      %v1819 = vpop.permute.xlu0 %1818
      %1820 = vrot.lane.b32.xlu0 %v1737, 24
      %v1821 = vpop.permute.xlu0 %1820
      %1822 = vrot.lane.b32.xlu0 %v1738, 24
      %v1823 = vpop.permute.xlu0 %1822
      %1824 = vrot.lane.b32.xlu0 %v1739, 24
      %v1825 = vpop.permute.xlu0 %1824
      %1826 = vrot.lane.b32.xlu0 %v1740, 24
      %v1827 = vpop.permute.xlu0 %1826
      %1828 = vrot.lane.b32.xlu0 %v1741, 24
      %v1829 = vpop.permute.xlu0 %1828
      %1830 = vrot.lane.b32.xlu0 %v1742, 24
      %v1831 = vpop.permute.xlu0 %1830
      %1832 = vrot.lane.b32.xlu0 %v1743, 24
      %v1833 = vpop.permute.xlu0 %1832
      %1834 = vrot.lane.b32.xlu0 %v1744, 24
      %v1835 = vpop.permute.xlu0 %1834
      %1836 = vrot.lane.b32.xlu0 %v1745, 24
      %v1837 = vpop.permute.xlu0 %1836
      %1838 = vrot.lane.b32.xlu0 %v1746, 24
      %v1839 = vpop.permute.xlu0 %1838
      %1840 = vrot.lane.b32.xlu0 %v1747, 24
      %v1841 = vpop.permute.xlu0 %1840
      %1842 = vrot.lane.b32.xlu0 %v1748, 24
      %v1843 = vpop.permute.xlu0 %1842
      %1844 = vrot.lane.b32.xlu0 %v1749, 24
      %v1845 = vpop.permute.xlu0 %1844
      %vm1878 = vcmask 228544
      %1879 = vst.msk [vmem:[#allocation4] sm:$0xff] %vm1878, %v1783
      %1880 = vst.msk [vmem:[#allocation4 + $0x8] sm:$0xff] %vm1878, %v1785
      %1881 = vst.msk [vmem:[#allocation4 + $0x10] sm:$0xff] %vm1878, %v1787
      %1882 = vst.msk [vmem:[#allocation4 + $0x18] sm:$0xff] %vm1878, %v1789
      %1883 = vst.msk [vmem:[#allocation4 + $0x20] sm:$0xff] %vm1878, %v1791
      %1884 = vst.msk [vmem:[#allocation4 + $0x28] sm:$0xff] %vm1878, %v1793
      %1885 = vst.msk [vmem:[#allocation4 + $0x30] sm:$0xff] %vm1878, %v1795
      %1886 = vst.msk [vmem:[#allocation4 + $0x38] sm:$0xff] %vm1878, %v1797
      %1887 = vst.msk [vmem:[#allocation4 + $0x40] sm:$0xff] %vm1878, %v1799
      %1888 = vst.msk [vmem:[#allocation4 + $0x48] sm:$0xff] %vm1878, %v1801
      %1889 = vst.msk [vmem:[#allocation4 + $0x50] sm:$0xff] %vm1878, %v1803
      %1890 = vst.msk [vmem:[#allocation4 + $0x58] sm:$0xff] %vm1878, %v1805
      %1891 = vst.msk [vmem:[#allocation4 + $0x60] sm:$0xff] %vm1878, %v1807
      %1892 = vst.msk [vmem:[#allocation4 + $0x68] sm:$0xff] %vm1878, %v1809
      %1893 = vst.msk [vmem:[#allocation4 + $0x70] sm:$0xff] %vm1878, %v1811
      %1894 = vst.msk [vmem:[#allocation4 + $0x78] sm:$0xff] %vm1878, %v1813
      %1895 = vst.msk [vmem:[#allocation4 + $0x80] sm:$0xff] %vm1878, %v1815
      %1896 = vst.msk [vmem:[#allocation4 + $0x88] sm:$0xff] %vm1878, %v1817
      %1897 = vst.msk [vmem:[#allocation4 + $0x90] sm:$0xff] %vm1878, %v1819
      %1898 = vst.msk [vmem:[#allocation4 + $0x98] sm:$0xff] %vm1878, %v1821
      %1899 = vst.msk [vmem:[#allocation4 + $0xa0] sm:$0xff] %vm1878, %v1823
      %1900 = vst.msk [vmem:[#allocation4 + $0xa8] sm:$0xff] %vm1878, %v1825
      %1901 = vst.msk [vmem:[#allocation4 + $0xb0] sm:$0xff] %vm1878, %v1827
      %1902 = vst.msk [vmem:[#allocation4 + $0xb8] sm:$0xff] %vm1878, %v1829
      %1903 = vst.msk [vmem:[#allocation4 + $0xc0] sm:$0xff] %vm1878, %v1831
      %1904 = vst.msk [vmem:[#allocation4 + $0xc8] sm:$0xff] %vm1878, %v1833
      %1905 = vst.msk [vmem:[#allocation4 + $0xd0] sm:$0xff] %vm1878, %v1835
      %1906 = vst.msk [vmem:[#allocation4 + $0xd8] sm:$0xff] %vm1878, %v1837
      %1907 = vst.msk [vmem:[#allocation4 + $0xe0] sm:$0xff] %vm1878, %v1839
      %1908 = vst.msk [vmem:[#allocation4 + $0xe8] sm:$0xff] %vm1878, %v1841
      %1909 = vst.msk [vmem:[#allocation4 + $0xf0] sm:$0xff] %vm1878, %v1843
      %1910 = vst.msk [vmem:[#allocation4 + $0xf8] sm:$0xff] %vm1878, %v1845
      %v1911 = vld [vmem:[%s1717 + $0x1] sm:$0xff]
      %v1912 = vld [vmem:[%s1717 + $0x9] sm:$0xff]
      %v1913 = vld [vmem:[%s1717 + $0x19] sm:$0xff]
      %v1914 = vld [vmem:[%s1717 + $0x21] sm:$0xff]
      %v1915 = vld [vmem:[%s1717 + $0x31] sm:$0xff]
      %v1916 = vld [vmem:[%s1717 + $0x39] sm:$0xff]
      %v1917 = vld [vmem:[%s1717 + $0x49] sm:$0xff]
      %v1918 = vld [vmem:[%s1717 + $0x51] sm:$0xff]
      %v1919 = vld [vmem:[%s1717 + $0x61] sm:$0xff]
      %v1920 = vld [vmem:[%s1717 + $0x69] sm:$0xff]
      %v1921 = vld [vmem:[%s1717 + $0x79] sm:$0xff]
      %v1922 = vld [vmem:[%s1717 + $0x81] sm:$0xff]
      %v1923 = vld [vmem:[%s1717 + $0x91] sm:$0xff]
      %v1924 = vld [vmem:[%s1717 + $0x99] sm:$0xff]
      %v1925 = vld [vmem:[%s1717 + $0xa9] sm:$0xff]
      %v1926 = vld [vmem:[%s1717 + $0xb1] sm:$0xff]
      %v1927 = vld [vmem:[%s1717 + $0xc1] sm:$0xff]
      %v1928 = vld [vmem:[%s1717 + $0xc9] sm:$0xff]
      %v1929 = vld [vmem:[%s1717 + $0xd9] sm:$0xff]
      %v1930 = vld [vmem:[%s1717 + $0xe1] sm:$0xff]
      %v1931 = vld [vmem:[%s1717 + $0xf1] sm:$0xff]
      %v1932 = vld [vmem:[%s1717 + $0xf9] sm:$0xff]
      %v1933 = vld [vmem:[%s1717 + $0x109] sm:$0xff]
      %v1934 = vld [vmem:[%s1717 + $0x111] sm:$0xff]
      %v1935 = vld [vmem:[%s1717 + $0x121] sm:$0xff]
      %v1936 = vld [vmem:[%s1717 + $0x129] sm:$0xff]
      %v1937 = vld [vmem:[%s1717 + $0x139] sm:$0xff]
      %v1938 = vld [vmem:[%s1717 + $0x141] sm:$0xff]
      %v1939 = vld [vmem:[%s1717 + $0x151] sm:$0xff]
      %v1940 = vld [vmem:[%s1717 + $0x159] sm:$0xff]
      %v1941 = vld [vmem:[%s1717 + $0x169] sm:$0xff]
      %v1942 = vld [vmem:[%s1717 + $0x171] sm:$0xff]
      %1975 = vrot.lane.b32.xlu0 %v1911, 28
      %v1976 = vpop.permute.xlu0 %1975
      %1977 = vrot.lane.b32.xlu0 %v1912, 28
      %v1978 = vpop.permute.xlu0 %1977
      %1979 = vrot.lane.b32.xlu0 %v1913, 28
      %v1980 = vpop.permute.xlu0 %1979
      %1981 = vrot.lane.b32.xlu0 %v1914, 28
      %v1982 = vpop.permute.xlu0 %1981
      %1983 = vrot.lane.b32.xlu0 %v1915, 28
      %v1984 = vpop.permute.xlu0 %1983
      %1985 = vrot.lane.b32.xlu0 %v1916, 28
      %v1986 = vpop.permute.xlu0 %1985
      %1987 = vrot.lane.b32.xlu0 %v1917, 28
      %v1988 = vpop.permute.xlu0 %1987
      %1989 = vrot.lane.b32.xlu0 %v1918, 28
      %v1990 = vpop.permute.xlu0 %1989
      %1991 = vrot.lane.b32.xlu0 %v1919, 28
      %v1992 = vpop.permute.xlu0 %1991
      %1993 = vrot.lane.b32.xlu0 %v1920, 28
      %v1994 = vpop.permute.xlu0 %1993
      %1995 = vrot.lane.b32.xlu0 %v1921, 28
      %v1996 = vpop.permute.xlu0 %1995
      %1997 = vrot.lane.b32.xlu0 %v1922, 28
      %v1998 = vpop.permute.xlu0 %1997
      %1999 = vrot.lane.b32.xlu0 %v1923, 28
      %v2000 = vpop.permute.xlu0 %1999
      %2001 = vrot.lane.b32.xlu0 %v1924, 28
      %v2002 = vpop.permute.xlu0 %2001
      %2003 = vrot.lane.b32.xlu0 %v1925, 28
      %v2004 = vpop.permute.xlu0 %2003
      %2005 = vrot.lane.b32.xlu0 %v1926, 28
      %v2006 = vpop.permute.xlu0 %2005
      %2007 = vrot.lane.b32.xlu0 %v1927, 28
      %v2008 = vpop.permute.xlu0 %2007
      %2009 = vrot.lane.b32.xlu0 %v1928, 28
      %v2010 = vpop.permute.xlu0 %2009
      %2011 = vrot.lane.b32.xlu0 %v1929, 28
      %v2012 = vpop.permute.xlu0 %2011
      %2013 = vrot.lane.b32.xlu0 %v1930, 28
      %v2014 = vpop.permute.xlu0 %2013
      %2015 = vrot.lane.b32.xlu0 %v1931, 28
      %v2016 = vpop.permute.xlu0 %2015
      %2017 = vrot.lane.b32.xlu0 %v1932, 28
      %v2018 = vpop.permute.xlu0 %2017
      %2019 = vrot.lane.b32.xlu0 %v1933, 28
      %v2020 = vpop.permute.xlu0 %2019
      %2021 = vrot.lane.b32.xlu0 %v1934, 28
      %v2022 = vpop.permute.xlu0 %2021
      %2023 = vrot.lane.b32.xlu0 %v1935, 28
      %v2024 = vpop.permute.xlu0 %2023
      %2025 = vrot.lane.b32.xlu0 %v1936, 28
      %v2026 = vpop.permute.xlu0 %2025
      %2027 = vrot.lane.b32.xlu0 %v1937, 28
      %v2028 = vpop.permute.xlu0 %2027
      %2029 = vrot.lane.b32.xlu0 %v1938, 28
      %v2030 = vpop.permute.xlu0 %2029
      %2031 = vrot.lane.b32.xlu0 %v1939, 28
      %v2032 = vpop.permute.xlu0 %2031
      %2033 = vrot.lane.b32.xlu0 %v1940, 28
      %v2034 = vpop.permute.xlu0 %2033
      %2035 = vrot.lane.b32.xlu0 %v1941, 28
      %v2036 = vpop.permute.xlu0 %2035
      %2037 = vrot.lane.b32.xlu0 %v1942, 28
      %v2038 = vpop.permute.xlu0 %2037
      %vm2071 = vcmask 261344
      %2072 = vst.msk [vmem:[#allocation4] sm:$0xff] %vm2071, %v1976
      %2073 = vst.msk [vmem:[#allocation4 + $0x8] sm:$0xff] %vm2071, %v1978
      %2074 = vst.msk [vmem:[#allocation4 + $0x10] sm:$0xff] %vm2071, %v1980
      %2075 = vst.msk [vmem:[#allocation4 + $0x18] sm:$0xff] %vm2071, %v1982
      %2076 = vst.msk [vmem:[#allocation4 + $0x20] sm:$0xff] %vm2071, %v1984
      %2077 = vst.msk [vmem:[#allocation4 + $0x28] sm:$0xff] %vm2071, %v1986
      %2078 = vst.msk [vmem:[#allocation4 + $0x30] sm:$0xff] %vm2071, %v1988
      %2079 = vst.msk [vmem:[#allocation4 + $0x38] sm:$0xff] %vm2071, %v1990
      %2080 = vst.msk [vmem:[#allocation4 + $0x40] sm:$0xff] %vm2071, %v1992
      %2081 = vst.msk [vmem:[#allocation4 + $0x48] sm:$0xff] %vm2071, %v1994
      %2082 = vst.msk [vmem:[#allocation4 + $0x50] sm:$0xff] %vm2071, %v1996
      %2083 = vst.msk [vmem:[#allocation4 + $0x58] sm:$0xff] %vm2071, %v1998
      %2084 = vst.msk [vmem:[#allocation4 + $0x60] sm:$0xff] %vm2071, %v2000
      %2085 = vst.msk [vmem:[#allocation4 + $0x68] sm:$0xff] %vm2071, %v2002
      %2086 = vst.msk [vmem:[#allocation4 + $0x70] sm:$0xff] %vm2071, %v2004
      %2087 = vst.msk [vmem:[#allocation4 + $0x78] sm:$0xff] %vm2071, %v2006
      %2088 = vst.msk [vmem:[#allocation4 + $0x80] sm:$0xff] %vm2071, %v2008
      %2089 = vst.msk [vmem:[#allocation4 + $0x88] sm:$0xff] %vm2071, %v2010
      %2090 = vst.msk [vmem:[#allocation4 + $0x90] sm:$0xff] %vm2071, %v2012
      %2091 = vst.msk [vmem:[#allocation4 + $0x98] sm:$0xff] %vm2071, %v2014
      %2092 = vst.msk [vmem:[#allocation4 + $0xa0] sm:$0xff] %vm2071, %v2016
      %2093 = vst.msk [vmem:[#allocation4 + $0xa8] sm:$0xff] %vm2071, %v2018
      %2094 = vst.msk [vmem:[#allocation4 + $0xb0] sm:$0xff] %vm2071, %v2020
      %2095 = vst.msk [vmem:[#allocation4 + $0xb8] sm:$0xff] %vm2071, %v2022
      %2096 = vst.msk [vmem:[#allocation4 + $0xc0] sm:$0xff] %vm2071, %v2024
      %2097 = vst.msk [vmem:[#allocation4 + $0xc8] sm:$0xff] %vm2071, %v2026
      %2098 = vst.msk [vmem:[#allocation4 + $0xd0] sm:$0xff] %vm2071, %v2028
      %2099 = vst.msk [vmem:[#allocation4 + $0xd8] sm:$0xff] %vm2071, %v2030
      %2100 = vst.msk [vmem:[#allocation4 + $0xe0] sm:$0xff] %vm2071, %v2032
      %2101 = vst.msk [vmem:[#allocation4 + $0xe8] sm:$0xff] %vm2071, %v2034
      %2102 = vst.msk [vmem:[#allocation4 + $0xf0] sm:$0xff] %vm2071, %v2036
      %2103 = vst.msk [vmem:[#allocation4 + $0xf8] sm:$0xff] %vm2071, %v2038
      %v2104 = vld [vmem:[%s1717 + $0x2] sm:$0xff]
      %v2105 = vld [vmem:[%s1717 + $0xa] sm:$0xff]
      %v2106 = vld [vmem:[%s1717 + $0x1a] sm:$0xff]
      %v2107 = vld [vmem:[%s1717 + $0x22] sm:$0xff]
      %v2108 = vld [vmem:[%s1717 + $0x32] sm:$0xff]
      %v2109 = vld [vmem:[%s1717 + $0x3a] sm:$0xff]
      %v2110 = vld [vmem:[%s1717 + $0x4a] sm:$0xff]
      %v2111 = vld [vmem:[%s1717 + $0x52] sm:$0xff]
      %v2112 = vld [vmem:[%s1717 + $0x62] sm:$0xff]
      %v2113 = vld [vmem:[%s1717 + $0x6a] sm:$0xff]
      %v2114 = vld [vmem:[%s1717 + $0x7a] sm:$0xff]
      %v2115 = vld [vmem:[%s1717 + $0x82] sm:$0xff]
      %v2116 = vld [vmem:[%s1717 + $0x92] sm:$0xff]
      %v2117 = vld [vmem:[%s1717 + $0x9a] sm:$0xff]
      %v2118 = vld [vmem:[%s1717 + $0xaa] sm:$0xff]
      %v2119 = vld [vmem:[%s1717 + $0xb2] sm:$0xff]
      %v2120 = vld [vmem:[%s1717 + $0xc2] sm:$0xff]
      %v2121 = vld [vmem:[%s1717 + $0xca] sm:$0xff]
      %v2122 = vld [vmem:[%s1717 + $0xda] sm:$0xff]
      %v2123 = vld [vmem:[%s1717 + $0xe2] sm:$0xff]
      %v2124 = vld [vmem:[%s1717 + $0xf2] sm:$0xff]
      %v2125 = vld [vmem:[%s1717 + $0xfa] sm:$0xff]
      %v2126 = vld [vmem:[%s1717 + $0x10a] sm:$0xff]
      %v2127 = vld [vmem:[%s1717 + $0x112] sm:$0xff]
      %v2128 = vld [vmem:[%s1717 + $0x122] sm:$0xff]
      %v2129 = vld [vmem:[%s1717 + $0x12a] sm:$0xff]
      %v2130 = vld [vmem:[%s1717 + $0x13a] sm:$0xff]
      %v2131 = vld [vmem:[%s1717 + $0x142] sm:$0xff]
      %v2132 = vld [vmem:[%s1717 + $0x152] sm:$0xff]
      %v2133 = vld [vmem:[%s1717 + $0x15a] sm:$0xff]
      %v2134 = vld [vmem:[%s1717 + $0x16a] sm:$0xff]
      %v2135 = vld [vmem:[%s1717 + $0x172] sm:$0xff]
      %2168 = vrot.lane.b32.xlu0 %v2104, 32
      %v2169 = vpop.permute.xlu0 %2168
      %2170 = vrot.lane.b32.xlu0 %v2105, 32
      %v2171 = vpop.permute.xlu0 %2170
      %2172 = vrot.lane.b32.xlu0 %v2106, 32
      %v2173 = vpop.permute.xlu0 %2172
      %2174 = vrot.lane.b32.xlu0 %v2107, 32
      %v2175 = vpop.permute.xlu0 %2174
      %2176 = vrot.lane.b32.xlu0 %v2108, 32
      %v2177 = vpop.permute.xlu0 %2176
      %2178 = vrot.lane.b32.xlu0 %v2109, 32
      %v2179 = vpop.permute.xlu0 %2178
      %2180 = vrot.lane.b32.xlu0 %v2110, 32
      %v2181 = vpop.permute.xlu0 %2180
      %2182 = vrot.lane.b32.xlu0 %v2111, 32
      %v2183 = vpop.permute.xlu0 %2182
      %2184 = vrot.lane.b32.xlu0 %v2112, 32
      %v2185 = vpop.permute.xlu0 %2184
      %2186 = vrot.lane.b32.xlu0 %v2113, 32
      %v2187 = vpop.permute.xlu0 %2186
      %2188 = vrot.lane.b32.xlu0 %v2114, 32
      %v2189 = vpop.permute.xlu0 %2188
      %2190 = vrot.lane.b32.xlu0 %v2115, 32
      %v2191 = vpop.permute.xlu0 %2190
      %2192 = vrot.lane.b32.xlu0 %v2116, 32
      %v2193 = vpop.permute.xlu0 %2192
      %2194 = vrot.lane.b32.xlu0 %v2117, 32
      %v2195 = vpop.permute.xlu0 %2194
      %2196 = vrot.lane.b32.xlu0 %v2118, 32
      %v2197 = vpop.permute.xlu0 %2196
      %2198 = vrot.lane.b32.xlu0 %v2119, 32
      %v2199 = vpop.permute.xlu0 %2198
      %2200 = vrot.lane.b32.xlu0 %v2120, 32
      %v2201 = vpop.permute.xlu0 %2200
      %2202 = vrot.lane.b32.xlu0 %v2121, 32
      %v2203 = vpop.permute.xlu0 %2202
      %2204 = vrot.lane.b32.xlu0 %v2122, 32
      %v2205 = vpop.permute.xlu0 %2204
      %2206 = vrot.lane.b32.xlu0 %v2123, 32
      %v2207 = vpop.permute.xlu0 %2206
      %2208 = vrot.lane.b32.xlu0 %v2124, 32
      %v2209 = vpop.permute.xlu0 %2208
      %2210 = vrot.lane.b32.xlu0 %v2125, 32
      %v2211 = vpop.permute.xlu0 %2210
      %2212 = vrot.lane.b32.xlu0 %v2126, 32
      %v2213 = vpop.permute.xlu0 %2212
      %2214 = vrot.lane.b32.xlu0 %v2127, 32
      %v2215 = vpop.permute.xlu0 %2214
      %2216 = vrot.lane.b32.xlu0 %v2128, 32
      %v2217 = vpop.permute.xlu0 %2216
      %2218 = vrot.lane.b32.xlu0 %v2129, 32
      %v2219 = vpop.permute.xlu0 %2218
      %2220 = vrot.lane.b32.xlu0 %v2130, 32
      %v2221 = vpop.permute.xlu0 %2220
      %2222 = vrot.lane.b32.xlu0 %v2131, 32
      %v2223 = vpop.permute.xlu0 %2222
      %2224 = vrot.lane.b32.xlu0 %v2132, 32
      %v2225 = vpop.permute.xlu0 %2224
      %2226 = vrot.lane.b32.xlu0 %v2133, 32
      %v2227 = vpop.permute.xlu0 %2226
      %2228 = vrot.lane.b32.xlu0 %v2134, 32
      %v2229 = vpop.permute.xlu0 %2228
      %2230 = vrot.lane.b32.xlu0 %v2135, 32
      %v2231 = vpop.permute.xlu0 %2230
      %vm2264 = vcmask 294144
      %2265 = vst.msk [vmem:[#allocation4] sm:$0xff] %vm2264, %v2169
      %2266 = vst.msk [vmem:[#allocation4 + $0x8] sm:$0xff] %vm2264, %v2171
      %2267 = vst.msk [vmem:[#allocation4 + $0x10] sm:$0xff] %vm2264, %v2173
      %2268 = vst.msk [vmem:[#allocation4 + $0x18] sm:$0xff] %vm2264, %v2175
      %2269 = vst.msk [vmem:[#allocation4 + $0x20] sm:$0xff] %vm2264, %v2177
      %2270 = vst.msk [vmem:[#allocation4 + $0x28] sm:$0xff] %vm2264, %v2179
      %2271 = vst.msk [vmem:[#allocation4 + $0x30] sm:$0xff] %vm2264, %v2181
      %2272 = vst.msk [vmem:[#allocation4 + $0x38] sm:$0xff] %vm2264, %v2183
      %2273 = vst.msk [vmem:[#allocation4 + $0x40] sm:$0xff] %vm2264, %v2185
      %2274 = vst.msk [vmem:[#allocation4 + $0x48] sm:$0xff] %vm2264, %v2187
      %2275 = vst.msk [vmem:[#allocation4 + $0x50] sm:$0xff] %vm2264, %v2189
      %2276 = vst.msk [vmem:[#allocation4 + $0x58] sm:$0xff] %vm2264, %v2191
      %2277 = vst.msk [vmem:[#allocation4 + $0x60] sm:$0xff] %vm2264, %v2193
      %2278 = vst.msk [vmem:[#allocation4 + $0x68] sm:$0xff] %vm2264, %v2195
      %2279 = vst.msk [vmem:[#allocation4 + $0x70] sm:$0xff] %vm2264, %v2197
      %2280 = vst.msk [vmem:[#allocation4 + $0x78] sm:$0xff] %vm2264, %v2199
      %2281 = vst.msk [vmem:[#allocation4 + $0x80] sm:$0xff] %vm2264, %v2201
      %2282 = vst.msk [vmem:[#allocation4 + $0x88] sm:$0xff] %vm2264, %v2203
      %2283 = vst.msk [vmem:[#allocation4 + $0x90] sm:$0xff] %vm2264, %v2205
      %2284 = vst.msk [vmem:[#allocation4 + $0x98] sm:$0xff] %vm2264, %v2207
      %2285 = vst.msk [vmem:[#allocation4 + $0xa0] sm:$0xff] %vm2264, %v2209
      %2286 = vst.msk [vmem:[#allocation4 + $0xa8] sm:$0xff] %vm2264, %v2211
      %2287 = vst.msk [vmem:[#allocation4 + $0xb0] sm:$0xff] %vm2264, %v2213
      %2288 = vst.msk [vmem:[#allocation4 + $0xb8] sm:$0xff] %vm2264, %v2215
      %2289 = vst.msk [vmem:[#allocation4 + $0xc0] sm:$0xff] %vm2264, %v2217
      %2290 = vst.msk [vmem:[#allocation4 + $0xc8] sm:$0xff] %vm2264, %v2219
      %2291 = vst.msk [vmem:[#allocation4 + $0xd0] sm:$0xff] %vm2264, %v2221
      %2292 = vst.msk [vmem:[#allocation4 + $0xd8] sm:$0xff] %vm2264, %v2223
      %2293 = vst.msk [vmem:[#allocation4 + $0xe0] sm:$0xff] %vm2264, %v2225
      %2294 = vst.msk [vmem:[#allocation4 + $0xe8] sm:$0xff] %vm2264, %v2227
      %2295 = vst.msk [vmem:[#allocation4 + $0xf0] sm:$0xff] %vm2264, %v2229
      %2296 = vst.msk [vmem:[#allocation4 + $0xf8] sm:$0xff] %vm2264, %v2231
      %v2297 = vld [vmem:[#allocation4] sm:$0xff]
      %v2298 = vld [vmem:[#allocation4 + $0x8] sm:$0xff]
      %v2299 = vld [vmem:[#allocation4 + $0x10] sm:$0xff]
      %v2300 = vld [vmem:[#allocation4 + $0x18] sm:$0xff]
      %v2301 = vld [vmem:[#allocation4 + $0x20] sm:$0xff]
      %v2302 = vld [vmem:[#allocation4 + $0x28] sm:$0xff]
      %v2303 = vld [vmem:[#allocation4 + $0x30] sm:$0xff]
      %v2304 = vld [vmem:[#allocation4 + $0x38] sm:$0xff]
      %v2305 = vld [vmem:[#allocation4 + $0x40] sm:$0xff]
      %v2306 = vld [vmem:[#allocation4 + $0x48] sm:$0xff]
      %v2307 = vld [vmem:[#allocation4 + $0x50] sm:$0xff]
      %v2308 = vld [vmem:[#allocation4 + $0x58] sm:$0xff]
      %v2309 = vld [vmem:[#allocation4 + $0x60] sm:$0xff]
      %v2310 = vld [vmem:[#allocation4 + $0x68] sm:$0xff]
      %v2311 = vld [vmem:[#allocation4 + $0x70] sm:$0xff]
      %v2312 = vld [vmem:[#allocation4 + $0x78] sm:$0xff]
      %v2313 = vld [vmem:[#allocation4 + $0x80] sm:$0xff]
      %v2314 = vld [vmem:[#allocation4 + $0x88] sm:$0xff]
      %v2315 = vld [vmem:[#allocation4 + $0x90] sm:$0xff]
      %v2316 = vld [vmem:[#allocation4 + $0x98] sm:$0xff]
      %v2317 = vld [vmem:[#allocation4 + $0xa0] sm:$0xff]
      %v2318 = vld [vmem:[#allocation4 + $0xa8] sm:$0xff]
      %v2319 = vld [vmem:[#allocation4 + $0xb0] sm:$0xff]
      %v2320 = vld [vmem:[#allocation4 + $0xb8] sm:$0xff]
      %v2321 = vld [vmem:[#allocation4 + $0xc0] sm:$0xff]
      %v2322 = vld [vmem:[#allocation4 + $0xc8] sm:$0xff]
      %v2323 = vld [vmem:[#allocation4 + $0xd0] sm:$0xff]
      %v2324 = vld [vmem:[#allocation4 + $0xd8] sm:$0xff]
      %v2325 = vld [vmem:[#allocation4 + $0xe0] sm:$0xff]
      %v2326 = vld [vmem:[#allocation4 + $0xe8] sm:$0xff]
      %v2327 = vld [vmem:[#allocation4 + $0xf0] sm:$0xff]
      %v2328 = vld [vmem:[#allocation4 + $0xf8] sm:$0xff]
      %v2329 = vld [vmem:[%s3] sm:$0xff]
      %v2330 = vld [vmem:[%s3 + $0x8] sm:$0xff]
      %v2331 = vld [vmem:[%s3 + $0x10] sm:$0xff]
      %v2332 = vld [vmem:[%s3 + $0x18] sm:$0xff]
      %v2333 = vld [vmem:[%s3 + $0x20] sm:$0xf]
      %vm2334 = vcmask 293888
      %v2336 = vsel %vm2334, %v2297, 0
      %v2339 = vsel %vm2334, %v2298, 0
      %v2342 = vsel %vm2334, %v2299, 0
      %v2345 = vsel %vm2334, %v2300, 0
      %v2348 = vsel %vm2334, %v2301, 0
      %v2351 = vsel %vm2334, %v2302, 0
      %v2354 = vsel %vm2334, %v2303, 0
      %v2357 = vsel %vm2334, %v2304, 0
      %v2360 = vsel %vm2334, %v2305, 0
      %v2363 = vsel %vm2334, %v2306, 0
      %v2366 = vsel %vm2334, %v2307, 0
      %v2369 = vsel %vm2334, %v2308, 0
      %v2372 = vsel %vm2334, %v2309, 0
      %v2375 = vsel %vm2334, %v2310, 0
      %v2378 = vsel %vm2334, %v2311, 0
      %v2381 = vsel %vm2334, %v2312, 0
      %v2384 = vsel %vm2334, %v2313, 0
      %v2387 = vsel %vm2334, %v2314, 0
      %v2390 = vsel %vm2334, %v2315, 0
      %v2393 = vsel %vm2334, %v2316, 0
      %v2396 = vsel %vm2334, %v2317, 0
      %v2399 = vsel %vm2334, %v2318, 0
      %v2402 = vsel %vm2334, %v2319, 0
      %v2405 = vsel %vm2334, %v2320, 0
      %v2408 = vsel %vm2334, %v2321, 0
      %v2411 = vsel %vm2334, %v2322, 0
      %v2414 = vsel %vm2334, %v2323, 0
      %v2417 = vsel %vm2334, %v2324, 0
      %v2420 = vsel %vm2334, %v2325, 0
      %v2423 = vsel %vm2334, %v2326, 0
      %v2426 = vsel %vm2334, %v2327, 0
      %v2429 = vsel %vm2334, %v2328, 0
      %vm2431 = vcmask 1043456
      %v2433 = vsel %vm2431, %v2333, 0
      %2435 = vmatprep.subr.mxu0 0.0
      %2436 = vmatpush1.msra.mxu0 %v2329
      %2437 = vmatprep.subr.mxu0 0.0
      %2438 = vmatpush1.msra.mxu0 %v2330
      %2439 = vmatprep.subr.mxu0 0.0
      %2440 = vmatpush1.msra.mxu0 %v2331
      %2441 = vmatprep.subr.mxu0 0.0
      %2442 = vmatpush1.msra.mxu0 %v2332
      %2443 = vmatprep.subr.mxu0 0.0
      %2444 = vmatpush1.msra.mxu0 %v2433
      %2445 = vmatprep.subr.mxu0 0.0
      %2446 = vmatpush1.msra.mxu0 0.0
      %2447 = vmatprep.subr.mxu0 0.0
      %2448 = vmatpush1.msra.mxu0 0.0
      %2449 = vmatprep.subr.mxu0 0.0
      %2450 = vmatpush1.msra.mxu0 0.0
      %2451 = vmatprep.subr.mxu0 0.0
      %2452 = vmatpush1.msra.mxu0 0.0
      %2453 = vmatprep.subr.mxu0 0.0
      %2454 = vmatpush1.msra.mxu0 0.0
      %2455 = vmatprep.subr.mxu0 0.0
      %2456 = vmatpush1.msra.mxu0 0.0
      %2457 = vmatprep.subr.mxu0 0.0
      %2458 = vmatpush1.msra.mxu0 0.0
      %2459 = vmatprep.subr.mxu0 0.0
      %2460 = vmatpush1.msra.mxu0 0.0
      %2461 = vmatprep.subr.mxu0 0.0
      %2462 = vmatpush1.msra.mxu0 0.0
      %2463 = vmatprep.subr.mxu0 0.0
      %2464 = vmatpush1.msra.mxu0 0.0
      %2465 = vmatprep.subr.mxu0 0.0
      %2466 = vmatpush1.msra.mxu0 0.0
      %2467 = vmatprep.subr.mxu0 0.0
      %2468 = vmatpush1.msra.mxu0 0.0
      %2469 = vmatprep.subr.mxu0 0.0
      %2470 = vmatpush1.msra.mxu0 0.0
      %2471 = vmatprep.subr.mxu0 0.0
      %2472 = vmatpush1.msra.mxu0 0.0
      %2473 = vmatprep.subr.mxu0 0.0
      %2474 = vmatpush1.msra.mxu0 0.0
      %2475 = vmatprep.subr.mxu0 0.0
      %2476 = vmatpush1.msra.mxu0 0.0
      %2477 = vmatprep.subr.mxu0 0.0
      %2478 = vmatpush1.msra.mxu0 0.0
      %2479 = vmatprep.subr.mxu0 0.0
      %2480 = vmatpush1.msra.mxu0 0.0
      %2481 = vmatprep.subr.mxu0 0.0
      %2482 = vmatpush1.msra.mxu0 0.0
      %2483 = vmatprep.subr.mxu0 0.0
      %2484 = vmatpush1.msra.mxu0 0.0
      %2485 = vmatprep.subr.mxu0 0.0
      %2486 = vmatpush1.msra.mxu0 0.0
      %2487 = vmatprep.subr.mxu0 0.0
      %2488 = vmatpush1.msra.mxu0 0.0
      %2489 = vmatprep.subr.mxu0 0.0
      %2490 = vmatpush1.msra.mxu0 0.0
      %2491 = vmatprep.subr.mxu0 0.0
      %2492 = vmatpush1.msra.mxu0 0.0
      %2493 = vmatprep.subr.mxu0 0.0
      %2494 = vmatpush1.msra.mxu0 0.0
      %2495 = vmatprep.subr.mxu0 0.0
      %2496 = vmatpush1.msra.mxu0 0.0
      %2497 = vmatprep.subr.mxu0 0.0
      %2498 = vmatpush1.msra.mxu0 0.0
      %2499 = vmatprep.mubr.f32.mxu0 0.0
      %2500 = vmatmul.mubr.f32.gmra.mrb[0].mxu0 %v2336
      %v2501 = vpop.f32.mrb[0].mxu0
      %v2502 = vadd.f32 0.0, %v2501
      %v2503 = vpop.f32.mrb[0].mxu0
      %2504 = vmatprep.mubr.f32.mxu0 0.0
      %2505 = vmatmul.mubr.f32.gmra.mrb[0].mxu0 %v2339
      %v2506 = vpop.f32.mrb[0].mxu0
      %v2507 = vadd.f32 0.0, %v2506
      %v2508 = vpop.f32.mrb[0].mxu0
      %2509 = vmatprep.mubr.f32.mxu0 0.0
      %2510 = vmatmul.mubr.f32.gmra.mrb[0].mxu0 %v2342
      %v2511 = vpop.f32.mrb[0].mxu0
      %v2512 = vadd.f32 0.0, %v2511
      %v2513 = vpop.f32.mrb[0].mxu0
      %2514 = vmatprep.mubr.f32.mxu0 0.0
      %2515 = vmatmul.mubr.f32.gmra.mrb[0].mxu0 %v2345
      %v2516 = vpop.f32.mrb[0].mxu0
      %v2517 = vadd.f32 0.0, %v2516
      %v2518 = vpop.f32.mrb[0].mxu0
      %2519 = vmatprep.mubr.f32.mxu0 0.0
      %2520 = vmatmul.mubr.f32.gmra.mrb[0].mxu0 %v2348
      %v2521 = vpop.f32.mrb[0].mxu0
      %v2522 = vadd.f32 0.0, %v2521
      %v2523 = vpop.f32.mrb[0].mxu0
      %2524 = vmatprep.mubr.f32.mxu0 0.0
      %2525 = vmatmul.mubr.f32.gmra.mrb[0].mxu0 %v2351
      %v2526 = vpop.f32.mrb[0].mxu0
      %v2527 = vadd.f32 0.0, %v2526
      %v2528 = vpop.f32.mrb[0].mxu0
      %2529 = vmatprep.mubr.f32.mxu0 0.0
      %2530 = vmatmul.mubr.f32.gmra.mrb[0].mxu0 %v2354
      %v2531 = vpop.f32.mrb[0].mxu0
      %v2532 = vadd.f32 0.0, %v2531
      %v2533 = vpop.f32.mrb[0].mxu0
      %2534 = vmatprep.mubr.f32.mxu0 0.0
      %2535 = vmatmul.mubr.f32.gmra.mrb[0].mxu0 %v2357
      %v2536 = vpop.f32.mrb[0].mxu0
      %v2537 = vadd.f32 0.0, %v2536
      %v2538 = vpop.f32.mrb[0].mxu0
      %2539 = vmatprep.mubr.f32.mxu0 0.0
      %2540 = vmatmul.mubr.f32.gmra.mrb[0].mxu0 %v2360
      %v2541 = vpop.f32.mrb[0].mxu0
      %v2542 = vadd.f32 0.0, %v2541
      %v2543 = vpop.f32.mrb[0].mxu0
      %2544 = vmatprep.mubr.f32.mxu0 0.0
      %2545 = vmatmul.mubr.f32.gmra.mrb[0].mxu0 %v2363
      %v2546 = vpop.f32.mrb[0].mxu0
      %v2547 = vadd.f32 0.0, %v2546
      %v2548 = vpop.f32.mrb[0].mxu0
      %2549 = vmatprep.mubr.f32.mxu0 0.0
      %2550 = vmatmul.mubr.f32.gmra.mrb[0].mxu0 %v2366
      %v2551 = vpop.f32.mrb[0].mxu0
      %v2552 = vadd.f32 0.0, %v2551
      %v2553 = vpop.f32.mrb[0].mxu0
      %2554 = vmatprep.mubr.f32.mxu0 0.0
      %2555 = vmatmul.mubr.f32.gmra.mrb[0].mxu0 %v2369
      %v2556 = vpop.f32.mrb[0].mxu0
      %v2557 = vadd.f32 0.0, %v2556
      %v2558 = vpop.f32.mrb[0].mxu0
      %2559 = vmatprep.mubr.f32.mxu0 0.0
      %2560 = vmatmul.mubr.f32.gmra.mrb[0].mxu0 %v2372
      %v2561 = vpop.f32.mrb[0].mxu0
      %v2562 = vadd.f32 0.0, %v2561
      %v2563 = vpop.f32.mrb[0].mxu0
      %2564 = vmatprep.mubr.f32.mxu0 0.0
      %2565 = vmatmul.mubr.f32.gmra.mrb[0].mxu0 %v2375
      %v2566 = vpop.f32.mrb[0].mxu0
      %v2567 = vadd.f32 0.0, %v2566
      %v2568 = vpop.f32.mrb[0].mxu0
      %2569 = vmatprep.mubr.f32.mxu0 0.0
      %2570 = vmatmul.mubr.f32.gmra.mrb[0].mxu0 %v2378
      %v2571 = vpop.f32.mrb[0].mxu0
      %v2572 = vadd.f32 0.0, %v2571
      %v2573 = vpop.f32.mrb[0].mxu0
      %2574 = vmatprep.mubr.f32.mxu0 0.0
      %2575 = vmatmul.mubr.f32.gmra.mrb[0].mxu0 %v2381
      %v2576 = vpop.f32.mrb[0].mxu0
      %v2577 = vadd.f32 0.0, %v2576
      %v2578 = vpop.f32.mrb[0].mxu0
      %2579 = vmatprep.mubr.f32.mxu0 0.0
      %2580 = vmatmul.mubr.f32.gmra.mrb[0].mxu0 %v2384
      %v2581 = vpop.f32.mrb[0].mxu0
      %v2582 = vadd.f32 0.0, %v2581
      %v2583 = vpop.f32.mrb[0].mxu0
      %2584 = vmatprep.mubr.f32.mxu0 0.0
      %2585 = vmatmul.mubr.f32.gmra.mrb[0].mxu0 %v2387
      %v2586 = vpop.f32.mrb[0].mxu0
      %v2587 = vadd.f32 0.0, %v2586
      %v2588 = vpop.f32.mrb[0].mxu0
      %2589 = vmatprep.mubr.f32.mxu0 0.0
      %2590 = vmatmul.mubr.f32.gmra.mrb[0].mxu0 %v2390
      %v2591 = vpop.f32.mrb[0].mxu0
      %v2592 = vadd.f32 0.0, %v2591
      %v2593 = vpop.f32.mrb[0].mxu0
      %2594 = vmatprep.mubr.f32.mxu0 0.0
      %2595 = vmatmul.mubr.f32.gmra.mrb[0].mxu0 %v2393
      %v2596 = vpop.f32.mrb[0].mxu0
      %v2597 = vadd.f32 0.0, %v2596
      %v2598 = vpop.f32.mrb[0].mxu0
      %2599 = vmatprep.mubr.f32.mxu0 0.0
      %2600 = vmatmul.mubr.f32.gmra.mrb[0].mxu0 %v2396
      %v2601 = vpop.f32.mrb[0].mxu0
      %v2602 = vadd.f32 0.0, %v2601
      %v2603 = vpop.f32.mrb[0].mxu0
      %2604 = vmatprep.mubr.f32.mxu0 0.0
      %2605 = vmatmul.mubr.f32.gmra.mrb[0].mxu0 %v2399
      %v2606 = vpop.f32.mrb[0].mxu0
      %v2607 = vadd.f32 0.0, %v2606
      %v2608 = vpop.f32.mrb[0].mxu0
      %2609 = vmatprep.mubr.f32.mxu0 0.0
      %2610 = vmatmul.mubr.f32.gmra.mrb[0].mxu0 %v2402
      %v2611 = vpop.f32.mrb[0].mxu0
      %v2612 = vadd.f32 0.0, %v2611
      %v2613 = vpop.f32.mrb[0].mxu0
      %2614 = vmatprep.mubr.f32.mxu0 0.0
      %2615 = vmatmul.mubr.f32.gmra.mrb[0].mxu0 %v2405
      %v2616 = vpop.f32.mrb[0].mxu0
      %v2617 = vadd.f32 0.0, %v2616
      %v2618 = vpop.f32.mrb[0].mxu0
      %2619 = vmatprep.mubr.f32.mxu0 0.0
      %2620 = vmatmul.mubr.f32.gmra.mrb[0].mxu0 %v2408
      %v2621 = vpop.f32.mrb[0].mxu0
      %v2622 = vadd.f32 0.0, %v2621
      %v2623 = vpop.f32.mrb[0].mxu0
      %2624 = vmatprep.mubr.f32.mxu0 0.0
      %2625 = vmatmul.mubr.f32.gmra.mrb[0].mxu0 %v2411
      %v2626 = vpop.f32.mrb[0].mxu0
      %v2627 = vadd.f32 0.0, %v2626
      %v2628 = vpop.f32.mrb[0].mxu0
      %2629 = vmatprep.mubr.f32.mxu0 0.0
      %2630 = vmatmul.mubr.f32.gmra.mrb[0].mxu0 %v2414
      %v2631 = vpop.f32.mrb[0].mxu0
      %v2632 = vadd.f32 0.0, %v2631
      %v2633 = vpop.f32.mrb[0].mxu0
      %2634 = vmatprep.mubr.f32.mxu0 0.0
      %2635 = vmatmul.mubr.f32.gmra.mrb[0].mxu0 %v2417
      %v2636 = vpop.f32.mrb[0].mxu0
      %v2637 = vadd.f32 0.0, %v2636
      %v2638 = vpop.f32.mrb[0].mxu0
      %2639 = vmatprep.mubr.f32.mxu0 0.0
      %2640 = vmatmul.mubr.f32.gmra.mrb[0].mxu0 %v2420
      %v2641 = vpop.f32.mrb[0].mxu0
      %v2642 = vadd.f32 0.0, %v2641
      %v2643 = vpop.f32.mrb[0].mxu0
      %2644 = vmatprep.mubr.f32.mxu0 0.0
      %2645 = vmatmul.mubr.f32.gmra.mrb[0].mxu0 %v2423
      %v2646 = vpop.f32.mrb[0].mxu0
      %v2647 = vadd.f32 0.0, %v2646
      %v2648 = vpop.f32.mrb[0].mxu0
      %2649 = vmatprep.mubr.f32.mxu0 0.0
      %2650 = vmatmul.mubr.f32.gmra.mrb[0].mxu0 %v2426
      %v2651 = vpop.f32.mrb[0].mxu0
      %v2652 = vadd.f32 0.0, %v2651
      %v2653 = vpop.f32.mrb[0].mxu0
      %2654 = vmatprep.mubr.f32.mxu0 0.0
      %2655 = vmatmul.mubr.f32.gmra.mrb[0].mxu0 %v2429
      %v2656 = vpop.f32.mrb[0].mxu0
      %v2657 = vadd.f32 0.0, %v2656
      %v2658 = vpop.f32.mrb[0].mxu0
      %2659 = vdwg.mxu0
      %v2660 = vld [vmem:[%s4] sm:$0x1]
      %v2662 = vlaneseq
      %v2663 = vshrl.u32 %v2662, 7
      %v2664 = vsub.s32 0, %v2663
      %v2665 = vrot.slane %v2660, %v2664
      %v2667 = vmul.f32 %v2502, %v2665
      %v2668 = vmul.f32 %v2507, %v2665
      %v2669 = vmul.f32 %v2512, %v2665
      %v2670 = vmul.f32 %v2517, %v2665
      %v2671 = vmul.f32 %v2522, %v2665
      %v2672 = vmul.f32 %v2527, %v2665
      %v2673 = vmul.f32 %v2532, %v2665
      %v2674 = vmul.f32 %v2537, %v2665
      %v2675 = vmul.f32 %v2542, %v2665
      %v2676 = vmul.f32 %v2547, %v2665
      %v2677 = vmul.f32 %v2552, %v2665
      %v2678 = vmul.f32 %v2557, %v2665
      %v2679 = vmul.f32 %v2562, %v2665
      %v2680 = vmul.f32 %v2567, %v2665
      %v2681 = vmul.f32 %v2572, %v2665
      %v2682 = vmul.f32 %v2577, %v2665
      %v2683 = vmul.f32 %v2582, %v2665
      %v2684 = vmul.f32 %v2587, %v2665
      %v2685 = vmul.f32 %v2592, %v2665
      %v2686 = vmul.f32 %v2597, %v2665
      %v2687 = vmul.f32 %v2602, %v2665
      %v2688 = vmul.f32 %v2607, %v2665
      %v2689 = vmul.f32 %v2612, %v2665
      %v2690 = vmul.f32 %v2617, %v2665
      %v2691 = vmul.f32 %v2622, %v2665
      %v2692 = vmul.f32 %v2627, %v2665
      %v2693 = vmul.f32 %v2632, %v2665
      %v2694 = vmul.f32 %v2637, %v2665
      %v2695 = vmul.f32 %v2642, %v2665
      %v2696 = vmul.f32 %v2647, %v2665
      %v2697 = vmul.f32 %v2652, %v2665
      %v2698 = vmul.f32 %v2657, %v2665
      %v2699 = vld [vmem:[%s5] sm:$0x1]
      %v2701 = vlaneseq
      %v2702 = vshrl.u32 %v2701, 7
      %v2703 = vsub.s32 0, %v2702
      %v2704 = vrot.slane %v2699, %v2703
      %v2706 = vadd.f32 %v2667, %v2704
      %v2707 = vadd.f32 %v2668, %v2704
      %v2708 = vadd.f32 %v2669, %v2704
      %v2709 = vadd.f32 %v2670, %v2704
      %v2710 = vadd.f32 %v2671, %v2704
      %v2711 = vadd.f32 %v2672, %v2704
      %v2712 = vadd.f32 %v2673, %v2704
      %v2713 = vadd.f32 %v2674, %v2704
      %v2714 = vadd.f32 %v2675, %v2704
      %v2715 = vadd.f32 %v2676, %v2704
      %v2716 = vadd.f32 %v2677, %v2704
      %v2717 = vadd.f32 %v2678, %v2704
      %v2718 = vadd.f32 %v2679, %v2704
      %v2719 = vadd.f32 %v2680, %v2704
      %v2720 = vadd.f32 %v2681, %v2704
      %v2721 = vadd.f32 %v2682, %v2704
      %v2722 = vadd.f32 %v2683, %v2704
      %v2723 = vadd.f32 %v2684, %v2704
      %v2724 = vadd.f32 %v2685, %v2704
      %v2725 = vadd.f32 %v2686, %v2704
      %v2726 = vadd.f32 %v2687, %v2704
      %v2727 = vadd.f32 %v2688, %v2704
      %v2728 = vadd.f32 %v2689, %v2704
      %v2729 = vadd.f32 %v2690, %v2704
      %v2730 = vadd.f32 %v2691, %v2704
      %v2731 = vadd.f32 %v2692, %v2704
      %v2732 = vadd.f32 %v2693, %v2704
      %v2733 = vadd.f32 %v2694, %v2704
      %v2734 = vadd.f32 %v2695, %v2704
      %v2735 = vadd.f32 %v2696, %v2704
      %v2736 = vadd.f32 %v2697, %v2704
      %v2737 = vadd.f32 %v2698, %v2704
      %v2738 = vmax.f32 %v2706, 0.0
      %v2739 = vmax.f32 %v2707, 0.0
      %v2740 = vmax.f32 %v2708, 0.0
      %v2741 = vmax.f32 %v2709, 0.0
      %v2742 = vmax.f32 %v2710, 0.0
      %v2743 = vmax.f32 %v2711, 0.0
      %v2744 = vmax.f32 %v2712, 0.0
      %v2745 = vmax.f32 %v2713, 0.0
      %v2746 = vmax.f32 %v2714, 0.0
      %v2747 = vmax.f32 %v2715, 0.0
      %v2748 = vmax.f32 %v2716, 0.0
      %v2749 = vmax.f32 %v2717, 0.0
      %v2750 = vmax.f32 %v2718, 0.0
      %v2751 = vmax.f32 %v2719, 0.0
      %v2752 = vmax.f32 %v2720, 0.0
      %v2753 = vmax.f32 %v2721, 0.0
      %v2754 = vmax.f32 %v2722, 0.0
      %v2755 = vmax.f32 %v2723, 0.0
      %v2756 = vmax.f32 %v2724, 0.0
      %v2757 = vmax.f32 %v2725, 0.0
      %v2758 = vmax.f32 %v2726, 0.0
      %v2759 = vmax.f32 %v2727, 0.0
      %v2760 = vmax.f32 %v2728, 0.0
      %v2761 = vmax.f32 %v2729, 0.0
      %v2762 = vmax.f32 %v2730, 0.0
      %v2763 = vmax.f32 %v2731, 0.0
      %v2764 = vmax.f32 %v2732, 0.0
      %v2765 = vmax.f32 %v2733, 0.0
      %v2766 = vmax.f32 %v2734, 0.0
      %v2767 = vmax.f32 %v2735, 0.0
      %v2768 = vmax.f32 %v2736, 0.0
      %v2769 = vmax.f32 %v2737, 0.0
      %vm2770 = vcmask 64512
      %2771 = vst.msk [vmem:[#allocation3] sm:$0xff] %vm2770, 0.0
      %2772 = vst.msk [vmem:[#allocation3 + $0x8] sm:$0xff] %vm2770, 0.0
      %2773 = vst.msk [vmem:[#allocation3 + $0x10] sm:$0xff] %vm2770, 0.0
      %s2774 = scalar_lea.vmem [#allocation3], 408
      %2775 = vst.msk [vmem:[%s2774] sm:$0xff] %vm2770, 0.0
      %2776 = vst.msk [vmem:[%s2774 + $0x8] sm:$0xff] %vm2770, 0.0
      %2777 = vst.msk [vmem:[%s2774 + $0x10] sm:$0xff] %vm2770, 0.0
      %vm2778 = vcmask 57344
      %2779 = vst.msk [vmem:[#allocation3] sm:$0x1] %vm2778, 0.0
      %2780 = vst.msk [vmem:[#allocation3 + $0x18] sm:$0x1] %vm2778, 0.0
      %2781 = vst.msk [vmem:[#allocation3 + $0x30] sm:$0x1] %vm2778, 0.0
      %2782 = vst.msk [vmem:[#allocation3 + $0x48] sm:$0x1] %vm2778, 0.0
      %2783 = vst.msk [vmem:[#allocation3 + $0x60] sm:$0x1] %vm2778, 0.0
      %2784 = vst.msk [vmem:[#allocation3 + $0x78] sm:$0x1] %vm2778, 0.0
      %2785 = vst.msk [vmem:[#allocation3 + $0x90] sm:$0x1] %vm2778, 0.0
      %2786 = vst.msk [vmem:[#allocation3 + $0xa8] sm:$0x1] %vm2778, 0.0
      %2787 = vst.msk [vmem:[#allocation3 + $0xc0] sm:$0x1] %vm2778, 0.0
      %2788 = vst.msk [vmem:[#allocation3 + $0xd8] sm:$0x1] %vm2778, 0.0
      %2789 = vst.msk [vmem:[#allocation3 + $0xf0] sm:$0x1] %vm2778, 0.0
      %2790 = vst.msk [vmem:[#allocation3 + $0x108] sm:$0x1] %vm2778, 0.0
      %2791 = vst.msk [vmem:[#allocation3 + $0x120] sm:$0x1] %vm2778, 0.0
      %2792 = vst.msk [vmem:[#allocation3 + $0x138] sm:$0x1] %vm2778, 0.0
      %2793 = vst.msk [vmem:[#allocation3 + $0x150] sm:$0x1] %vm2778, 0.0
      %2794 = vst.msk [vmem:[#allocation3 + $0x168] sm:$0x1] %vm2778, 0.0
      %2795 = vst.msk [vmem:[#allocation3 + $0x180] sm:$0x1] %vm2778, 0.0
      %2796 = vst.msk [vmem:[#allocation3 + $0x198] sm:$0x1] %vm2778, 0.0
      %2797 = vst.msk [vmem:[#allocation3 + $0x11] sm:$0x1] %vm2778, 0.0
      %2798 = vst.msk [vmem:[#allocation3 + $0x29] sm:$0x1] %vm2778, 0.0
      %2799 = vst.msk [vmem:[#allocation3 + $0x41] sm:$0x1] %vm2778, 0.0
      %2800 = vst.msk [vmem:[#allocation3 + $0x59] sm:$0x1] %vm2778, 0.0
      %2801 = vst.msk [vmem:[#allocation3 + $0x71] sm:$0x1] %vm2778, 0.0
      %2802 = vst.msk [vmem:[#allocation3 + $0x89] sm:$0x1] %vm2778, 0.0
      %2803 = vst.msk [vmem:[#allocation3 + $0xa1] sm:$0x1] %vm2778, 0.0
      %2804 = vst.msk [vmem:[#allocation3 + $0xb9] sm:$0x1] %vm2778, 0.0
      %2805 = vst.msk [vmem:[#allocation3 + $0xd1] sm:$0x1] %vm2778, 0.0
      %2806 = vst.msk [vmem:[#allocation3 + $0xe9] sm:$0x1] %vm2778, 0.0
      %2807 = vst.msk [vmem:[#allocation3 + $0x101] sm:$0x1] %vm2778, 0.0
      %2808 = vst.msk [vmem:[#allocation3 + $0x119] sm:$0x1] %vm2778, 0.0
      %2809 = vst.msk [vmem:[#allocation3 + $0x131] sm:$0x1] %vm2778, 0.0
      %2810 = vst.msk [vmem:[#allocation3 + $0x149] sm:$0x1] %vm2778, 0.0
      %2811 = vst.msk [vmem:[#allocation3 + $0x161] sm:$0x1] %vm2778, 0.0
      %2812 = vst.msk [vmem:[#allocation3 + $0x179] sm:$0x1] %vm2778, 0.0
      %2813 = vst.msk [vmem:[#allocation3 + $0x191] sm:$0x1] %vm2778, 0.0
      %2814 = vst.msk [vmem:[#allocation3 + $0x1a9] sm:$0x1] %vm2778, 0.0
      %s2815 = scalar_lea.vmem [#allocation3], 24
      %2816 = vst.msk [vmem:[%s2815 + $0x1] sm:$0xff] %vm2770, %v2738
      %2817 = vst.msk [vmem:[%s2815 + $0x9] sm:$0xff] %vm2770, %v2739
      %2818 = vst.msk [vmem:[%s2815 + $0x19] sm:$0xff] %vm2770, %v2740
      %2819 = vst.msk [vmem:[%s2815 + $0x21] sm:$0xff] %vm2770, %v2741
      %2820 = vst.msk [vmem:[%s2815 + $0x31] sm:$0xff] %vm2770, %v2742
      %2821 = vst.msk [vmem:[%s2815 + $0x39] sm:$0xff] %vm2770, %v2743
      %2822 = vst.msk [vmem:[%s2815 + $0x49] sm:$0xff] %vm2770, %v2744
      %2823 = vst.msk [vmem:[%s2815 + $0x51] sm:$0xff] %vm2770, %v2745
      %2824 = vst.msk [vmem:[%s2815 + $0x61] sm:$0xff] %vm2770, %v2746
      %2825 = vst.msk [vmem:[%s2815 + $0x69] sm:$0xff] %vm2770, %v2747
      %2826 = vst.msk [vmem:[%s2815 + $0x79] sm:$0xff] %vm2770, %v2748
      %2827 = vst.msk [vmem:[%s2815 + $0x81] sm:$0xff] %vm2770, %v2749
      %2828 = vst.msk [vmem:[%s2815 + $0x91] sm:$0xff] %vm2770, %v2750
      %2829 = vst.msk [vmem:[%s2815 + $0x99] sm:$0xff] %vm2770, %v2751
      %2830 = vst.msk [vmem:[%s2815 + $0xa9] sm:$0xff] %vm2770, %v2752
      %2831 = vst.msk [vmem:[%s2815 + $0xb1] sm:$0xff] %vm2770, %v2753
      %2832 = vst.msk [vmem:[%s2815 + $0xc1] sm:$0xff] %vm2770, %v2754
      %2833 = vst.msk [vmem:[%s2815 + $0xc9] sm:$0xff] %vm2770, %v2755
      %2834 = vst.msk [vmem:[%s2815 + $0xd9] sm:$0xff] %vm2770, %v2756
      %2835 = vst.msk [vmem:[%s2815 + $0xe1] sm:$0xff] %vm2770, %v2757
      %2836 = vst.msk [vmem:[%s2815 + $0xf1] sm:$0xff] %vm2770, %v2758
      %2837 = vst.msk [vmem:[%s2815 + $0xf9] sm:$0xff] %vm2770, %v2759
      %2838 = vst.msk [vmem:[%s2815 + $0x109] sm:$0xff] %vm2770, %v2760
      %2839 = vst.msk [vmem:[%s2815 + $0x111] sm:$0xff] %vm2770, %v2761
      %2840 = vst.msk [vmem:[%s2815 + $0x121] sm:$0xff] %vm2770, %v2762
      %2841 = vst.msk [vmem:[%s2815 + $0x129] sm:$0xff] %vm2770, %v2763
      %2842 = vst.msk [vmem:[%s2815 + $0x139] sm:$0xff] %vm2770, %v2764
      %2843 = vst.msk [vmem:[%s2815 + $0x141] sm:$0xff] %vm2770, %v2765
      %2844 = vst.msk [vmem:[%s2815 + $0x151] sm:$0xff] %vm2770, %v2766
      %2845 = vst.msk [vmem:[%s2815 + $0x159] sm:$0xff] %vm2770, %v2767
      %2846 = vst.msk [vmem:[%s2815 + $0x169] sm:$0xff] %vm2770, %v2768
      %2847 = vst.msk [vmem:[%s2815 + $0x171] sm:$0xff] %vm2770, %v2769
      %v2848 = vld [vmem:[#allocation3] sm:$0xff]
      %v2849 = vld [vmem:[#allocation3 + $0x8] sm:$0xff]
      %v2850 = vld [vmem:[#allocation3 + $0x18] sm:$0xff]
      %v2851 = vld [vmem:[#allocation3 + $0x20] sm:$0xff]
      %v2852 = vld [vmem:[#allocation3 + $0x30] sm:$0xff]
      %v2853 = vld [vmem:[#allocation3 + $0x38] sm:$0xff]
      %v2854 = vld [vmem:[#allocation3 + $0x48] sm:$0xff]
      %v2855 = vld [vmem:[#allocation3 + $0x50] sm:$0xff]
      %v2856 = vld [vmem:[#allocation3 + $0x60] sm:$0xff]
      %v2857 = vld [vmem:[#allocation3 + $0x68] sm:$0xff]
      %v2858 = vld [vmem:[#allocation3 + $0x78] sm:$0xff]
      %v2859 = vld [vmem:[#allocation3 + $0x80] sm:$0xff]
      %v2860 = vld [vmem:[#allocation3 + $0x90] sm:$0xff]
      %v2861 = vld [vmem:[#allocation3 + $0x98] sm:$0xff]
      %v2862 = vld [vmem:[#allocation3 + $0xa8] sm:$0xff]
      %v2863 = vld [vmem:[#allocation3 + $0xb0] sm:$0xff]
      %v2864 = vld [vmem:[#allocation3 + $0xc0] sm:$0xff]
      %v2865 = vld [vmem:[#allocation3 + $0xc8] sm:$0xff]
      %v2866 = vld [vmem:[#allocation3 + $0xd8] sm:$0xff]
      %v2867 = vld [vmem:[#allocation3 + $0xe0] sm:$0xff]
      %v2868 = vld [vmem:[#allocation3 + $0xf0] sm:$0xff]
      %v2869 = vld [vmem:[#allocation3 + $0xf8] sm:$0xff]
      %v2870 = vld [vmem:[#allocation3 + $0x108] sm:$0xff]
      %v2871 = vld [vmem:[#allocation3 + $0x110] sm:$0xff]
      %v2872 = vld [vmem:[#allocation3 + $0x120] sm:$0xff]
      %v2873 = vld [vmem:[#allocation3 + $0x128] sm:$0xff]
      %v2874 = vld [vmem:[#allocation3 + $0x138] sm:$0xff]
      %v2875 = vld [vmem:[#allocation3 + $0x140] sm:$0xff]
      %v2876 = vld [vmem:[#allocation3 + $0x150] sm:$0xff]
      %v2877 = vld [vmem:[#allocation3 + $0x158] sm:$0xff]
      %v2878 = vld [vmem:[#allocation3 + $0x168] sm:$0xff]
      %v2879 = vld [vmem:[#allocation3 + $0x170] sm:$0xff]
      %2880 = vst.msk [vmem:[#allocation4] sm:$0xff] %vm2770, %v2848
      %2881 = vst.msk [vmem:[#allocation4 + $0x8] sm:$0xff] %vm2770, %v2849
      %2882 = vst.msk [vmem:[#allocation4 + $0x10] sm:$0xff] %vm2770, %v2850
      %2883 = vst.msk [vmem:[#allocation4 + $0x18] sm:$0xff] %vm2770, %v2851
      %2884 = vst.msk [vmem:[#allocation4 + $0x20] sm:$0xff] %vm2770, %v2852
      %2885 = vst.msk [vmem:[#allocation4 + $0x28] sm:$0xff] %vm2770, %v2853
      %2886 = vst.msk [vmem:[#allocation4 + $0x30] sm:$0xff] %vm2770, %v2854
      %2887 = vst.msk [vmem:[#allocation4 + $0x38] sm:$0xff] %vm2770, %v2855
      %2888 = vst.msk [vmem:[#allocation4 + $0x40] sm:$0xff] %vm2770, %v2856
      %2889 = vst.msk [vmem:[#allocation4 + $0x48] sm:$0xff] %vm2770, %v2857
      %2890 = vst.msk [vmem:[#allocation4 + $0x50] sm:$0xff] %vm2770, %v2858
      %2891 = vst.msk [vmem:[#allocation4 + $0x58] sm:$0xff] %vm2770, %v2859
      %2892 = vst.msk [vmem:[#allocation4 + $0x60] sm:$0xff] %vm2770, %v2860
      %2893 = vst.msk [vmem:[#allocation4 + $0x68] sm:$0xff] %vm2770, %v2861
      %2894 = vst.msk [vmem:[#allocation4 + $0x70] sm:$0xff] %vm2770, %v2862
      %2895 = vst.msk [vmem:[#allocation4 + $0x78] sm:$0xff] %vm2770, %v2863
      %2896 = vst.msk [vmem:[#allocation4 + $0x80] sm:$0xff] %vm2770, %v2864
      %2897 = vst.msk [vmem:[#allocation4 + $0x88] sm:$0xff] %vm2770, %v2865
      %2898 = vst.msk [vmem:[#allocation4 + $0x90] sm:$0xff] %vm2770, %v2866
      %2899 = vst.msk [vmem:[#allocation4 + $0x98] sm:$0xff] %vm2770, %v2867
      %2900 = vst.msk [vmem:[#allocation4 + $0xa0] sm:$0xff] %vm2770, %v2868
      %2901 = vst.msk [vmem:[#allocation4 + $0xa8] sm:$0xff] %vm2770, %v2869
      %2902 = vst.msk [vmem:[#allocation4 + $0xb0] sm:$0xff] %vm2770, %v2870
      %2903 = vst.msk [vmem:[#allocation4 + $0xb8] sm:$0xff] %vm2770, %v2871
      %2904 = vst.msk [vmem:[#allocation4 + $0xc0] sm:$0xff] %vm2770, %v2872
      %2905 = vst.msk [vmem:[#allocation4 + $0xc8] sm:$0xff] %vm2770, %v2873
      %2906 = vst.msk [vmem:[#allocation4 + $0xd0] sm:$0xff] %vm2770, %v2874
      %2907 = vst.msk [vmem:[#allocation4 + $0xd8] sm:$0xff] %vm2770, %v2875
      %2908 = vst.msk [vmem:[#allocation4 + $0xe0] sm:$0xff] %vm2770, %v2876
      %2909 = vst.msk [vmem:[#allocation4 + $0xe8] sm:$0xff] %vm2770, %v2877
      %2910 = vst.msk [vmem:[#allocation4 + $0xf0] sm:$0xff] %vm2770, %v2878
      %2911 = vst.msk [vmem:[#allocation4 + $0xf8] sm:$0xff] %vm2770, %v2879
      %v2912 = vld [vmem:[#allocation3 + $0x1] sm:$0xff]
      %v2913 = vld [vmem:[#allocation3 + $0x9] sm:$0xff]
      %v2914 = vld [vmem:[#allocation3 + $0x19] sm:$0xff]
      %v2915 = vld [vmem:[#allocation3 + $0x21] sm:$0xff]
      %v2916 = vld [vmem:[#allocation3 + $0x31] sm:$0xff]
      %v2917 = vld [vmem:[#allocation3 + $0x39] sm:$0xff]
      %v2918 = vld [vmem:[#allocation3 + $0x49] sm:$0xff]
      %v2919 = vld [vmem:[#allocation3 + $0x51] sm:$0xff]
      %v2920 = vld [vmem:[#allocation3 + $0x61] sm:$0xff]
      %v2921 = vld [vmem:[#allocation3 + $0x69] sm:$0xff]
      %v2922 = vld [vmem:[#allocation3 + $0x79] sm:$0xff]
      %v2923 = vld [vmem:[#allocation3 + $0x81] sm:$0xff]
      %v2924 = vld [vmem:[#allocation3 + $0x91] sm:$0xff]
      %v2925 = vld [vmem:[#allocation3 + $0x99] sm:$0xff]
      %v2926 = vld [vmem:[#allocation3 + $0xa9] sm:$0xff]
      %v2927 = vld [vmem:[#allocation3 + $0xb1] sm:$0xff]
      %v2928 = vld [vmem:[#allocation3 + $0xc1] sm:$0xff]
      %v2929 = vld [vmem:[#allocation3 + $0xc9] sm:$0xff]
      %v2930 = vld [vmem:[#allocation3 + $0xd9] sm:$0xff]
      %v2931 = vld [vmem:[#allocation3 + $0xe1] sm:$0xff]
      %v2932 = vld [vmem:[#allocation3 + $0xf1] sm:$0xff]
      %v2933 = vld [vmem:[#allocation3 + $0xf9] sm:$0xff]
      %v2934 = vld [vmem:[#allocation3 + $0x109] sm:$0xff]
      %v2935 = vld [vmem:[#allocation3 + $0x111] sm:$0xff]
      %v2936 = vld [vmem:[#allocation3 + $0x121] sm:$0xff]
      %v2937 = vld [vmem:[#allocation3 + $0x129] sm:$0xff]
      %v2938 = vld [vmem:[#allocation3 + $0x139] sm:$0xff]
      %v2939 = vld [vmem:[#allocation3 + $0x141] sm:$0xff]
      %v2940 = vld [vmem:[#allocation3 + $0x151] sm:$0xff]
      %v2941 = vld [vmem:[#allocation3 + $0x159] sm:$0xff]
      %v2942 = vld [vmem:[#allocation3 + $0x169] sm:$0xff]
      %v2943 = vld [vmem:[#allocation3 + $0x171] sm:$0xff]
      %2976 = vrot.lane.b32.xlu0 %v2912, 8
      %v2977 = vpop.permute.xlu0 %2976
      %2978 = vrot.lane.b32.xlu0 %v2913, 8
      %v2979 = vpop.permute.xlu0 %2978
      %2980 = vrot.lane.b32.xlu0 %v2914, 8
      %v2981 = vpop.permute.xlu0 %2980
      %2982 = vrot.lane.b32.xlu0 %v2915, 8
      %v2983 = vpop.permute.xlu0 %2982
      %2984 = vrot.lane.b32.xlu0 %v2916, 8
      %v2985 = vpop.permute.xlu0 %2984
      %2986 = vrot.lane.b32.xlu0 %v2917, 8
      %v2987 = vpop.permute.xlu0 %2986
      %2988 = vrot.lane.b32.xlu0 %v2918, 8
      %v2989 = vpop.permute.xlu0 %2988
      %2990 = vrot.lane.b32.xlu0 %v2919, 8
      %v2991 = vpop.permute.xlu0 %2990
      %2992 = vrot.lane.b32.xlu0 %v2920, 8
      %v2993 = vpop.permute.xlu0 %2992
      %2994 = vrot.lane.b32.xlu0 %v2921, 8
      %v2995 = vpop.permute.xlu0 %2994
      %2996 = vrot.lane.b32.xlu0 %v2922, 8
      %v2997 = vpop.permute.xlu0 %2996
      %2998 = vrot.lane.b32.xlu0 %v2923, 8
      %v2999 = vpop.permute.xlu0 %2998
      %3000 = vrot.lane.b32.xlu0 %v2924, 8
      %v3001 = vpop.permute.xlu0 %3000
      %3002 = vrot.lane.b32.xlu0 %v2925, 8
      %v3003 = vpop.permute.xlu0 %3002
      %3004 = vrot.lane.b32.xlu0 %v2926, 8
      %v3005 = vpop.permute.xlu0 %3004
      %3006 = vrot.lane.b32.xlu0 %v2927, 8
      %v3007 = vpop.permute.xlu0 %3006
      %3008 = vrot.lane.b32.xlu0 %v2928, 8
      %v3009 = vpop.permute.xlu0 %3008
      %3010 = vrot.lane.b32.xlu0 %v2929, 8
      %v3011 = vpop.permute.xlu0 %3010
      %3012 = vrot.lane.b32.xlu0 %v2930, 8
      %v3013 = vpop.permute.xlu0 %3012
      %3014 = vrot.lane.b32.xlu0 %v2931, 8
      %v3015 = vpop.permute.xlu0 %3014
      %3016 = vrot.lane.b32.xlu0 %v2932, 8
      %v3017 = vpop.permute.xlu0 %3016
      %3018 = vrot.lane.b32.xlu0 %v2933, 8
      %v3019 = vpop.permute.xlu0 %3018
      %3020 = vrot.lane.b32.xlu0 %v2934, 8
      %v3021 = vpop.permute.xlu0 %3020
      %3022 = vrot.lane.b32.xlu0 %v2935, 8
      %v3023 = vpop.permute.xlu0 %3022
      %3024 = vrot.lane.b32.xlu0 %v2936, 8
      %v3025 = vpop.permute.xlu0 %3024
      %3026 = vrot.lane.b32.xlu0 %v2937, 8
      %v3027 = vpop.permute.xlu0 %3026
      %3028 = vrot.lane.b32.xlu0 %v2938, 8
      %v3029 = vpop.permute.xlu0 %3028
      %3030 = vrot.lane.b32.xlu0 %v2939, 8
      %v3031 = vpop.permute.xlu0 %3030
      %3032 = vrot.lane.b32.xlu0 %v2940, 8
      %v3033 = vpop.permute.xlu0 %3032
      %3034 = vrot.lane.b32.xlu0 %v2941, 8
      %v3035 = vpop.permute.xlu0 %3034
      %3036 = vrot.lane.b32.xlu0 %v2942, 8
      %v3037 = vpop.permute.xlu0 %3036
      %3038 = vrot.lane.b32.xlu0 %v2943, 8
      %v3039 = vpop.permute.xlu0 %3038
      %vm3072 = vcmask 130112
      %3073 = vst.msk [vmem:[#allocation4] sm:$0xff] %vm3072, %v2977
      %3074 = vst.msk [vmem:[#allocation4 + $0x8] sm:$0xff] %vm3072, %v2979
      %3075 = vst.msk [vmem:[#allocation4 + $0x10] sm:$0xff] %vm3072, %v2981
      %3076 = vst.msk [vmem:[#allocation4 + $0x18] sm:$0xff] %vm3072, %v2983
      %3077 = vst.msk [vmem:[#allocation4 + $0x20] sm:$0xff] %vm3072, %v2985
      %3078 = vst.msk [vmem:[#allocation4 + $0x28] sm:$0xff] %vm3072, %v2987
      %3079 = vst.msk [vmem:[#allocation4 + $0x30] sm:$0xff] %vm3072, %v2989
      %3080 = vst.msk [vmem:[#allocation4 + $0x38] sm:$0xff] %vm3072, %v2991
      %3081 = vst.msk [vmem:[#allocation4 + $0x40] sm:$0xff] %vm3072, %v2993
      %3082 = vst.msk [vmem:[#allocation4 + $0x48] sm:$0xff] %vm3072, %v2995
      %3083 = vst.msk [vmem:[#allocation4 + $0x50] sm:$0xff] %vm3072, %v2997
      %3084 = vst.msk [vmem:[#allocation4 + $0x58] sm:$0xff] %vm3072, %v2999
      %3085 = vst.msk [vmem:[#allocation4 + $0x60] sm:$0xff] %vm3072, %v3001
      %3086 = vst.msk [vmem:[#allocation4 + $0x68] sm:$0xff] %vm3072, %v3003
      %3087 = vst.msk [vmem:[#allocation4 + $0x70] sm:$0xff] %vm3072, %v3005
      %3088 = vst.msk [vmem:[#allocation4 + $0x78] sm:$0xff] %vm3072, %v3007
      %3089 = vst.msk [vmem:[#allocation4 + $0x80] sm:$0xff] %vm3072, %v3009
      %3090 = vst.msk [vmem:[#allocation4 + $0x88] sm:$0xff] %vm3072, %v3011
      %3091 = vst.msk [vmem:[#allocation4 + $0x90] sm:$0xff] %vm3072, %v3013
      %3092 = vst.msk [vmem:[#allocation4 + $0x98] sm:$0xff] %vm3072, %v3015
      %3093 = vst.msk [vmem:[#allocation4 + $0xa0] sm:$0xff] %vm3072, %v3017
      %3094 = vst.msk [vmem:[#allocation4 + $0xa8] sm:$0xff] %vm3072, %v3019
      %3095 = vst.msk [vmem:[#allocation4 + $0xb0] sm:$0xff] %vm3072, %v3021
      %3096 = vst.msk [vmem:[#allocation4 + $0xb8] sm:$0xff] %vm3072, %v3023
      %3097 = vst.msk [vmem:[#allocation4 + $0xc0] sm:$0xff] %vm3072, %v3025
      %3098 = vst.msk [vmem:[#allocation4 + $0xc8] sm:$0xff] %vm3072, %v3027
      %3099 = vst.msk [vmem:[#allocation4 + $0xd0] sm:$0xff] %vm3072, %v3029
      %3100 = vst.msk [vmem:[#allocation4 + $0xd8] sm:$0xff] %vm3072, %v3031
      %3101 = vst.msk [vmem:[#allocation4 + $0xe0] sm:$0xff] %vm3072, %v3033
      %3102 = vst.msk [vmem:[#allocation4 + $0xe8] sm:$0xff] %vm3072, %v3035
      %3103 = vst.msk [vmem:[#allocation4 + $0xf0] sm:$0xff] %vm3072, %v3037
      %3104 = vst.msk [vmem:[#allocation4 + $0xf8] sm:$0xff] %vm3072, %v3039
      %v3105 = vld [vmem:[#allocation3 + $0x2] sm:$0xff]
      %v3106 = vld [vmem:[#allocation3 + $0xa] sm:$0xff]
      %v3107 = vld [vmem:[#allocation3 + $0x1a] sm:$0xff]
      %v3108 = vld [vmem:[#allocation3 + $0x22] sm:$0xff]
      %v3109 = vld [vmem:[#allocation3 + $0x32] sm:$0xff]
      %v3110 = vld [vmem:[#allocation3 + $0x3a] sm:$0xff]
      %v3111 = vld [vmem:[#allocation3 + $0x4a] sm:$0xff]
      %v3112 = vld [vmem:[#allocation3 + $0x52] sm:$0xff]
      %v3113 = vld [vmem:[#allocation3 + $0x62] sm:$0xff]
      %v3114 = vld [vmem:[#allocation3 + $0x6a] sm:$0xff]
      %v3115 = vld [vmem:[#allocation3 + $0x7a] sm:$0xff]
      %v3116 = vld [vmem:[#allocation3 + $0x82] sm:$0xff]
      %v3117 = vld [vmem:[#allocation3 + $0x92] sm:$0xff]
      %v3118 = vld [vmem:[#allocation3 + $0x9a] sm:$0xff]
      %v3119 = vld [vmem:[#allocation3 + $0xaa] sm:$0xff]
      %v3120 = vld [vmem:[#allocation3 + $0xb2] sm:$0xff]
      %v3121 = vld [vmem:[#allocation3 + $0xc2] sm:$0xff]
      %v3122 = vld [vmem:[#allocation3 + $0xca] sm:$0xff]
      %v3123 = vld [vmem:[#allocation3 + $0xda] sm:$0xff]
      %v3124 = vld [vmem:[#allocation3 + $0xe2] sm:$0xff]
      %v3125 = vld [vmem:[#allocation3 + $0xf2] sm:$0xff]
      %v3126 = vld [vmem:[#allocation3 + $0xfa] sm:$0xff]
      %v3127 = vld [vmem:[#allocation3 + $0x10a] sm:$0xff]
      %v3128 = vld [vmem:[#allocation3 + $0x112] sm:$0xff]
      %v3129 = vld [vmem:[#allocation3 + $0x122] sm:$0xff]
      %v3130 = vld [vmem:[#allocation3 + $0x12a] sm:$0xff]
      %v3131 = vld [vmem:[#allocation3 + $0x13a] sm:$0xff]
      %v3132 = vld [vmem:[#allocation3 + $0x142] sm:$0xff]
      %v3133 = vld [vmem:[#allocation3 + $0x152] sm:$0xff]
      %v3134 = vld [vmem:[#allocation3 + $0x15a] sm:$0xff]
      %v3135 = vld [vmem:[#allocation3 + $0x16a] sm:$0xff]
      %v3136 = vld [vmem:[#allocation3 + $0x172] sm:$0xff]
      %3169 = vrot.lane.b32.xlu0 %v3105, 16
      %v3170 = vpop.permute.xlu0 %3169
      %3171 = vrot.lane.b32.xlu0 %v3106, 16
      %v3172 = vpop.permute.xlu0 %3171
      %3173 = vrot.lane.b32.xlu0 %v3107, 16
      %v3174 = vpop.permute.xlu0 %3173
      %3175 = vrot.lane.b32.xlu0 %v3108, 16
      %v3176 = vpop.permute.xlu0 %3175
      %3177 = vrot.lane.b32.xlu0 %v3109, 16
      %v3178 = vpop.permute.xlu0 %3177
      %3179 = vrot.lane.b32.xlu0 %v3110, 16
      %v3180 = vpop.permute.xlu0 %3179
      %3181 = vrot.lane.b32.xlu0 %v3111, 16
      %v3182 = vpop.permute.xlu0 %3181
      %3183 = vrot.lane.b32.xlu0 %v3112, 16
      %v3184 = vpop.permute.xlu0 %3183
      %3185 = vrot.lane.b32.xlu0 %v3113, 16
      %v3186 = vpop.permute.xlu0 %3185
      %3187 = vrot.lane.b32.xlu0 %v3114, 16
      %v3188 = vpop.permute.xlu0 %3187
      %3189 = vrot.lane.b32.xlu0 %v3115, 16
      %v3190 = vpop.permute.xlu0 %3189
      %3191 = vrot.lane.b32.xlu0 %v3116, 16
      %v3192 = vpop.permute.xlu0 %3191
      %3193 = vrot.lane.b32.xlu0 %v3117, 16
      %v3194 = vpop.permute.xlu0 %3193
      %3195 = vrot.lane.b32.xlu0 %v3118, 16
      %v3196 = vpop.permute.xlu0 %3195
      %3197 = vrot.lane.b32.xlu0 %v3119, 16
      %v3198 = vpop.permute.xlu0 %3197
      %3199 = vrot.lane.b32.xlu0 %v3120, 16
      %v3200 = vpop.permute.xlu0 %3199
      %3201 = vrot.lane.b32.xlu0 %v3121, 16
      %v3202 = vpop.permute.xlu0 %3201
      %3203 = vrot.lane.b32.xlu0 %v3122, 16
      %v3204 = vpop.permute.xlu0 %3203
      %3205 = vrot.lane.b32.xlu0 %v3123, 16
      %v3206 = vpop.permute.xlu0 %3205
      %3207 = vrot.lane.b32.xlu0 %v3124, 16
      %v3208 = vpop.permute.xlu0 %3207
      %3209 = vrot.lane.b32.xlu0 %v3125, 16
      %v3210 = vpop.permute.xlu0 %3209
      %3211 = vrot.lane.b32.xlu0 %v3126, 16
      %v3212 = vpop.permute.xlu0 %3211
      %3213 = vrot.lane.b32.xlu0 %v3127, 16
      %v3214 = vpop.permute.xlu0 %3213
      %3215 = vrot.lane.b32.xlu0 %v3128, 16
      %v3216 = vpop.permute.xlu0 %3215
      %3217 = vrot.lane.b32.xlu0 %v3129, 16
      %v3218 = vpop.permute.xlu0 %3217
      %3219 = vrot.lane.b32.xlu0 %v3130, 16
      %v3220 = vpop.permute.xlu0 %3219
      %3221 = vrot.lane.b32.xlu0 %v3131, 16
      %v3222 = vpop.permute.xlu0 %3221
      %3223 = vrot.lane.b32.xlu0 %v3132, 16
      %v3224 = vpop.permute.xlu0 %3223
      %3225 = vrot.lane.b32.xlu0 %v3133, 16
      %v3226 = vpop.permute.xlu0 %3225
      %3227 = vrot.lane.b32.xlu0 %v3134, 16
      %v3228 = vpop.permute.xlu0 %3227
      %3229 = vrot.lane.b32.xlu0 %v3135, 16
      %v3230 = vpop.permute.xlu0 %3229
      %3231 = vrot.lane.b32.xlu0 %v3136, 16
      %v3232 = vpop.permute.xlu0 %3231
      %vm3265 = vcmask 195712
      %3266 = vst.msk [vmem:[#allocation4] sm:$0xff] %vm3265, %v3170
      %3267 = vst.msk [vmem:[#allocation4 + $0x8] sm:$0xff] %vm3265, %v3172
      %3268 = vst.msk [vmem:[#allocation4 + $0x10] sm:$0xff] %vm3265, %v3174
      %3269 = vst.msk [vmem:[#allocation4 + $0x18] sm:$0xff] %vm3265, %v3176
      %3270 = vst.msk [vmem:[#allocation4 + $0x20] sm:$0xff] %vm3265, %v3178
      %3271 = vst.msk [vmem:[#allocation4 + $0x28] sm:$0xff] %vm3265, %v3180
      %3272 = vst.msk [vmem:[#allocation4 + $0x30] sm:$0xff] %vm3265, %v3182
      %3273 = vst.msk [vmem:[#allocation4 + $0x38] sm:$0xff] %vm3265, %v3184
      %3274 = vst.msk [vmem:[#allocation4 + $0x40] sm:$0xff] %vm3265, %v3186
      %3275 = vst.msk [vmem:[#allocation4 + $0x48] sm:$0xff] %vm3265, %v3188
      %3276 = vst.msk [vmem:[#allocation4 + $0x50] sm:$0xff] %vm3265, %v3190
      %3277 = vst.msk [vmem:[#allocation4 + $0x58] sm:$0xff] %vm3265, %v3192
      %3278 = vst.msk [vmem:[#allocation4 + $0x60] sm:$0xff] %vm3265, %v3194
      %3279 = vst.msk [vmem:[#allocation4 + $0x68] sm:$0xff] %vm3265, %v3196
      %3280 = vst.msk [vmem:[#allocation4 + $0x70] sm:$0xff] %vm3265, %v3198
      %3281 = vst.msk [vmem:[#allocation4 + $0x78] sm:$0xff] %vm3265, %v3200
      %3282 = vst.msk [vmem:[#allocation4 + $0x80] sm:$0xff] %vm3265, %v3202
      %3283 = vst.msk [vmem:[#allocation4 + $0x88] sm:$0xff] %vm3265, %v3204
      %3284 = vst.msk [vmem:[#allocation4 + $0x90] sm:$0xff] %vm3265, %v3206
      %3285 = vst.msk [vmem:[#allocation4 + $0x98] sm:$0xff] %vm3265, %v3208
      %3286 = vst.msk [vmem:[#allocation4 + $0xa0] sm:$0xff] %vm3265, %v3210
      %3287 = vst.msk [vmem:[#allocation4 + $0xa8] sm:$0xff] %vm3265, %v3212
      %3288 = vst.msk [vmem:[#allocation4 + $0xb0] sm:$0xff] %vm3265, %v3214
      %3289 = vst.msk [vmem:[#allocation4 + $0xb8] sm:$0xff] %vm3265, %v3216
      %3290 = vst.msk [vmem:[#allocation4 + $0xc0] sm:$0xff] %vm3265, %v3218
      %3291 = vst.msk [vmem:[#allocation4 + $0xc8] sm:$0xff] %vm3265, %v3220
      %3292 = vst.msk [vmem:[#allocation4 + $0xd0] sm:$0xff] %vm3265, %v3222
      %3293 = vst.msk [vmem:[#allocation4 + $0xd8] sm:$0xff] %vm3265, %v3224
      %3294 = vst.msk [vmem:[#allocation4 + $0xe0] sm:$0xff] %vm3265, %v3226
      %3295 = vst.msk [vmem:[#allocation4 + $0xe8] sm:$0xff] %vm3265, %v3228
      %3296 = vst.msk [vmem:[#allocation4 + $0xf0] sm:$0xff] %vm3265, %v3230
      %3297 = vst.msk [vmem:[#allocation4 + $0xf8] sm:$0xff] %vm3265, %v3232
      %v3298 = vld [vmem:[%s2815] sm:$0xff]
      %v3299 = vld [vmem:[%s2815 + $0x8] sm:$0xff]
      %v3300 = vld [vmem:[%s2815 + $0x18] sm:$0xff]
      %v3301 = vld [vmem:[%s2815 + $0x20] sm:$0xff]
      %v3302 = vld [vmem:[%s2815 + $0x30] sm:$0xff]
      %v3303 = vld [vmem:[%s2815 + $0x38] sm:$0xff]
      %v3304 = vld [vmem:[%s2815 + $0x48] sm:$0xff]
      %v3305 = vld [vmem:[%s2815 + $0x50] sm:$0xff]
      %v3306 = vld [vmem:[%s2815 + $0x60] sm:$0xff]
      %v3307 = vld [vmem:[%s2815 + $0x68] sm:$0xff]
      %v3308 = vld [vmem:[%s2815 + $0x78] sm:$0xff]
      %v3309 = vld [vmem:[%s2815 + $0x80] sm:$0xff]
      %v3310 = vld [vmem:[%s2815 + $0x90] sm:$0xff]
      %v3311 = vld [vmem:[%s2815 + $0x98] sm:$0xff]
      %v3312 = vld [vmem:[%s2815 + $0xa8] sm:$0xff]
      %v3313 = vld [vmem:[%s2815 + $0xb0] sm:$0xff]
      %v3314 = vld [vmem:[%s2815 + $0xc0] sm:$0xff]
      %v3315 = vld [vmem:[%s2815 + $0xc8] sm:$0xff]
      %v3316 = vld [vmem:[%s2815 + $0xd8] sm:$0xff]
      %v3317 = vld [vmem:[%s2815 + $0xe0] sm:$0xff]
      %v3318 = vld [vmem:[%s2815 + $0xf0] sm:$0xff]
      %v3319 = vld [vmem:[%s2815 + $0xf8] sm:$0xff]
      %v3320 = vld [vmem:[%s2815 + $0x108] sm:$0xff]
      %v3321 = vld [vmem:[%s2815 + $0x110] sm:$0xff]
      %v3322 = vld [vmem:[%s2815 + $0x120] sm:$0xff]
      %v3323 = vld [vmem:[%s2815 + $0x128] sm:$0xff]
      %v3324 = vld [vmem:[%s2815 + $0x138] sm:$0xff]
      %v3325 = vld [vmem:[%s2815 + $0x140] sm:$0xff]
      %v3326 = vld [vmem:[%s2815 + $0x150] sm:$0xff]
      %v3327 = vld [vmem:[%s2815 + $0x158] sm:$0xff]
      %v3328 = vld [vmem:[%s2815 + $0x168] sm:$0xff]
      %v3329 = vld [vmem:[%s2815 + $0x170] sm:$0xff]
      %3362 = vrot.lane.b32.xlu0 %v3298, 24
      %v3363 = vpop.permute.xlu0 %3362
      %3364 = vrot.lane.b32.xlu0 %v3299, 24
      %v3365 = vpop.permute.xlu0 %3364
      %3366 = vrot.lane.b32.xlu0 %v3300, 24
      %v3367 = vpop.permute.xlu0 %3366
      %3368 = vrot.lane.b32.xlu0 %v3301, 24
      %v3369 = vpop.permute.xlu0 %3368
      %3370 = vrot.lane.b32.xlu0 %v3302, 24
      %v3371 = vpop.permute.xlu0 %3370
      %3372 = vrot.lane.b32.xlu0 %v3303, 24
      %v3373 = vpop.permute.xlu0 %3372
      %3374 = vrot.lane.b32.xlu0 %v3304, 24
      %v3375 = vpop.permute.xlu0 %3374
      %3376 = vrot.lane.b32.xlu0 %v3305, 24
      %v3377 = vpop.permute.xlu0 %3376
      %3378 = vrot.lane.b32.xlu0 %v3306, 24
      %v3379 = vpop.permute.xlu0 %3378
      %3380 = vrot.lane.b32.xlu0 %v3307, 24
      %v3381 = vpop.permute.xlu0 %3380
      %3382 = vrot.lane.b32.xlu0 %v3308, 24
      %v3383 = vpop.permute.xlu0 %3382
      %3384 = vrot.lane.b32.xlu0 %v3309, 24
      %v3385 = vpop.permute.xlu0 %3384
      %3386 = vrot.lane.b32.xlu0 %v3310, 24
      %v3387 = vpop.permute.xlu0 %3386
      %3388 = vrot.lane.b32.xlu0 %v3311, 24
      %v3389 = vpop.permute.xlu0 %3388
      %3390 = vrot.lane.b32.xlu0 %v3312, 24
      %v3391 = vpop.permute.xlu0 %3390
      %3392 = vrot.lane.b32.xlu0 %v3313, 24
      %v3393 = vpop.permute.xlu0 %3392
      %3394 = vrot.lane.b32.xlu0 %v3314, 24
      %v3395 = vpop.permute.xlu0 %3394
      %3396 = vrot.lane.b32.xlu0 %v3315, 24
      %v3397 = vpop.permute.xlu0 %3396
      %3398 = vrot.lane.b32.xlu0 %v3316, 24
      %v3399 = vpop.permute.xlu0 %3398
      %3400 = vrot.lane.b32.xlu0 %v3317, 24
      %v3401 = vpop.permute.xlu0 %3400
      %3402 = vrot.lane.b32.xlu0 %v3318, 24
      %v3403 = vpop.permute.xlu0 %3402
      %3404 = vrot.lane.b32.xlu0 %v3319, 24
      %v3405 = vpop.permute.xlu0 %3404
      %3406 = vrot.lane.b32.xlu0 %v3320, 24
      %v3407 = vpop.permute.xlu0 %3406
      %3408 = vrot.lane.b32.xlu0 %v3321, 24
      %v3409 = vpop.permute.xlu0 %3408
      %3410 = vrot.lane.b32.xlu0 %v3322, 24
      %v3411 = vpop.permute.xlu0 %3410
      %3412 = vrot.lane.b32.xlu0 %v3323, 24
      %v3413 = vpop.permute.xlu0 %3412
      %3414 = vrot.lane.b32.xlu0 %v3324, 24
      %v3415 = vpop.permute.xlu0 %3414
      %3416 = vrot.lane.b32.xlu0 %v3325, 24
      %v3417 = vpop.permute.xlu0 %3416
      %3418 = vrot.lane.b32.xlu0 %v3326, 24
      %v3419 = vpop.permute.xlu0 %3418
      %3420 = vrot.lane.b32.xlu0 %v3327, 24
      %v3421 = vpop.permute.xlu0 %3420
      %3422 = vrot.lane.b32.xlu0 %v3328, 24
      %v3423 = vpop.permute.xlu0 %3422
      %3424 = vrot.lane.b32.xlu0 %v3329, 24
      %v3425 = vpop.permute.xlu0 %3424
      %vm3458 = vcmask 261312
      %3459 = vst.msk [vmem:[#allocation4] sm:$0xff] %vm3458, %v3363
      %3460 = vst.msk [vmem:[#allocation4 + $0x8] sm:$0xff] %vm3458, %v3365
      %3461 = vst.msk [vmem:[#allocation4 + $0x10] sm:$0xff] %vm3458, %v3367
      %3462 = vst.msk [vmem:[#allocation4 + $0x18] sm:$0xff] %vm3458, %v3369
      %3463 = vst.msk [vmem:[#allocation4 + $0x20] sm:$0xff] %vm3458, %v3371
      %3464 = vst.msk [vmem:[#allocation4 + $0x28] sm:$0xff] %vm3458, %v3373
      %3465 = vst.msk [vmem:[#allocation4 + $0x30] sm:$0xff] %vm3458, %v3375
      %3466 = vst.msk [vmem:[#allocation4 + $0x38] sm:$0xff] %vm3458, %v3377
      %3467 = vst.msk [vmem:[#allocation4 + $0x40] sm:$0xff] %vm3458, %v3379
      %3468 = vst.msk [vmem:[#allocation4 + $0x48] sm:$0xff] %vm3458, %v3381
      %3469 = vst.msk [vmem:[#allocation4 + $0x50] sm:$0xff] %vm3458, %v3383
      %3470 = vst.msk [vmem:[#allocation4 + $0x58] sm:$0xff] %vm3458, %v3385
      %3471 = vst.msk [vmem:[#allocation4 + $0x60] sm:$0xff] %vm3458, %v3387
      %3472 = vst.msk [vmem:[#allocation4 + $0x68] sm:$0xff] %vm3458, %v3389
      %3473 = vst.msk [vmem:[#allocation4 + $0x70] sm:$0xff] %vm3458, %v3391
      %3474 = vst.msk [vmem:[#allocation4 + $0x78] sm:$0xff] %vm3458, %v3393
      %3475 = vst.msk [vmem:[#allocation4 + $0x80] sm:$0xff] %vm3458, %v3395
      %3476 = vst.msk [vmem:[#allocation4 + $0x88] sm:$0xff] %vm3458, %v3397
      %3477 = vst.msk [vmem:[#allocation4 + $0x90] sm:$0xff] %vm3458, %v3399
      %3478 = vst.msk [vmem:[#allocation4 + $0x98] sm:$0xff] %vm3458, %v3401
      %3479 = vst.msk [vmem:[#allocation4 + $0xa0] sm:$0xff] %vm3458, %v3403
      %3480 = vst.msk [vmem:[#allocation4 + $0xa8] sm:$0xff] %vm3458, %v3405
      %3481 = vst.msk [vmem:[#allocation4 + $0xb0] sm:$0xff] %vm3458, %v3407
      %3482 = vst.msk [vmem:[#allocation4 + $0xb8] sm:$0xff] %vm3458, %v3409
      %3483 = vst.msk [vmem:[#allocation4 + $0xc0] sm:$0xff] %vm3458, %v3411
      %3484 = vst.msk [vmem:[#allocation4 + $0xc8] sm:$0xff] %vm3458, %v3413
      %3485 = vst.msk [vmem:[#allocation4 + $0xd0] sm:$0xff] %vm3458, %v3415
      %3486 = vst.msk [vmem:[#allocation4 + $0xd8] sm:$0xff] %vm3458, %v3417
      %3487 = vst.msk [vmem:[#allocation4 + $0xe0] sm:$0xff] %vm3458, %v3419
      %3488 = vst.msk [vmem:[#allocation4 + $0xe8] sm:$0xff] %vm3458, %v3421
      %3489 = vst.msk [vmem:[#allocation4 + $0xf0] sm:$0xff] %vm3458, %v3423
      %3490 = vst.msk [vmem:[#allocation4 + $0xf8] sm:$0xff] %vm3458, %v3425
      %v3491 = vld [vmem:[%s2815 + $0x1] sm:$0xff]
      %v3492 = vld [vmem:[%s2815 + $0x9] sm:$0xff]
      %v3493 = vld [vmem:[%s2815 + $0x19] sm:$0xff]
      %v3494 = vld [vmem:[%s2815 + $0x21] sm:$0xff]
      %v3495 = vld [vmem:[%s2815 + $0x31] sm:$0xff]
      %v3496 = vld [vmem:[%s2815 + $0x39] sm:$0xff]
      %v3497 = vld [vmem:[%s2815 + $0x49] sm:$0xff]
      %v3498 = vld [vmem:[%s2815 + $0x51] sm:$0xff]
      %v3499 = vld [vmem:[%s2815 + $0x61] sm:$0xff]
      %v3500 = vld [vmem:[%s2815 + $0x69] sm:$0xff]
      %v3501 = vld [vmem:[%s2815 + $0x79] sm:$0xff]
      %v3502 = vld [vmem:[%s2815 + $0x81] sm:$0xff]
      %v3503 = vld [vmem:[%s2815 + $0x91] sm:$0xff]
      %v3504 = vld [vmem:[%s2815 + $0x99] sm:$0xff]
      %v3505 = vld [vmem:[%s2815 + $0xa9] sm:$0xff]
      %v3506 = vld [vmem:[%s2815 + $0xb1] sm:$0xff]
      %v3507 = vld [vmem:[%s2815 + $0xc1] sm:$0xff]
      %v3508 = vld [vmem:[%s2815 + $0xc9] sm:$0xff]
      %v3509 = vld [vmem:[%s2815 + $0xd9] sm:$0xff]
      %v3510 = vld [vmem:[%s2815 + $0xe1] sm:$0xff]
      %v3511 = vld [vmem:[%s2815 + $0xf1] sm:$0xff]
      %v3512 = vld [vmem:[%s2815 + $0xf9] sm:$0xff]
      %v3513 = vld [vmem:[%s2815 + $0x109] sm:$0xff]
      %v3514 = vld [vmem:[%s2815 + $0x111] sm:$0xff]
      %v3515 = vld [vmem:[%s2815 + $0x121] sm:$0xff]
      %v3516 = vld [vmem:[%s2815 + $0x129] sm:$0xff]
      %v3517 = vld [vmem:[%s2815 + $0x139] sm:$0xff]
      %v3518 = vld [vmem:[%s2815 + $0x141] sm:$0xff]
      %v3519 = vld [vmem:[%s2815 + $0x151] sm:$0xff]
      %v3520 = vld [vmem:[%s2815 + $0x159] sm:$0xff]
      %v3521 = vld [vmem:[%s2815 + $0x169] sm:$0xff]
      %v3522 = vld [vmem:[%s2815 + $0x171] sm:$0xff]
      %3555 = vrot.lane.b32.xlu0 %v3491, 32
      %v3556 = vpop.permute.xlu0 %3555
      %3557 = vrot.lane.b32.xlu0 %v3492, 32
      %v3558 = vpop.permute.xlu0 %3557
      %3559 = vrot.lane.b32.xlu0 %v3493, 32
      %v3560 = vpop.permute.xlu0 %3559
      %3561 = vrot.lane.b32.xlu0 %v3494, 32
      %v3562 = vpop.permute.xlu0 %3561
      %3563 = vrot.lane.b32.xlu0 %v3495, 32
      %v3564 = vpop.permute.xlu0 %3563
      %3565 = vrot.lane.b32.xlu0 %v3496, 32
      %v3566 = vpop.permute.xlu0 %3565
      %3567 = vrot.lane.b32.xlu0 %v3497, 32
      %v3568 = vpop.permute.xlu0 %3567
      %3569 = vrot.lane.b32.xlu0 %v3498, 32
      %v3570 = vpop.permute.xlu0 %3569
      %3571 = vrot.lane.b32.xlu0 %v3499, 32
      %v3572 = vpop.permute.xlu0 %3571
      %3573 = vrot.lane.b32.xlu0 %v3500, 32
      %v3574 = vpop.permute.xlu0 %3573
      %3575 = vrot.lane.b32.xlu0 %v3501, 32
      %v3576 = vpop.permute.xlu0 %3575
      %3577 = vrot.lane.b32.xlu0 %v3502, 32
      %v3578 = vpop.permute.xlu0 %3577
      %3579 = vrot.lane.b32.xlu0 %v3503, 32
      %v3580 = vpop.permute.xlu0 %3579
      %3581 = vrot.lane.b32.xlu0 %v3504, 32
      %v3582 = vpop.permute.xlu0 %3581
      %3583 = vrot.lane.b32.xlu0 %v3505, 32
      %v3584 = vpop.permute.xlu0 %3583
      %3585 = vrot.lane.b32.xlu0 %v3506, 32
      %v3586 = vpop.permute.xlu0 %3585
      %3587 = vrot.lane.b32.xlu0 %v3507, 32
      %v3588 = vpop.permute.xlu0 %3587
      %3589 = vrot.lane.b32.xlu0 %v3508, 32
      %v3590 = vpop.permute.xlu0 %3589
      %3591 = vrot.lane.b32.xlu0 %v3509, 32
      %v3592 = vpop.permute.xlu0 %3591
      %3593 = vrot.lane.b32.xlu0 %v3510, 32
      %v3594 = vpop.permute.xlu0 %3593
      %3595 = vrot.lane.b32.xlu0 %v3511, 32
      %v3596 = vpop.permute.xlu0 %3595
      %3597 = vrot.lane.b32.xlu0 %v3512, 32
      %v3598 = vpop.permute.xlu0 %3597
      %3599 = vrot.lane.b32.xlu0 %v3513, 32
      %v3600 = vpop.permute.xlu0 %3599
      %3601 = vrot.lane.b32.xlu0 %v3514, 32
      %v3602 = vpop.permute.xlu0 %3601
      %3603 = vrot.lane.b32.xlu0 %v3515, 32
      %v3604 = vpop.permute.xlu0 %3603
      %3605 = vrot.lane.b32.xlu0 %v3516, 32
      %v3606 = vpop.permute.xlu0 %3605
      %3607 = vrot.lane.b32.xlu0 %v3517, 32
      %v3608 = vpop.permute.xlu0 %3607
      %3609 = vrot.lane.b32.xlu0 %v3518, 32
      %v3610 = vpop.permute.xlu0 %3609
      %3611 = vrot.lane.b32.xlu0 %v3519, 32
      %v3612 = vpop.permute.xlu0 %3611
      %3613 = vrot.lane.b32.xlu0 %v3520, 32
      %v3614 = vpop.permute.xlu0 %3613
      %3615 = vrot.lane.b32.xlu0 %v3521, 32
      %v3616 = vpop.permute.xlu0 %3615
      %3617 = vrot.lane.b32.xlu0 %v3522, 32
      %v3618 = vpop.permute.xlu0 %3617
      %vm3651 = vcmask 326912
      %3652 = vst.msk [vmem:[#allocation4] sm:$0xff] %vm3651, %v3556
      %3653 = vst.msk [vmem:[#allocation4 + $0x8] sm:$0xff] %vm3651, %v3558
      %3654 = vst.msk [vmem:[#allocation4 + $0x10] sm:$0xff] %vm3651, %v3560
      %3655 = vst.msk [vmem:[#allocation4 + $0x18] sm:$0xff] %vm3651, %v3562
      %3656 = vst.msk [vmem:[#allocation4 + $0x20] sm:$0xff] %vm3651, %v3564
      %3657 = vst.msk [vmem:[#allocation4 + $0x28] sm:$0xff] %vm3651, %v3566
      %3658 = vst.msk [vmem:[#allocation4 + $0x30] sm:$0xff] %vm3651, %v3568
      %3659 = vst.msk [vmem:[#allocation4 + $0x38] sm:$0xff] %vm3651, %v3570
      %3660 = vst.msk [vmem:[#allocation4 + $0x40] sm:$0xff] %vm3651, %v3572
      %3661 = vst.msk [vmem:[#allocation4 + $0x48] sm:$0xff] %vm3651, %v3574
      %3662 = vst.msk [vmem:[#allocation4 + $0x50] sm:$0xff] %vm3651, %v3576
      %3663 = vst.msk [vmem:[#allocation4 + $0x58] sm:$0xff] %vm3651, %v3578
      %3664 = vst.msk [vmem:[#allocation4 + $0x60] sm:$0xff] %vm3651, %v3580
      %3665 = vst.msk [vmem:[#allocation4 + $0x68] sm:$0xff] %vm3651, %v3582
      %3666 = vst.msk [vmem:[#allocation4 + $0x70] sm:$0xff] %vm3651, %v3584
      %3667 = vst.msk [vmem:[#allocation4 + $0x78] sm:$0xff] %vm3651, %v3586
      %3668 = vst.msk [vmem:[#allocation4 + $0x80] sm:$0xff] %vm3651, %v3588
      %3669 = vst.msk [vmem:[#allocation4 + $0x88] sm:$0xff] %vm3651, %v3590
      %3670 = vst.msk [vmem:[#allocation4 + $0x90] sm:$0xff] %vm3651, %v3592
      %3671 = vst.msk [vmem:[#allocation4 + $0x98] sm:$0xff] %vm3651, %v3594
      %3672 = vst.msk [vmem:[#allocation4 + $0xa0] sm:$0xff] %vm3651, %v3596
      %3673 = vst.msk [vmem:[#allocation4 + $0xa8] sm:$0xff] %vm3651, %v3598
      %3674 = vst.msk [vmem:[#allocation4 + $0xb0] sm:$0xff] %vm3651, %v3600
      %3675 = vst.msk [vmem:[#allocation4 + $0xb8] sm:$0xff] %vm3651, %v3602
      %3676 = vst.msk [vmem:[#allocation4 + $0xc0] sm:$0xff] %vm3651, %v3604
      %3677 = vst.msk [vmem:[#allocation4 + $0xc8] sm:$0xff] %vm3651, %v3606
      %3678 = vst.msk [vmem:[#allocation4 + $0xd0] sm:$0xff] %vm3651, %v3608
      %3679 = vst.msk [vmem:[#allocation4 + $0xd8] sm:$0xff] %vm3651, %v3610
      %3680 = vst.msk [vmem:[#allocation4 + $0xe0] sm:$0xff] %vm3651, %v3612
      %3681 = vst.msk [vmem:[#allocation4 + $0xe8] sm:$0xff] %vm3651, %v3614
      %3682 = vst.msk [vmem:[#allocation4 + $0xf0] sm:$0xff] %vm3651, %v3616
      %3683 = vst.msk [vmem:[#allocation4 + $0xf8] sm:$0xff] %vm3651, %v3618
      %v3684 = vld [vmem:[%s2815 + $0x2] sm:$0xff]
      %v3685 = vld [vmem:[%s2815 + $0xa] sm:$0xff]
      %v3686 = vld [vmem:[%s2815 + $0x1a] sm:$0xff]
      %v3687 = vld [vmem:[%s2815 + $0x22] sm:$0xff]
      %v3688 = vld [vmem:[%s2815 + $0x32] sm:$0xff]
      %v3689 = vld [vmem:[%s2815 + $0x3a] sm:$0xff]
      %v3690 = vld [vmem:[%s2815 + $0x4a] sm:$0xff]
      %v3691 = vld [vmem:[%s2815 + $0x52] sm:$0xff]
      %v3692 = vld [vmem:[%s2815 + $0x62] sm:$0xff]
      %v3693 = vld [vmem:[%s2815 + $0x6a] sm:$0xff]
      %v3694 = vld [vmem:[%s2815 + $0x7a] sm:$0xff]
      %v3695 = vld [vmem:[%s2815 + $0x82] sm:$0xff]
      %v3696 = vld [vmem:[%s2815 + $0x92] sm:$0xff]
      %v3697 = vld [vmem:[%s2815 + $0x9a] sm:$0xff]
      %v3698 = vld [vmem:[%s2815 + $0xaa] sm:$0xff]
      %v3699 = vld [vmem:[%s2815 + $0xb2] sm:$0xff]
      %v3700 = vld [vmem:[%s2815 + $0xc2] sm:$0xff]
      %v3701 = vld [vmem:[%s2815 + $0xca] sm:$0xff]
      %v3702 = vld [vmem:[%s2815 + $0xda] sm:$0xff]
      %v3703 = vld [vmem:[%s2815 + $0xe2] sm:$0xff]
      %v3704 = vld [vmem:[%s2815 + $0xf2] sm:$0xff]
      %v3705 = vld [vmem:[%s2815 + $0xfa] sm:$0xff]
      %v3706 = vld [vmem:[%s2815 + $0x10a] sm:$0xff]
      %v3707 = vld [vmem:[%s2815 + $0x112] sm:$0xff]
      %v3708 = vld [vmem:[%s2815 + $0x122] sm:$0xff]
      %v3709 = vld [vmem:[%s2815 + $0x12a] sm:$0xff]
      %v3710 = vld [vmem:[%s2815 + $0x13a] sm:$0xff]
      %v3711 = vld [vmem:[%s2815 + $0x142] sm:$0xff]
      %v3712 = vld [vmem:[%s2815 + $0x152] sm:$0xff]
      %v3713 = vld [vmem:[%s2815 + $0x15a] sm:$0xff]
      %v3714 = vld [vmem:[%s2815 + $0x16a] sm:$0xff]
      %v3715 = vld [vmem:[%s2815 + $0x172] sm:$0xff]
      %3748 = vrot.lane.b32.xlu0 %v3684, 40
      %v3749 = vpop.permute.xlu0 %3748
      %3750 = vrot.lane.b32.xlu0 %v3685, 40
      %v3751 = vpop.permute.xlu0 %3750
      %3752 = vrot.lane.b32.xlu0 %v3686, 40
      %v3753 = vpop.permute.xlu0 %3752
      %3754 = vrot.lane.b32.xlu0 %v3687, 40
      %v3755 = vpop.permute.xlu0 %3754
      %3756 = vrot.lane.b32.xlu0 %v3688, 40
      %v3757 = vpop.permute.xlu0 %3756
      %3758 = vrot.lane.b32.xlu0 %v3689, 40
      %v3759 = vpop.permute.xlu0 %3758
      %3760 = vrot.lane.b32.xlu0 %v3690, 40
      %v3761 = vpop.permute.xlu0 %3760
      %3762 = vrot.lane.b32.xlu0 %v3691, 40
      %v3763 = vpop.permute.xlu0 %3762
      %3764 = vrot.lane.b32.xlu0 %v3692, 40
      %v3765 = vpop.permute.xlu0 %3764
      %3766 = vrot.lane.b32.xlu0 %v3693, 40
      %v3767 = vpop.permute.xlu0 %3766
      %3768 = vrot.lane.b32.xlu0 %v3694, 40
      %v3769 = vpop.permute.xlu0 %3768
      %3770 = vrot.lane.b32.xlu0 %v3695, 40
      %v3771 = vpop.permute.xlu0 %3770
      %3772 = vrot.lane.b32.xlu0 %v3696, 40
      %v3773 = vpop.permute.xlu0 %3772
      %3774 = vrot.lane.b32.xlu0 %v3697, 40
      %v3775 = vpop.permute.xlu0 %3774
      %3776 = vrot.lane.b32.xlu0 %v3698, 40
      %v3777 = vpop.permute.xlu0 %3776
      %3778 = vrot.lane.b32.xlu0 %v3699, 40
      %v3779 = vpop.permute.xlu0 %3778
      %3780 = vrot.lane.b32.xlu0 %v3700, 40
      %v3781 = vpop.permute.xlu0 %3780
      %3782 = vrot.lane.b32.xlu0 %v3701, 40
      %v3783 = vpop.permute.xlu0 %3782
      %3784 = vrot.lane.b32.xlu0 %v3702, 40
      %v3785 = vpop.permute.xlu0 %3784
      %3786 = vrot.lane.b32.xlu0 %v3703, 40
      %v3787 = vpop.permute.xlu0 %3786
      %3788 = vrot.lane.b32.xlu0 %v3704, 40
      %v3789 = vpop.permute.xlu0 %3788
      %3790 = vrot.lane.b32.xlu0 %v3705, 40
      %v3791 = vpop.permute.xlu0 %3790
      %3792 = vrot.lane.b32.xlu0 %v3706, 40
      %v3793 = vpop.permute.xlu0 %3792
      %3794 = vrot.lane.b32.xlu0 %v3707, 40
      %v3795 = vpop.permute.xlu0 %3794
      %3796 = vrot.lane.b32.xlu0 %v3708, 40
      %v3797 = vpop.permute.xlu0 %3796
      %3798 = vrot.lane.b32.xlu0 %v3709, 40
      %v3799 = vpop.permute.xlu0 %3798
      %3800 = vrot.lane.b32.xlu0 %v3710, 40
      %v3801 = vpop.permute.xlu0 %3800
      %3802 = vrot.lane.b32.xlu0 %v3711, 40
      %v3803 = vpop.permute.xlu0 %3802
      %3804 = vrot.lane.b32.xlu0 %v3712, 40
      %v3805 = vpop.permute.xlu0 %3804
      %3806 = vrot.lane.b32.xlu0 %v3713, 40
      %v3807 = vpop.permute.xlu0 %3806
      %3808 = vrot.lane.b32.xlu0 %v3714, 40
      %v3809 = vpop.permute.xlu0 %3808
      %3810 = vrot.lane.b32.xlu0 %v3715, 40
      %v3811 = vpop.permute.xlu0 %3810
      %vm3844 = vcmask 392512
      %3845 = vst.msk [vmem:[#allocation4] sm:$0xff] %vm3844, %v3749
      %3846 = vst.msk [vmem:[#allocation4 + $0x8] sm:$0xff] %vm3844, %v3751
      %3847 = vst.msk [vmem:[#allocation4 + $0x10] sm:$0xff] %vm3844, %v3753
      %3848 = vst.msk [vmem:[#allocation4 + $0x18] sm:$0xff] %vm3844, %v3755
      %3849 = vst.msk [vmem:[#allocation4 + $0x20] sm:$0xff] %vm3844, %v3757
      %3850 = vst.msk [vmem:[#allocation4 + $0x28] sm:$0xff] %vm3844, %v3759
      %3851 = vst.msk [vmem:[#allocation4 + $0x30] sm:$0xff] %vm3844, %v3761
      %3852 = vst.msk [vmem:[#allocation4 + $0x38] sm:$0xff] %vm3844, %v3763
      %3853 = vst.msk [vmem:[#allocation4 + $0x40] sm:$0xff] %vm3844, %v3765
      %3854 = vst.msk [vmem:[#allocation4 + $0x48] sm:$0xff] %vm3844, %v3767
      %3855 = vst.msk [vmem:[#allocation4 + $0x50] sm:$0xff] %vm3844, %v3769
      %3856 = vst.msk [vmem:[#allocation4 + $0x58] sm:$0xff] %vm3844, %v3771
      %3857 = vst.msk [vmem:[#allocation4 + $0x60] sm:$0xff] %vm3844, %v3773
      %3858 = vst.msk [vmem:[#allocation4 + $0x68] sm:$0xff] %vm3844, %v3775
      %3859 = vst.msk [vmem:[#allocation4 + $0x70] sm:$0xff] %vm3844, %v3777
      %3860 = vst.msk [vmem:[#allocation4 + $0x78] sm:$0xff] %vm3844, %v3779
      %3861 = vst.msk [vmem:[#allocation4 + $0x80] sm:$0xff] %vm3844, %v3781
      %3862 = vst.msk [vmem:[#allocation4 + $0x88] sm:$0xff] %vm3844, %v3783
      %3863 = vst.msk [vmem:[#allocation4 + $0x90] sm:$0xff] %vm3844, %v3785
      %3864 = vst.msk [vmem:[#allocation4 + $0x98] sm:$0xff] %vm3844, %v3787
      %3865 = vst.msk [vmem:[#allocation4 + $0xa0] sm:$0xff] %vm3844, %v3789
      %3866 = vst.msk [vmem:[#allocation4 + $0xa8] sm:$0xff] %vm3844, %v3791
      %3867 = vst.msk [vmem:[#allocation4 + $0xb0] sm:$0xff] %vm3844, %v3793
      %3868 = vst.msk [vmem:[#allocation4 + $0xb8] sm:$0xff] %vm3844, %v3795
      %3869 = vst.msk [vmem:[#allocation4 + $0xc0] sm:$0xff] %vm3844, %v3797
      %3870 = vst.msk [vmem:[#allocation4 + $0xc8] sm:$0xff] %vm3844, %v3799
      %3871 = vst.msk [vmem:[#allocation4 + $0xd0] sm:$0xff] %vm3844, %v3801
      %3872 = vst.msk [vmem:[#allocation4 + $0xd8] sm:$0xff] %vm3844, %v3803
      %3873 = vst.msk [vmem:[#allocation4 + $0xe0] sm:$0xff] %vm3844, %v3805
      %3874 = vst.msk [vmem:[#allocation4 + $0xe8] sm:$0xff] %vm3844, %v3807
      %3875 = vst.msk [vmem:[#allocation4 + $0xf0] sm:$0xff] %vm3844, %v3809
      %3876 = vst.msk [vmem:[#allocation4 + $0xf8] sm:$0xff] %vm3844, %v3811
      %s3877 = scalar_lea.vmem [#allocation3], 48
      %v3878 = vld [vmem:[%s3877] sm:$0xff]
      %v3879 = vld [vmem:[%s3877 + $0x8] sm:$0xff]
      %v3880 = vld [vmem:[%s3877 + $0x18] sm:$0xff]
      %v3881 = vld [vmem:[%s3877 + $0x20] sm:$0xff]
      %v3882 = vld [vmem:[%s3877 + $0x30] sm:$0xff]
      %v3883 = vld [vmem:[%s3877 + $0x38] sm:$0xff]
      %v3884 = vld [vmem:[%s3877 + $0x48] sm:$0xff]
      %v3885 = vld [vmem:[%s3877 + $0x50] sm:$0xff]
      %v3886 = vld [vmem:[%s3877 + $0x60] sm:$0xff]
      %v3887 = vld [vmem:[%s3877 + $0x68] sm:$0xff]
      %v3888 = vld [vmem:[%s3877 + $0x78] sm:$0xff]
      %v3889 = vld [vmem:[%s3877 + $0x80] sm:$0xff]
      %v3890 = vld [vmem:[%s3877 + $0x90] sm:$0xff]
      %v3891 = vld [vmem:[%s3877 + $0x98] sm:$0xff]
      %v3892 = vld [vmem:[%s3877 + $0xa8] sm:$0xff]
      %v3893 = vld [vmem:[%s3877 + $0xb0] sm:$0xff]
      %v3894 = vld [vmem:[%s3877 + $0xc0] sm:$0xff]
      %v3895 = vld [vmem:[%s3877 + $0xc8] sm:$0xff]
      %v3896 = vld [vmem:[%s3877 + $0xd8] sm:$0xff]
      %v3897 = vld [vmem:[%s3877 + $0xe0] sm:$0xff]
      %v3898 = vld [vmem:[%s3877 + $0xf0] sm:$0xff]
      %v3899 = vld [vmem:[%s3877 + $0xf8] sm:$0xff]
      %v3900 = vld [vmem:[%s3877 + $0x108] sm:$0xff]
      %v3901 = vld [vmem:[%s3877 + $0x110] sm:$0xff]
      %v3902 = vld [vmem:[%s3877 + $0x120] sm:$0xff]
      %v3903 = vld [vmem:[%s3877 + $0x128] sm:$0xff]
      %v3904 = vld [vmem:[%s3877 + $0x138] sm:$0xff]
      %v3905 = vld [vmem:[%s3877 + $0x140] sm:$0xff]
      %v3906 = vld [vmem:[%s3877 + $0x150] sm:$0xff]
      %v3907 = vld [vmem:[%s3877 + $0x158] sm:$0xff]
      %v3908 = vld [vmem:[%s3877 + $0x168] sm:$0xff]
      %v3909 = vld [vmem:[%s3877 + $0x170] sm:$0xff]
      %3942 = vrot.lane.b32.xlu0 %v3878, 48
      %v3943 = vpop.permute.xlu0 %3942
      %3944 = vrot.lane.b32.xlu0 %v3879, 48
      %v3945 = vpop.permute.xlu0 %3944
      %3946 = vrot.lane.b32.xlu0 %v3880, 48
      %v3947 = vpop.permute.xlu0 %3946
      %3948 = vrot.lane.b32.xlu0 %v3881, 48
      %v3949 = vpop.permute.xlu0 %3948
      %3950 = vrot.lane.b32.xlu0 %v3882, 48
      %v3951 = vpop.permute.xlu0 %3950
      %3952 = vrot.lane.b32.xlu0 %v3883, 48
      %v3953 = vpop.permute.xlu0 %3952
      %3954 = vrot.lane.b32.xlu0 %v3884, 48
      %v3955 = vpop.permute.xlu0 %3954
      %3956 = vrot.lane.b32.xlu0 %v3885, 48
      %v3957 = vpop.permute.xlu0 %3956
      %3958 = vrot.lane.b32.xlu0 %v3886, 48
      %v3959 = vpop.permute.xlu0 %3958
      %3960 = vrot.lane.b32.xlu0 %v3887, 48
      %v3961 = vpop.permute.xlu0 %3960
      %3962 = vrot.lane.b32.xlu0 %v3888, 48
      %v3963 = vpop.permute.xlu0 %3962
      %3964 = vrot.lane.b32.xlu0 %v3889, 48
      %v3965 = vpop.permute.xlu0 %3964
      %3966 = vrot.lane.b32.xlu0 %v3890, 48
      %v3967 = vpop.permute.xlu0 %3966
      %3968 = vrot.lane.b32.xlu0 %v3891, 48
      %v3969 = vpop.permute.xlu0 %3968
      %3970 = vrot.lane.b32.xlu0 %v3892, 48
      %v3971 = vpop.permute.xlu0 %3970
      %3972 = vrot.lane.b32.xlu0 %v3893, 48
      %v3973 = vpop.permute.xlu0 %3972
      %3974 = vrot.lane.b32.xlu0 %v3894, 48
      %v3975 = vpop.permute.xlu0 %3974
      %3976 = vrot.lane.b32.xlu0 %v3895, 48
      %v3977 = vpop.permute.xlu0 %3976
      %3978 = vrot.lane.b32.xlu0 %v3896, 48
      %v3979 = vpop.permute.xlu0 %3978
      %3980 = vrot.lane.b32.xlu0 %v3897, 48
      %v3981 = vpop.permute.xlu0 %3980
      %3982 = vrot.lane.b32.xlu0 %v3898, 48
      %v3983 = vpop.permute.xlu0 %3982
      %3984 = vrot.lane.b32.xlu0 %v3899, 48
      %v3985 = vpop.permute.xlu0 %3984
      %3986 = vrot.lane.b32.xlu0 %v3900, 48
      %v3987 = vpop.permute.xlu0 %3986
      %3988 = vrot.lane.b32.xlu0 %v3901, 48
      %v3989 = vpop.permute.xlu0 %3988
      %3990 = vrot.lane.b32.xlu0 %v3902, 48
      %v3991 = vpop.permute.xlu0 %3990
      %3992 = vrot.lane.b32.xlu0 %v3903, 48
      %v3993 = vpop.permute.xlu0 %3992
      %3994 = vrot.lane.b32.xlu0 %v3904, 48
      %v3995 = vpop.permute.xlu0 %3994
      %3996 = vrot.lane.b32.xlu0 %v3905, 48
      %v3997 = vpop.permute.xlu0 %3996
      %3998 = vrot.lane.b32.xlu0 %v3906, 48
      %v3999 = vpop.permute.xlu0 %3998
      %4000 = vrot.lane.b32.xlu0 %v3907, 48
      %v4001 = vpop.permute.xlu0 %4000
      %4002 = vrot.lane.b32.xlu0 %v3908, 48
      %v4003 = vpop.permute.xlu0 %4002
      %4004 = vrot.lane.b32.xlu0 %v3909, 48
      %v4005 = vpop.permute.xlu0 %4004
      %vm4038 = vcmask 458112
      %4039 = vst.msk [vmem:[#allocation4] sm:$0xff] %vm4038, %v3943
      %4040 = vst.msk [vmem:[#allocation4 + $0x8] sm:$0xff] %vm4038, %v3945
      %4041 = vst.msk [vmem:[#allocation4 + $0x10] sm:$0xff] %vm4038, %v3947
      %4042 = vst.msk [vmem:[#allocation4 + $0x18] sm:$0xff] %vm4038, %v3949
      %4043 = vst.msk [vmem:[#allocation4 + $0x20] sm:$0xff] %vm4038, %v3951
      %4044 = vst.msk [vmem:[#allocation4 + $0x28] sm:$0xff] %vm4038, %v3953
      %4045 = vst.msk [vmem:[#allocation4 + $0x30] sm:$0xff] %vm4038, %v3955
      %4046 = vst.msk [vmem:[#allocation4 + $0x38] sm:$0xff] %vm4038, %v3957
      %4047 = vst.msk [vmem:[#allocation4 + $0x40] sm:$0xff] %vm4038, %v3959
      %4048 = vst.msk [vmem:[#allocation4 + $0x48] sm:$0xff] %vm4038, %v3961
      %4049 = vst.msk [vmem:[#allocation4 + $0x50] sm:$0xff] %vm4038, %v3963
      %4050 = vst.msk [vmem:[#allocation4 + $0x58] sm:$0xff] %vm4038, %v3965
      %4051 = vst.msk [vmem:[#allocation4 + $0x60] sm:$0xff] %vm4038, %v3967
      %4052 = vst.msk [vmem:[#allocation4 + $0x68] sm:$0xff] %vm4038, %v3969
      %4053 = vst.msk [vmem:[#allocation4 + $0x70] sm:$0xff] %vm4038, %v3971
      %4054 = vst.msk [vmem:[#allocation4 + $0x78] sm:$0xff] %vm4038, %v3973
      %4055 = vst.msk [vmem:[#allocation4 + $0x80] sm:$0xff] %vm4038, %v3975
      %4056 = vst.msk [vmem:[#allocation4 + $0x88] sm:$0xff] %vm4038, %v3977
      %4057 = vst.msk [vmem:[#allocation4 + $0x90] sm:$0xff] %vm4038, %v3979
      %4058 = vst.msk [vmem:[#allocation4 + $0x98] sm:$0xff] %vm4038, %v3981
      %4059 = vst.msk [vmem:[#allocation4 + $0xa0] sm:$0xff] %vm4038, %v3983
      %4060 = vst.msk [vmem:[#allocation4 + $0xa8] sm:$0xff] %vm4038, %v3985
      %4061 = vst.msk [vmem:[#allocation4 + $0xb0] sm:$0xff] %vm4038, %v3987
      %4062 = vst.msk [vmem:[#allocation4 + $0xb8] sm:$0xff] %vm4038, %v3989
      %4063 = vst.msk [vmem:[#allocation4 + $0xc0] sm:$0xff] %vm4038, %v3991
      %4064 = vst.msk [vmem:[#allocation4 + $0xc8] sm:$0xff] %vm4038, %v3993
      %4065 = vst.msk [vmem:[#allocation4 + $0xd0] sm:$0xff] %vm4038, %v3995
      %4066 = vst.msk [vmem:[#allocation4 + $0xd8] sm:$0xff] %vm4038, %v3997
      %4067 = vst.msk [vmem:[#allocation4 + $0xe0] sm:$0xff] %vm4038, %v3999
      %4068 = vst.msk [vmem:[#allocation4 + $0xe8] sm:$0xff] %vm4038, %v4001
      %4069 = vst.msk [vmem:[#allocation4 + $0xf0] sm:$0xff] %vm4038, %v4003
      %4070 = vst.msk [vmem:[#allocation4 + $0xf8] sm:$0xff] %vm4038, %v4005
      %v4071 = vld [vmem:[%s3877 + $0x1] sm:$0xff]
      %v4072 = vld [vmem:[%s3877 + $0x9] sm:$0xff]
      %v4073 = vld [vmem:[%s3877 + $0x19] sm:$0xff]
      %v4074 = vld [vmem:[%s3877 + $0x21] sm:$0xff]
      %v4075 = vld [vmem:[%s3877 + $0x31] sm:$0xff]
      %v4076 = vld [vmem:[%s3877 + $0x39] sm:$0xff]
      %v4077 = vld [vmem:[%s3877 + $0x49] sm:$0xff]
      %v4078 = vld [vmem:[%s3877 + $0x51] sm:$0xff]
      %v4079 = vld [vmem:[%s3877 + $0x61] sm:$0xff]
      %v4080 = vld [vmem:[%s3877 + $0x69] sm:$0xff]
      %v4081 = vld [vmem:[%s3877 + $0x79] sm:$0xff]
      %v4082 = vld [vmem:[%s3877 + $0x81] sm:$0xff]
      %v4083 = vld [vmem:[%s3877 + $0x91] sm:$0xff]
      %v4084 = vld [vmem:[%s3877 + $0x99] sm:$0xff]
      %v4085 = vld [vmem:[%s3877 + $0xa9] sm:$0xff]
      %v4086 = vld [vmem:[%s3877 + $0xb1] sm:$0xff]
      %v4087 = vld [vmem:[%s3877 + $0xc1] sm:$0xff]
      %v4088 = vld [vmem:[%s3877 + $0xc9] sm:$0xff]
      %v4089 = vld [vmem:[%s3877 + $0xd9] sm:$0xff]
      %v4090 = vld [vmem:[%s3877 + $0xe1] sm:$0xff]
      %v4091 = vld [vmem:[%s3877 + $0xf1] sm:$0xff]
      %v4092 = vld [vmem:[%s3877 + $0xf9] sm:$0xff]
      %v4093 = vld [vmem:[%s3877 + $0x109] sm:$0xff]
      %v4094 = vld [vmem:[%s3877 + $0x111] sm:$0xff]
      %v4095 = vld [vmem:[%s3877 + $0x121] sm:$0xff]
      %v4096 = vld [vmem:[%s3877 + $0x129] sm:$0xff]
      %v4097 = vld [vmem:[%s3877 + $0x139] sm:$0xff]
      %v4098 = vld [vmem:[%s3877 + $0x141] sm:$0xff]
      %v4099 = vld [vmem:[%s3877 + $0x151] sm:$0xff]
      %v4100 = vld [vmem:[%s3877 + $0x159] sm:$0xff]
      %v4101 = vld [vmem:[%s3877 + $0x169] sm:$0xff]
      %v4102 = vld [vmem:[%s3877 + $0x171] sm:$0xff]
      %4135 = vrot.lane.b32.xlu0 %v4071, 56
      %v4136 = vpop.permute.xlu0 %4135
      %4137 = vrot.lane.b32.xlu0 %v4072, 56
      %v4138 = vpop.permute.xlu0 %4137
      %4139 = vrot.lane.b32.xlu0 %v4073, 56
      %v4140 = vpop.permute.xlu0 %4139
      %4141 = vrot.lane.b32.xlu0 %v4074, 56
      %v4142 = vpop.permute.xlu0 %4141
      %4143 = vrot.lane.b32.xlu0 %v4075, 56
      %v4144 = vpop.permute.xlu0 %4143
      %4145 = vrot.lane.b32.xlu0 %v4076, 56
      %v4146 = vpop.permute.xlu0 %4145
      %4147 = vrot.lane.b32.xlu0 %v4077, 56
      %v4148 = vpop.permute.xlu0 %4147
      %4149 = vrot.lane.b32.xlu0 %v4078, 56
      %v4150 = vpop.permute.xlu0 %4149
      %4151 = vrot.lane.b32.xlu0 %v4079, 56
      %v4152 = vpop.permute.xlu0 %4151
      %4153 = vrot.lane.b32.xlu0 %v4080, 56
      %v4154 = vpop.permute.xlu0 %4153
      %4155 = vrot.lane.b32.xlu0 %v4081, 56
      %v4156 = vpop.permute.xlu0 %4155
      %4157 = vrot.lane.b32.xlu0 %v4082, 56
      %v4158 = vpop.permute.xlu0 %4157
      %4159 = vrot.lane.b32.xlu0 %v4083, 56
      %v4160 = vpop.permute.xlu0 %4159
      %4161 = vrot.lane.b32.xlu0 %v4084, 56
      %v4162 = vpop.permute.xlu0 %4161
      %4163 = vrot.lane.b32.xlu0 %v4085, 56
      %v4164 = vpop.permute.xlu0 %4163
      %4165 = vrot.lane.b32.xlu0 %v4086, 56
      %v4166 = vpop.permute.xlu0 %4165
      %4167 = vrot.lane.b32.xlu0 %v4087, 56
      %v4168 = vpop.permute.xlu0 %4167
      %4169 = vrot.lane.b32.xlu0 %v4088, 56
      %v4170 = vpop.permute.xlu0 %4169
      %4171 = vrot.lane.b32.xlu0 %v4089, 56
      %v4172 = vpop.permute.xlu0 %4171
      %4173 = vrot.lane.b32.xlu0 %v4090, 56
      %v4174 = vpop.permute.xlu0 %4173
      %4175 = vrot.lane.b32.xlu0 %v4091, 56
      %v4176 = vpop.permute.xlu0 %4175
      %4177 = vrot.lane.b32.xlu0 %v4092, 56
      %v4178 = vpop.permute.xlu0 %4177
      %4179 = vrot.lane.b32.xlu0 %v4093, 56
      %v4180 = vpop.permute.xlu0 %4179
      %4181 = vrot.lane.b32.xlu0 %v4094, 56
      %v4182 = vpop.permute.xlu0 %4181
      %4183 = vrot.lane.b32.xlu0 %v4095, 56
      %v4184 = vpop.permute.xlu0 %4183
      %4185 = vrot.lane.b32.xlu0 %v4096, 56
      %v4186 = vpop.permute.xlu0 %4185
      %4187 = vrot.lane.b32.xlu0 %v4097, 56
      %v4188 = vpop.permute.xlu0 %4187
      %4189 = vrot.lane.b32.xlu0 %v4098, 56
      %v4190 = vpop.permute.xlu0 %4189
      %4191 = vrot.lane.b32.xlu0 %v4099, 56
      %v4192 = vpop.permute.xlu0 %4191
      %4193 = vrot.lane.b32.xlu0 %v4100, 56
      %v4194 = vpop.permute.xlu0 %4193
      %4195 = vrot.lane.b32.xlu0 %v4101, 56
      %v4196 = vpop.permute.xlu0 %4195
      %4197 = vrot.lane.b32.xlu0 %v4102, 56
      %v4198 = vpop.permute.xlu0 %4197
      %vm4231 = vcmask 523712
      %4232 = vst.msk [vmem:[#allocation4] sm:$0xff] %vm4231, %v4136
      %4233 = vst.msk [vmem:[#allocation4 + $0x8] sm:$0xff] %vm4231, %v4138
      %4234 = vst.msk [vmem:[#allocation4 + $0x10] sm:$0xff] %vm4231, %v4140
      %4235 = vst.msk [vmem:[#allocation4 + $0x18] sm:$0xff] %vm4231, %v4142
      %4236 = vst.msk [vmem:[#allocation4 + $0x20] sm:$0xff] %vm4231, %v4144
      %4237 = vst.msk [vmem:[#allocation4 + $0x28] sm:$0xff] %vm4231, %v4146
      %4238 = vst.msk [vmem:[#allocation4 + $0x30] sm:$0xff] %vm4231, %v4148
      %4239 = vst.msk [vmem:[#allocation4 + $0x38] sm:$0xff] %vm4231, %v4150
      %4240 = vst.msk [vmem:[#allocation4 + $0x40] sm:$0xff] %vm4231, %v4152
      %4241 = vst.msk [vmem:[#allocation4 + $0x48] sm:$0xff] %vm4231, %v4154
      %4242 = vst.msk [vmem:[#allocation4 + $0x50] sm:$0xff] %vm4231, %v4156
      %4243 = vst.msk [vmem:[#allocation4 + $0x58] sm:$0xff] %vm4231, %v4158
      %4244 = vst.msk [vmem:[#allocation4 + $0x60] sm:$0xff] %vm4231, %v4160
      %4245 = vst.msk [vmem:[#allocation4 + $0x68] sm:$0xff] %vm4231, %v4162
      %4246 = vst.msk [vmem:[#allocation4 + $0x70] sm:$0xff] %vm4231, %v4164
      %4247 = vst.msk [vmem:[#allocation4 + $0x78] sm:$0xff] %vm4231, %v4166
      %4248 = vst.msk [vmem:[#allocation4 + $0x80] sm:$0xff] %vm4231, %v4168
      %4249 = vst.msk [vmem:[#allocation4 + $0x88] sm:$0xff] %vm4231, %v4170
      %4250 = vst.msk [vmem:[#allocation4 + $0x90] sm:$0xff] %vm4231, %v4172
      %4251 = vst.msk [vmem:[#allocation4 + $0x98] sm:$0xff] %vm4231, %v4174
      %4252 = vst.msk [vmem:[#allocation4 + $0xa0] sm:$0xff] %vm4231, %v4176
      %4253 = vst.msk [vmem:[#allocation4 + $0xa8] sm:$0xff] %vm4231, %v4178
      %4254 = vst.msk [vmem:[#allocation4 + $0xb0] sm:$0xff] %vm4231, %v4180
      %4255 = vst.msk [vmem:[#allocation4 + $0xb8] sm:$0xff] %vm4231, %v4182
      %4256 = vst.msk [vmem:[#allocation4 + $0xc0] sm:$0xff] %vm4231, %v4184
      %4257 = vst.msk [vmem:[#allocation4 + $0xc8] sm:$0xff] %vm4231, %v4186
      %4258 = vst.msk [vmem:[#allocation4 + $0xd0] sm:$0xff] %vm4231, %v4188
      %4259 = vst.msk [vmem:[#allocation4 + $0xd8] sm:$0xff] %vm4231, %v4190
      %4260 = vst.msk [vmem:[#allocation4 + $0xe0] sm:$0xff] %vm4231, %v4192
      %4261 = vst.msk [vmem:[#allocation4 + $0xe8] sm:$0xff] %vm4231, %v4194
      %4262 = vst.msk [vmem:[#allocation4 + $0xf0] sm:$0xff] %vm4231, %v4196
      %4263 = vst.msk [vmem:[#allocation4 + $0xf8] sm:$0xff] %vm4231, %v4198
      %v4264 = vld [vmem:[%s3877 + $0x2] sm:$0xff]
      %v4265 = vld [vmem:[%s3877 + $0xa] sm:$0xff]
      %v4266 = vld [vmem:[%s3877 + $0x1a] sm:$0xff]
      %v4267 = vld [vmem:[%s3877 + $0x22] sm:$0xff]
      %v4268 = vld [vmem:[%s3877 + $0x32] sm:$0xff]
      %v4269 = vld [vmem:[%s3877 + $0x3a] sm:$0xff]
      %v4270 = vld [vmem:[%s3877 + $0x4a] sm:$0xff]
      %v4271 = vld [vmem:[%s3877 + $0x52] sm:$0xff]
      %v4272 = vld [vmem:[%s3877 + $0x62] sm:$0xff]
      %v4273 = vld [vmem:[%s3877 + $0x6a] sm:$0xff]
      %v4274 = vld [vmem:[%s3877 + $0x7a] sm:$0xff]
      %v4275 = vld [vmem:[%s3877 + $0x82] sm:$0xff]
      %v4276 = vld [vmem:[%s3877 + $0x92] sm:$0xff]
      %v4277 = vld [vmem:[%s3877 + $0x9a] sm:$0xff]
      %v4278 = vld [vmem:[%s3877 + $0xaa] sm:$0xff]
      %v4279 = vld [vmem:[%s3877 + $0xb2] sm:$0xff]
      %v4280 = vld [vmem:[%s3877 + $0xc2] sm:$0xff]
      %v4281 = vld [vmem:[%s3877 + $0xca] sm:$0xff]
      %v4282 = vld [vmem:[%s3877 + $0xda] sm:$0xff]
      %v4283 = vld [vmem:[%s3877 + $0xe2] sm:$0xff]
      %v4284 = vld [vmem:[%s3877 + $0xf2] sm:$0xff]
      %v4285 = vld [vmem:[%s3877 + $0xfa] sm:$0xff]
      %v4286 = vld [vmem:[%s3877 + $0x10a] sm:$0xff]
      %v4287 = vld [vmem:[%s3877 + $0x112] sm:$0xff]
      %v4288 = vld [vmem:[%s3877 + $0x122] sm:$0xff]
      %v4289 = vld [vmem:[%s3877 + $0x12a] sm:$0xff]
      %v4290 = vld [vmem:[%s3877 + $0x13a] sm:$0xff]
      %v4291 = vld [vmem:[%s3877 + $0x142] sm:$0xff]
      %v4292 = vld [vmem:[%s3877 + $0x152] sm:$0xff]
      %v4293 = vld [vmem:[%s3877 + $0x15a] sm:$0xff]
      %v4294 = vld [vmem:[%s3877 + $0x16a] sm:$0xff]
      %v4295 = vld [vmem:[%s3877 + $0x172] sm:$0xff]
      %4328 = vrot.lane.b32.xlu0 %v4264, 64
      %v4329 = vpop.permute.xlu0 %4328
      %4330 = vrot.lane.b32.xlu0 %v4265, 64
      %v4331 = vpop.permute.xlu0 %4330
      %4332 = vrot.lane.b32.xlu0 %v4266, 64
      %v4333 = vpop.permute.xlu0 %4332
      %4334 = vrot.lane.b32.xlu0 %v4267, 64
      %v4335 = vpop.permute.xlu0 %4334
      %4336 = vrot.lane.b32.xlu0 %v4268, 64
      %v4337 = vpop.permute.xlu0 %4336
      %4338 = vrot.lane.b32.xlu0 %v4269, 64
      %v4339 = vpop.permute.xlu0 %4338
      %4340 = vrot.lane.b32.xlu0 %v4270, 64
      %v4341 = vpop.permute.xlu0 %4340
      %4342 = vrot.lane.b32.xlu0 %v4271, 64
      %v4343 = vpop.permute.xlu0 %4342
      %4344 = vrot.lane.b32.xlu0 %v4272, 64
      %v4345 = vpop.permute.xlu0 %4344
      %4346 = vrot.lane.b32.xlu0 %v4273, 64
      %v4347 = vpop.permute.xlu0 %4346
      %4348 = vrot.lane.b32.xlu0 %v4274, 64
      %v4349 = vpop.permute.xlu0 %4348
      %4350 = vrot.lane.b32.xlu0 %v4275, 64
      %v4351 = vpop.permute.xlu0 %4350
      %4352 = vrot.lane.b32.xlu0 %v4276, 64
      %v4353 = vpop.permute.xlu0 %4352
      %4354 = vrot.lane.b32.xlu0 %v4277, 64
      %v4355 = vpop.permute.xlu0 %4354
      %4356 = vrot.lane.b32.xlu0 %v4278, 64
      %v4357 = vpop.permute.xlu0 %4356
      %4358 = vrot.lane.b32.xlu0 %v4279, 64
      %v4359 = vpop.permute.xlu0 %4358
      %4360 = vrot.lane.b32.xlu0 %v4280, 64
      %v4361 = vpop.permute.xlu0 %4360
      %4362 = vrot.lane.b32.xlu0 %v4281, 64
      %v4363 = vpop.permute.xlu0 %4362
      %4364 = vrot.lane.b32.xlu0 %v4282, 64
      %v4365 = vpop.permute.xlu0 %4364
      %4366 = vrot.lane.b32.xlu0 %v4283, 64
      %v4367 = vpop.permute.xlu0 %4366
      %4368 = vrot.lane.b32.xlu0 %v4284, 64
      %v4369 = vpop.permute.xlu0 %4368
      %4370 = vrot.lane.b32.xlu0 %v4285, 64
      %v4371 = vpop.permute.xlu0 %4370
      %4372 = vrot.lane.b32.xlu0 %v4286, 64
      %v4373 = vpop.permute.xlu0 %4372
      %4374 = vrot.lane.b32.xlu0 %v4287, 64
      %v4375 = vpop.permute.xlu0 %4374
      %4376 = vrot.lane.b32.xlu0 %v4288, 64
      %v4377 = vpop.permute.xlu0 %4376
      %4378 = vrot.lane.b32.xlu0 %v4289, 64
      %v4379 = vpop.permute.xlu0 %4378
      %4380 = vrot.lane.b32.xlu0 %v4290, 64
      %v4381 = vpop.permute.xlu0 %4380
      %4382 = vrot.lane.b32.xlu0 %v4291, 64
      %v4383 = vpop.permute.xlu0 %4382
      %4384 = vrot.lane.b32.xlu0 %v4292, 64
      %v4385 = vpop.permute.xlu0 %4384
      %4386 = vrot.lane.b32.xlu0 %v4293, 64
      %v4387 = vpop.permute.xlu0 %4386
      %4388 = vrot.lane.b32.xlu0 %v4294, 64
      %v4389 = vpop.permute.xlu0 %4388
      %4390 = vrot.lane.b32.xlu0 %v4295, 64
      %v4391 = vpop.permute.xlu0 %4390
      %vm4424 = vcmask 589312
      %4425 = vst.msk [vmem:[#allocation4] sm:$0xff] %vm4424, %v4329
      %4426 = vst.msk [vmem:[#allocation4 + $0x8] sm:$0xff] %vm4424, %v4331
      %4427 = vst.msk [vmem:[#allocation4 + $0x10] sm:$0xff] %vm4424, %v4333
      %4428 = vst.msk [vmem:[#allocation4 + $0x18] sm:$0xff] %vm4424, %v4335
      %4429 = vst.msk [vmem:[#allocation4 + $0x20] sm:$0xff] %vm4424, %v4337
      %4430 = vst.msk [vmem:[#allocation4 + $0x28] sm:$0xff] %vm4424, %v4339
      %4431 = vst.msk [vmem:[#allocation4 + $0x30] sm:$0xff] %vm4424, %v4341
      %4432 = vst.msk [vmem:[#allocation4 + $0x38] sm:$0xff] %vm4424, %v4343
      %4433 = vst.msk [vmem:[#allocation4 + $0x40] sm:$0xff] %vm4424, %v4345
      %4434 = vst.msk [vmem:[#allocation4 + $0x48] sm:$0xff] %vm4424, %v4347
      %4435 = vst.msk [vmem:[#allocation4 + $0x50] sm:$0xff] %vm4424, %v4349
      %4436 = vst.msk [vmem:[#allocation4 + $0x58] sm:$0xff] %vm4424, %v4351
      %4437 = vst.msk [vmem:[#allocation4 + $0x60] sm:$0xff] %vm4424, %v4353
      %4438 = vst.msk [vmem:[#allocation4 + $0x68] sm:$0xff] %vm4424, %v4355
      %4439 = vst.msk [vmem:[#allocation4 + $0x70] sm:$0xff] %vm4424, %v4357
      %4440 = vst.msk [vmem:[#allocation4 + $0x78] sm:$0xff] %vm4424, %v4359
      %4441 = vst.msk [vmem:[#allocation4 + $0x80] sm:$0xff] %vm4424, %v4361
      %4442 = vst.msk [vmem:[#allocation4 + $0x88] sm:$0xff] %vm4424, %v4363
      %4443 = vst.msk [vmem:[#allocation4 + $0x90] sm:$0xff] %vm4424, %v4365
      %4444 = vst.msk [vmem:[#allocation4 + $0x98] sm:$0xff] %vm4424, %v4367
      %4445 = vst.msk [vmem:[#allocation4 + $0xa0] sm:$0xff] %vm4424, %v4369
      %4446 = vst.msk [vmem:[#allocation4 + $0xa8] sm:$0xff] %vm4424, %v4371
      %4447 = vst.msk [vmem:[#allocation4 + $0xb0] sm:$0xff] %vm4424, %v4373
      %4448 = vst.msk [vmem:[#allocation4 + $0xb8] sm:$0xff] %vm4424, %v4375
      %4449 = vst.msk [vmem:[#allocation4 + $0xc0] sm:$0xff] %vm4424, %v4377
      %4450 = vst.msk [vmem:[#allocation4 + $0xc8] sm:$0xff] %vm4424, %v4379
      %4451 = vst.msk [vmem:[#allocation4 + $0xd0] sm:$0xff] %vm4424, %v4381
      %4452 = vst.msk [vmem:[#allocation4 + $0xd8] sm:$0xff] %vm4424, %v4383
      %4453 = vst.msk [vmem:[#allocation4 + $0xe0] sm:$0xff] %vm4424, %v4385
      %4454 = vst.msk [vmem:[#allocation4 + $0xe8] sm:$0xff] %vm4424, %v4387
      %4455 = vst.msk [vmem:[#allocation4 + $0xf0] sm:$0xff] %vm4424, %v4389
      %4456 = vst.msk [vmem:[#allocation4 + $0xf8] sm:$0xff] %vm4424, %v4391
      %v4457 = vld [vmem:[#allocation4] sm:$0xff]
      %v4458 = vld [vmem:[#allocation4 + $0x8] sm:$0xff]
      %v4459 = vld [vmem:[#allocation4 + $0x10] sm:$0xff]
      %v4460 = vld [vmem:[#allocation4 + $0x18] sm:$0xff]
      %v4461 = vld [vmem:[#allocation4 + $0x20] sm:$0xff]
      %v4462 = vld [vmem:[#allocation4 + $0x28] sm:$0xff]
      %v4463 = vld [vmem:[#allocation4 + $0x30] sm:$0xff]
      %v4464 = vld [vmem:[#allocation4 + $0x38] sm:$0xff]
      %v4465 = vld [vmem:[#allocation4 + $0x40] sm:$0xff]
      %v4466 = vld [vmem:[#allocation4 + $0x48] sm:$0xff]
      %v4467 = vld [vmem:[#allocation4 + $0x50] sm:$0xff]
      %v4468 = vld [vmem:[#allocation4 + $0x58] sm:$0xff]
      %v4469 = vld [vmem:[#allocation4 + $0x60] sm:$0xff]
      %v4470 = vld [vmem:[#allocation4 + $0x68] sm:$0xff]
      %v4471 = vld [vmem:[#allocation4 + $0x70] sm:$0xff]
      %v4472 = vld [vmem:[#allocation4 + $0x78] sm:$0xff]
      %v4473 = vld [vmem:[#allocation4 + $0x80] sm:$0xff]
      %v4474 = vld [vmem:[#allocation4 + $0x88] sm:$0xff]
      %v4475 = vld [vmem:[#allocation4 + $0x90] sm:$0xff]
      %v4476 = vld [vmem:[#allocation4 + $0x98] sm:$0xff]
      %v4477 = vld [vmem:[#allocation4 + $0xa0] sm:$0xff]
      %v4478 = vld [vmem:[#allocation4 + $0xa8] sm:$0xff]
      %v4479 = vld [vmem:[#allocation4 + $0xb0] sm:$0xff]
      %v4480 = vld [vmem:[#allocation4 + $0xb8] sm:$0xff]
      %v4481 = vld [vmem:[#allocation4 + $0xc0] sm:$0xff]
      %v4482 = vld [vmem:[#allocation4 + $0xc8] sm:$0xff]
      %v4483 = vld [vmem:[#allocation4 + $0xd0] sm:$0xff]
      %v4484 = vld [vmem:[#allocation4 + $0xd8] sm:$0xff]
      %v4485 = vld [vmem:[#allocation4 + $0xe0] sm:$0xff]
      %v4486 = vld [vmem:[#allocation4 + $0xe8] sm:$0xff]
      %v4487 = vld [vmem:[#allocation4 + $0xf0] sm:$0xff]
      %v4488 = vld [vmem:[#allocation4 + $0xf8] sm:$0xff]
      %v4489 = vld [vmem:[%s6] sm:$0xff]
      %v4490 = vld [vmem:[%s6 + $0x8] sm:$0xff]
      %v4491 = vld [vmem:[%s6 + $0x10] sm:$0xff]
      %v4492 = vld [vmem:[%s6 + $0x18] sm:$0xff]
      %v4493 = vld [vmem:[%s6 + $0x20] sm:$0xff]
      %v4494 = vld [vmem:[%s6 + $0x28] sm:$0xff]
      %v4495 = vld [vmem:[%s6 + $0x30] sm:$0xff]
      %v4496 = vld [vmem:[%s6 + $0x38] sm:$0xff]
      %v4497 = vld [vmem:[%s6 + $0x40] sm:$0xff]
      %v4498 = vld [vmem:[%s6 + $0x48] sm:$0xf]
      %vm4499 = vcmask 621568
      %v4501 = vsel %vm4499, %v4457, 0
      %v4504 = vsel %vm4499, %v4458, 0
      %v4507 = vsel %vm4499, %v4459, 0
      %v4510 = vsel %vm4499, %v4460, 0
      %v4513 = vsel %vm4499, %v4461, 0
      %v4516 = vsel %vm4499, %v4462, 0
      %v4519 = vsel %vm4499, %v4463, 0
      %v4522 = vsel %vm4499, %v4464, 0
      %v4525 = vsel %vm4499, %v4465, 0
      %v4528 = vsel %vm4499, %v4466, 0
      %v4531 = vsel %vm4499, %v4467, 0
      %v4534 = vsel %vm4499, %v4468, 0
      %v4537 = vsel %vm4499, %v4469, 0
      %v4540 = vsel %vm4499, %v4470, 0
      %v4543 = vsel %vm4499, %v4471, 0
      %v4546 = vsel %vm4499, %v4472, 0
      %v4549 = vsel %vm4499, %v4473, 0
      %v4552 = vsel %vm4499, %v4474, 0
      %v4555 = vsel %vm4499, %v4475, 0
      %v4558 = vsel %vm4499, %v4476, 0
      %v4561 = vsel %vm4499, %v4477, 0
      %v4564 = vsel %vm4499, %v4478, 0
      %v4567 = vsel %vm4499, %v4479, 0
      %v4570 = vsel %vm4499, %v4480, 0
      %v4573 = vsel %vm4499, %v4481, 0
      %v4576 = vsel %vm4499, %v4482, 0
      %v4579 = vsel %vm4499, %v4483, 0
      %v4582 = vsel %vm4499, %v4484, 0
      %v4585 = vsel %vm4499, %v4485, 0
      %v4588 = vsel %vm4499, %v4486, 0
      %v4591 = vsel %vm4499, %v4487, 0
      %v4594 = vsel %vm4499, %v4488, 0
      %v4597 = vsel %vm2431, %v4498, 0
      %4599 = vmatprep.subr.mxu0 0.0
      %4600 = vmatpush1.msra.mxu0 %v4489
      %4601 = vmatprep.subr.mxu0 0.0
      %4602 = vmatpush1.msra.mxu0 %v4490
      %4603 = vmatprep.subr.mxu0 0.0
      %4604 = vmatpush1.msra.mxu0 %v4491
      %4605 = vmatprep.subr.mxu0 0.0
      %4606 = vmatpush1.msra.mxu0 %v4492
      %4607 = vmatprep.subr.mxu0 0.0
      %4608 = vmatpush1.msra.mxu0 %v4493
      %4609 = vmatprep.subr.mxu0 0.0
      %4610 = vmatpush1.msra.mxu0 %v4494
      %4611 = vmatprep.subr.mxu0 0.0
      %4612 = vmatpush1.msra.mxu0 %v4495
      %4613 = vmatprep.subr.mxu0 0.0
      %4614 = vmatpush1.msra.mxu0 %v4496
      %4615 = vmatprep.subr.mxu0 0.0
      %4616 = vmatpush1.msra.mxu0 %v4497
      %4617 = vmatprep.subr.mxu0 0.0
      %4618 = vmatpush1.msra.mxu0 %v4597
      %4619 = vmatprep.subr.mxu0 0.0
      %4620 = vmatpush1.msra.mxu0 0.0
      %4621 = vmatprep.subr.mxu0 0.0
      %4622 = vmatpush1.msra.mxu0 0.0
      %4623 = vmatprep.subr.mxu0 0.0
      %4624 = vmatpush1.msra.mxu0 0.0
      %4625 = vmatprep.subr.mxu0 0.0
      %4626 = vmatpush1.msra.mxu0 0.0
      %4627 = vmatprep.subr.mxu0 0.0
      %4628 = vmatpush1.msra.mxu0 0.0
      %4629 = vmatprep.subr.mxu0 0.0
      %4630 = vmatpush1.msra.mxu0 0.0
      %4631 = vmatprep.subr.mxu0 0.0
      %4632 = vmatpush1.msra.mxu0 0.0
      %4633 = vmatprep.subr.mxu0 0.0
      %4634 = vmatpush1.msra.mxu0 0.0
      %4635 = vmatprep.subr.mxu0 0.0
      %4636 = vmatpush1.msra.mxu0 0.0
      %4637 = vmatprep.subr.mxu0 0.0
      %4638 = vmatpush1.msra.mxu0 0.0
      %4639 = vmatprep.subr.mxu0 0.0
      %4640 = vmatpush1.msra.mxu0 0.0
      %4641 = vmatprep.subr.mxu0 0.0
      %4642 = vmatpush1.msra.mxu0 0.0
      %4643 = vmatprep.subr.mxu0 0.0
      %4644 = vmatpush1.msra.mxu0 0.0
      %4645 = vmatprep.subr.mxu0 0.0
      %4646 = vmatpush1.msra.mxu0 0.0
      %4647 = vmatprep.subr.mxu0 0.0
      %4648 = vmatpush1.msra.mxu0 0.0
      %4649 = vmatprep.subr.mxu0 0.0
      %4650 = vmatpush1.msra.mxu0 0.0
      %4651 = vmatprep.subr.mxu0 0.0
      %4652 = vmatpush1.msra.mxu0 0.0
      %4653 = vmatprep.subr.mxu0 0.0
      %4654 = vmatpush1.msra.mxu0 0.0
      %4655 = vmatprep.subr.mxu0 0.0
      %4656 = vmatpush1.msra.mxu0 0.0
      %4657 = vmatprep.subr.mxu0 0.0
      %4658 = vmatpush1.msra.mxu0 0.0
      %4659 = vmatprep.subr.mxu0 0.0
      %4660 = vmatpush1.msra.mxu0 0.0
      %4661 = vmatprep.subr.mxu0 0.0
      %4662 = vmatpush1.msra.mxu0 0.0
      %4663 = vmatprep.mubr.f32.mxu0 0.0
      %4664 = vmatmul.mubr.f32.gmra.mrb[0].mxu0 %v4501
      %v4665 = vpop.f32.mrb[0].mxu0
      %v4666 = vadd.f32 0.0, %v4665
      %v4667 = vpop.f32.mrb[0].mxu0
      %4668 = vmatprep.mubr.f32.mxu0 0.0
      %4669 = vmatmul.mubr.f32.gmra.mrb[0].mxu0 %v4504
      %v4670 = vpop.f32.mrb[0].mxu0
      %v4671 = vadd.f32 0.0, %v4670
      %v4672 = vpop.f32.mrb[0].mxu0
      %4673 = vmatprep.mubr.f32.mxu0 0.0
      %4674 = vmatmul.mubr.f32.gmra.mrb[0].mxu0 %v4507
      %v4675 = vpop.f32.mrb[0].mxu0
      %v4676 = vadd.f32 0.0, %v4675
      %v4677 = vpop.f32.mrb[0].mxu0
      %4678 = vmatprep.mubr.f32.mxu0 0.0
      %4679 = vmatmul.mubr.f32.gmra.mrb[0].mxu0 %v4510
      %v4680 = vpop.f32.mrb[0].mxu0
      %v4681 = vadd.f32 0.0, %v4680
      %v4682 = vpop.f32.mrb[0].mxu0
      %4683 = vmatprep.mubr.f32.mxu0 0.0
      %4684 = vmatmul.mubr.f32.gmra.mrb[0].mxu0 %v4513
      %v4685 = vpop.f32.mrb[0].mxu0
      %v4686 = vadd.f32 0.0, %v4685
      %v4687 = vpop.f32.mrb[0].mxu0
      %4688 = vmatprep.mubr.f32.mxu0 0.0
      %4689 = vmatmul.mubr.f32.gmra.mrb[0].mxu0 %v4516
      %v4690 = vpop.f32.mrb[0].mxu0
      %v4691 = vadd.f32 0.0, %v4690
      %v4692 = vpop.f32.mrb[0].mxu0
      %4693 = vmatprep.mubr.f32.mxu0 0.0
      %4694 = vmatmul.mubr.f32.gmra.mrb[0].mxu0 %v4519
      %v4695 = vpop.f32.mrb[0].mxu0
      %v4696 = vadd.f32 0.0, %v4695
      %v4697 = vpop.f32.mrb[0].mxu0
      %4698 = vmatprep.mubr.f32.mxu0 0.0
      %4699 = vmatmul.mubr.f32.gmra.mrb[0].mxu0 %v4522
      %v4700 = vpop.f32.mrb[0].mxu0
      %v4701 = vadd.f32 0.0, %v4700
      %v4702 = vpop.f32.mrb[0].mxu0
      %4703 = vmatprep.mubr.f32.mxu0 0.0
      %4704 = vmatmul.mubr.f32.gmra.mrb[0].mxu0 %v4525
      %v4705 = vpop.f32.mrb[0].mxu0
      %v4706 = vadd.f32 0.0, %v4705
      %v4707 = vpop.f32.mrb[0].mxu0
      %4708 = vmatprep.mubr.f32.mxu0 0.0
      %4709 = vmatmul.mubr.f32.gmra.mrb[0].mxu0 %v4528
      %v4710 = vpop.f32.mrb[0].mxu0
      %v4711 = vadd.f32 0.0, %v4710
      %v4712 = vpop.f32.mrb[0].mxu0
      %4713 = vmatprep.mubr.f32.mxu0 0.0
      %4714 = vmatmul.mubr.f32.gmra.mrb[0].mxu0 %v4531
      %v4715 = vpop.f32.mrb[0].mxu0
      %v4716 = vadd.f32 0.0, %v4715
      %v4717 = vpop.f32.mrb[0].mxu0
      %4718 = vmatprep.mubr.f32.mxu0 0.0
      %4719 = vmatmul.mubr.f32.gmra.mrb[0].mxu0 %v4534
      %v4720 = vpop.f32.mrb[0].mxu0
      %v4721 = vadd.f32 0.0, %v4720
      %v4722 = vpop.f32.mrb[0].mxu0
      %4723 = vmatprep.mubr.f32.mxu0 0.0
      %4724 = vmatmul.mubr.f32.gmra.mrb[0].mxu0 %v4537
      %v4725 = vpop.f32.mrb[0].mxu0
      %v4726 = vadd.f32 0.0, %v4725
      %v4727 = vpop.f32.mrb[0].mxu0
      %4728 = vmatprep.mubr.f32.mxu0 0.0
      %4729 = vmatmul.mubr.f32.gmra.mrb[0].mxu0 %v4540
      %v4730 = vpop.f32.mrb[0].mxu0
      %v4731 = vadd.f32 0.0, %v4730
      %v4732 = vpop.f32.mrb[0].mxu0
      %4733 = vmatprep.mubr.f32.mxu0 0.0
      %4734 = vmatmul.mubr.f32.gmra.mrb[0].mxu0 %v4543
      %v4735 = vpop.f32.mrb[0].mxu0
      %v4736 = vadd.f32 0.0, %v4735
      %v4737 = vpop.f32.mrb[0].mxu0
      %4738 = vmatprep.mubr.f32.mxu0 0.0
      %4739 = vmatmul.mubr.f32.gmra.mrb[0].mxu0 %v4546
      %v4740 = vpop.f32.mrb[0].mxu0
      %v4741 = vadd.f32 0.0, %v4740
      %v4742 = vpop.f32.mrb[0].mxu0
      %4743 = vmatprep.mubr.f32.mxu0 0.0
      %4744 = vmatmul.mubr.f32.gmra.mrb[0].mxu0 %v4549
      %v4745 = vpop.f32.mrb[0].mxu0
      %v4746 = vadd.f32 0.0, %v4745
      %v4747 = vpop.f32.mrb[0].mxu0
      %4748 = vmatprep.mubr.f32.mxu0 0.0
      %4749 = vmatmul.mubr.f32.gmra.mrb[0].mxu0 %v4552
      %v4750 = vpop.f32.mrb[0].mxu0
      %v4751 = vadd.f32 0.0, %v4750
      %v4752 = vpop.f32.mrb[0].mxu0
      %4753 = vmatprep.mubr.f32.mxu0 0.0
      %4754 = vmatmul.mubr.f32.gmra.mrb[0].mxu0 %v4555
      %v4755 = vpop.f32.mrb[0].mxu0
      %v4756 = vadd.f32 0.0, %v4755
      %v4757 = vpop.f32.mrb[0].mxu0
      %4758 = vmatprep.mubr.f32.mxu0 0.0
      %4759 = vmatmul.mubr.f32.gmra.mrb[0].mxu0 %v4558
      %v4760 = vpop.f32.mrb[0].mxu0
      %v4761 = vadd.f32 0.0, %v4760
      %v4762 = vpop.f32.mrb[0].mxu0
      %4763 = vmatprep.mubr.f32.mxu0 0.0
      %4764 = vmatmul.mubr.f32.gmra.mrb[0].mxu0 %v4561
      %v4765 = vpop.f32.mrb[0].mxu0
      %v4766 = vadd.f32 0.0, %v4765
      %v4767 = vpop.f32.mrb[0].mxu0
      %4768 = vmatprep.mubr.f32.mxu0 0.0
      %4769 = vmatmul.mubr.f32.gmra.mrb[0].mxu0 %v4564
      %v4770 = vpop.f32.mrb[0].mxu0
      %v4771 = vadd.f32 0.0, %v4770
      %v4772 = vpop.f32.mrb[0].mxu0
      %4773 = vmatprep.mubr.f32.mxu0 0.0
      %4774 = vmatmul.mubr.f32.gmra.mrb[0].mxu0 %v4567
      %v4775 = vpop.f32.mrb[0].mxu0
      %v4776 = vadd.f32 0.0, %v4775
      %v4777 = vpop.f32.mrb[0].mxu0
      %4778 = vmatprep.mubr.f32.mxu0 0.0
      %4779 = vmatmul.mubr.f32.gmra.mrb[0].mxu0 %v4570
      %v4780 = vpop.f32.mrb[0].mxu0
      %v4781 = vadd.f32 0.0, %v4780
      %v4782 = vpop.f32.mrb[0].mxu0
      %4783 = vmatprep.mubr.f32.mxu0 0.0
      %4784 = vmatmul.mubr.f32.gmra.mrb[0].mxu0 %v4573
      %v4785 = vpop.f32.mrb[0].mxu0
      %v4786 = vadd.f32 0.0, %v4785
      %v4787 = vpop.f32.mrb[0].mxu0
      %4788 = vmatprep.mubr.f32.mxu0 0.0
      %4789 = vmatmul.mubr.f32.gmra.mrb[0].mxu0 %v4576
      %v4790 = vpop.f32.mrb[0].mxu0
      %v4791 = vadd.f32 0.0, %v4790
      %v4792 = vpop.f32.mrb[0].mxu0
      %4793 = vmatprep.mubr.f32.mxu0 0.0
      %4794 = vmatmul.mubr.f32.gmra.mrb[0].mxu0 %v4579
      %v4795 = vpop.f32.mrb[0].mxu0
      %v4796 = vadd.f32 0.0, %v4795
      %v4797 = vpop.f32.mrb[0].mxu0
      %4798 = vmatprep.mubr.f32.mxu0 0.0
      %4799 = vmatmul.mubr.f32.gmra.mrb[0].mxu0 %v4582
      %v4800 = vpop.f32.mrb[0].mxu0
      %v4801 = vadd.f32 0.0, %v4800
      %v4802 = vpop.f32.mrb[0].mxu0
      %4803 = vmatprep.mubr.f32.mxu0 0.0
      %4804 = vmatmul.mubr.f32.gmra.mrb[0].mxu0 %v4585
      %v4805 = vpop.f32.mrb[0].mxu0
      %v4806 = vadd.f32 0.0, %v4805
      %v4807 = vpop.f32.mrb[0].mxu0
      %4808 = vmatprep.mubr.f32.mxu0 0.0
      %4809 = vmatmul.mubr.f32.gmra.mrb[0].mxu0 %v4588
      %v4810 = vpop.f32.mrb[0].mxu0
      %v4811 = vadd.f32 0.0, %v4810
      %v4812 = vpop.f32.mrb[0].mxu0
      %4813 = vmatprep.mubr.f32.mxu0 0.0
      %4814 = vmatmul.mubr.f32.gmra.mrb[0].mxu0 %v4591
      %v4815 = vpop.f32.mrb[0].mxu0
      %v4816 = vadd.f32 0.0, %v4815
      %v4817 = vpop.f32.mrb[0].mxu0
      %4818 = vmatprep.mubr.f32.mxu0 0.0
      %4819 = vmatmul.mubr.f32.gmra.mrb[0].mxu0 %v4594
      %v4820 = vpop.f32.mrb[0].mxu0
      %v4821 = vadd.f32 0.0, %v4820
      %v4822 = vpop.f32.mrb[0].mxu0
      %4823 = vdwg.mxu0
      %4824 = vst.msk [vmem:[%s305] sm:$0xff] %vm2770, %v4666
      %4825 = vst.msk [vmem:[%s305 + $0x8] sm:$0xff] %vm2770, %v4671
      %4826 = vst.msk [vmem:[%s305 + $0x10] sm:$0xff] %vm2770, %v4676
      %4827 = vst.msk [vmem:[%s305 + $0x18] sm:$0xff] %vm2770, %v4681
      %4828 = vst.msk [vmem:[%s305 + $0x20] sm:$0xff] %vm2770, %v4686
      %4829 = vst.msk [vmem:[%s305 + $0x28] sm:$0xff] %vm2770, %v4691
      %4830 = vst.msk [vmem:[%s305 + $0x30] sm:$0xff] %vm2770, %v4696
      %4831 = vst.msk [vmem:[%s305 + $0x38] sm:$0xff] %vm2770, %v4701
      %4832 = vst.msk [vmem:[%s305 + $0x40] sm:$0xff] %vm2770, %v4706
      %4833 = vst.msk [vmem:[%s305 + $0x48] sm:$0xff] %vm2770, %v4711
      %4834 = vst.msk [vmem:[%s305 + $0x50] sm:$0xff] %vm2770, %v4716
      %4835 = vst.msk [vmem:[%s305 + $0x58] sm:$0xff] %vm2770, %v4721
      %4836 = vst.msk [vmem:[%s305 + $0x60] sm:$0xff] %vm2770, %v4726
      %4837 = vst.msk [vmem:[%s305 + $0x68] sm:$0xff] %vm2770, %v4731
      %4838 = vst.msk [vmem:[%s305 + $0x70] sm:$0xff] %vm2770, %v4736
      %4839 = vst.msk [vmem:[%s305 + $0x78] sm:$0xff] %vm2770, %v4741
      %4840 = vst.msk [vmem:[%s305 + $0x80] sm:$0xff] %vm2770, %v4746
      %4841 = vst.msk [vmem:[%s305 + $0x88] sm:$0xff] %vm2770, %v4751
      %4842 = vst.msk [vmem:[%s305 + $0x90] sm:$0xff] %vm2770, %v4756
      %4843 = vst.msk [vmem:[%s305 + $0x98] sm:$0xff] %vm2770, %v4761
      %4844 = vst.msk [vmem:[%s305 + $0xa0] sm:$0xff] %vm2770, %v4766
      %4845 = vst.msk [vmem:[%s305 + $0xa8] sm:$0xff] %vm2770, %v4771
      %4846 = vst.msk [vmem:[%s305 + $0xb0] sm:$0xff] %vm2770, %v4776
      %4847 = vst.msk [vmem:[%s305 + $0xb8] sm:$0xff] %vm2770, %v4781
      %4848 = vst.msk [vmem:[%s305 + $0xc0] sm:$0xff] %vm2770, %v4786
      %4849 = vst.msk [vmem:[%s305 + $0xc8] sm:$0xff] %vm2770, %v4791
      %4850 = vst.msk [vmem:[%s305 + $0xd0] sm:$0xff] %vm2770, %v4796
      %4851 = vst.msk [vmem:[%s305 + $0xd8] sm:$0xff] %vm2770, %v4801
      %4852 = vst.msk [vmem:[%s305 + $0xe0] sm:$0xff] %vm2770, %v4806
      %4853 = vst.msk [vmem:[%s305 + $0xe8] sm:$0xff] %vm2770, %v4811
      %4854 = vst.msk [vmem:[%s305 + $0xf0] sm:$0xff] %vm2770, %v4816
      %4855 = vst.msk [vmem:[%s305 + $0xf8] sm:$0xff] %vm2770, %v4821
      %s4856 = smul.u32 32, %s19
      %p4857 = scmp.lt.s32.totalorder %s4856, 63
      %s4858 = scalar_select %p4857, %s4856, 63
      %s4859 = smul.addr %s4858, 8
      %s4860 = scalar_lea.vmem %s8, %s4859
      // Predicated region
      $region53: #{tpu_custom_call.1} parent=51 // pred_check
        %p4861 = pneg %p210
      $region54: #{tpu_custom_call.1} parent=51 // pred_check_branch
        %4863 = sbr.rel (%p4861) target = $region56
      $region55: #{tpu_custom_call.1} parent=51 // pred_region
        %s4864 = smul.u32 32, %s19
      $region56: #{tpu_custom_call.1} parent=51 // pred_fallthru
        _
    $region52: #{tpu_custom_call.1} parent=5 // pred_fallthru
      _
    %p4865 = scmp.le.s32.totalorder 2, %s14
    // Predicated region
    $region57: #{tpu_custom_call.1} parent=5 // pred_check
      %p4866 = pneg %p4865
    $region58: #{tpu_custom_call.1} parent=5 // pred_check_branch
      %4868 = sbr.rel (%p4866) target = $region60
    $region59: #{tpu_custom_call.1} parent=5 // pred_region
      %s4869 = ssub.s32 %s14, 2
      // Predicated region
      $region61: #{tpu_custom_call.1} parent=59 // pred_check
        %p4870 = pneg %p216
      $region62: #{tpu_custom_call.1} parent=59 // pred_check_branch
        %4872 = sbr.rel (%p4870) target = $region64
      $region63: #{tpu_custom_call.1} parent=59 // pred_region
        %s4873 = smul.u32 32, %s20
        %p4874 = scmp.lt.s32.totalorder %s4873, 63
        %s4875 = scalar_select %p4874, %s4873, 63
        %s4876 = smul.addr %s4875, 8
        %s4877 = scalar_lea.vmem %s8, %s4876
      $region64: #{tpu_custom_call.1} parent=59 // pred_fallthru
        _
    $region60: #{tpu_custom_call.1} parent=5 // pred_fallthru
      _
  $region6: #{tpu_custom_call.1} parent=0 // loop_footer
    %s18 = sadd.s32 1, %s14
  $region7: #{tpu_custom_call.1} parent=0 // loop_footer_branch
    %13 = sbr.rel target = $region3
  $region8: #{tpu_custom_call.1} parent=0 // loop_exit
    _

</llo_original>
